<compile_context>
chip_gen: v7x
topology: tpu7x:2x2x1
jax: 0.10.0
libtpu: 0.0.40
codegen_flags: <defaults>
</compile_context>

<pallas_src>
import functools
import numpy as np
import jax
import jax.numpy as jnp
from jax.experimental import pallas as pl
from jax.experimental.pallas import tpu as pltpu

HIDDEN = 32
LATENT = 16
NUM_LAYERS = 2
NUM_HEADS = 4
STRUCT_FEATS = {"laplace": 8, "random_walk": 12}
NODE_LABELS = {"atom_type": 10, "charge": 4}
EDGE_LABELS = {"bond_type": 5}

NEG_INF = -1e9
SLAB_LANES = 128


def _round_up(x, m):
    return ((x + m - 1) // m) * m


# ---------------------------- in-kernel helpers ----------------------------

def _mxu(a, b):
    # MXU matmul: bf16 operands (2x rate on v6e/v7x, half operand bytes), f32 accumulation.
    return jnp.dot(a.astype(jnp.bfloat16), b.astype(jnp.bfloat16),
                   preferred_element_type=jnp.float32)


def _layer_norm(x, g, b):
    m = jnp.mean(x, axis=-1, keepdims=True)
    v = jnp.mean((x - m) ** 2, axis=-1, keepdims=True)
    return (x - m) * jax.lax.rsqrt(v + 1e-5) * g + b


def _segmented_log_softmax(logits, segments):
    """Exact log-softmax over independent lane segments of a lane-dense (rows, 128) slab."""
    lane = jax.lax.broadcasted_iota(jnp.int32, logits.shape, 1)
    out = jnp.zeros_like(logits)
    for _, lo, hi in segments:
        m = (lane >= lo) & (lane < hi)
        row_max = jnp.max(jnp.where(m, logits, NEG_INF), axis=-1, keepdims=True)
        shifted = logits - row_max
        denom = jnp.sum(jnp.where(m, jnp.exp(shifted), 0.0), axis=-1, keepdims=True)
        out = jnp.where(m, shifted - jnp.log(denom), out)
    return out


# ---------------------------- the fused kernel ----------------------------

def _decoder_kernel(node_in_ref, batch_col_ref, batch_row_ref, ei_cols_ref, ei_rows_ref,
                    slab_ref, node_out_ref, edge_out_ref, *,
                    layout, feat_cols, lat_off, num_heads, num_layers,
                    node_segments, edge_segments, n_nodes, n_edges):
    """Entire MoleculeDecoder forward in one kernel invocation (whole-array VMEM blocks)."""

    def pf(name):                              # f32 view of a param band (exact width)
        off, r, c = layout[name]
        return slab_ref[pl.ds(off, r), pl.ds(0, c)]

    def pb(name):                              # bf16 MXU operand view
        return pf(name).astype(jnp.bfloat16)

    def pfull(name):                           # full 128-lane view (zero-padded columns)
        off, r, _ = layout[name]
        return slab_ref[pl.ds(off, r), :]

    # ---- glue built in-kernel (no dense O(N^2)/O(E*N) HBM operands) ----
    attn_bias = jnp.where(batch_col_ref[...] == batch_row_ref[...], 0.0, NEG_INF)  # (N, N)

    ei_cols = ei_cols_ref[...]                 # (E, 2) int32: [src | dst]
    ei_rows = ei_rows_ref[...]                 # (2, E) int32
    lane_iota = jax.lax.broadcasted_iota(jnp.int32, (n_edges, n_nodes), 1)
    row_iota = jax.lax.broadcasted_iota(jnp.int32, (n_nodes, n_edges), 0)
    oh_src = jnp.where(lane_iota == ei_cols[:, 0:1], 1.0, 0.0).astype(jnp.bfloat16)   # (E, N)
    oh_dst = jnp.where(lane_iota == ei_cols[:, 1:2], 1.0, 0.0).astype(jnp.bfloat16)   # (E, N)
    oh_dst_t = jnp.where(row_iota == ei_rows[1:2, :], 1.0, 0.0).astype(jnp.bfloat16)  # (N, E)

    # ---- structure featurizers (BatchRenorm folded into w1/b1 at pack time) ----
    nin = node_in_ref[...]                     # (N, 8+12+16)
    x = None
    for name, c0, d in feat_cols:
        f = nin[:, c0:c0 + d]
        h = jnp.maximum(_mxu(f, pb(name + "/w1")) + pf(name + "/b1"), 0.0)
        h = _mxu(h, pb(name + "/w2")) + pf(name + "/b2")
        h = _layer_norm(h, pf(name + "/ln_g"), pf(name + "/ln_b"))
        x = h if x is None else x + h
    # TODO(synk): training-only flip_vectors('laplace') is skipped — eval-mode semantics.
    lat = nin[:, lat_off:lat_off + LATENT]
    x = x + _mxu(lat, pb("noise_w")) + pf("noise_b")

    d_head = HIDDEN // num_heads

    # ---- GPS layers: GINConv local branch + segment-masked MHA global branch + FFN ----
    for li in range(num_layers):
        pre = f"layer{li}/"
        xb = x.astype(jnp.bfloat16)

        # local: GINConv(eps=0) = mlp(x + sum_{j->i} x_j); neighbour sum as gather/scatter
        # one-hot matmuls (never materialises an (N,N) adjacency)
        gathered = jnp.dot(oh_src, xb, preferred_element_type=jnp.float32)       # (E, H)
        nbr = jnp.dot(oh_dst_t, gathered.astype(jnp.bfloat16),
                      preferred_element_type=jnp.float32)                         # (N, H)
        z = x + nbr
        h = jnp.maximum(_mxu(z, pb(pre + "gin_w1")) + pf(pre + "gin_b1"), 0.0)
        h = _mxu(h, pb(pre + "gin_w2")) + pf(pre + "gin_b2")
        h = h + x
        h = h * pf(pre + "bn1_scale") + pf(pre + "bn1_shift")      # eval BatchNorm (affine)

        # global: MHA over the concatenated node tensor with block-diagonal segment mask
        # (equivalent to to_dense_batch + key_padding_mask + gather-back of valid rows).
        # Fused QKV matmul; 1/sqrt(d_head) already folded into Wq/bq; bf16 casts hoisted.
        qkv = _mxu(x, pb(pre + "w_qkv")) + pf(pre + "b_qkv")                      # (N, 3H)
        q = qkv[:, 0:HIDDEN].astype(jnp.bfloat16)
        k = qkv[:, HIDDEN:2 * HIDDEN].astype(jnp.bfloat16)
        v = qkv[:, 2 * HIDDEN:3 * HIDDEN].astype(jnp.bfloat16)
        wo = pb(pre + "wo")
        attn = jnp.zeros_like(x)
        for hd in range(num_heads):            # static unroll; output proj fused per head
            sl = slice(hd * d_head, (hd + 1) * d_head)
            s = jax.lax.dot_general(q[:, sl], k[:, sl], (((1,), (1,)), ((), ())),
                                    preferred_element_type=jnp.float32)
            s = s + attn_bias
            s = s - jnp.max(s, axis=-1, keepdims=True)
            p = jnp.exp(s)
            p = p * pl.reciprocal(jnp.sum(p, axis=-1, keepdims=True), approx=True)
            pv = jnp.dot(p.astype(jnp.bfloat16), v[:, sl],
                         preferred_element_type=jnp.float32)
            attn = attn + jnp.dot(pv.astype(jnp.bfloat16), wo[sl, :],
                                  preferred_element_type=jnp.float32)
        h_attn = attn + pf(pre + "bo") + x
        h_attn = h_attn * pf(pre + "bn2_scale") + pf(pre + "bn2_shift")

        # combine + feed-forward + final (eval) BatchNorm; dropout(p=0.0) is identity
        out = h + h_attn
        ff = jnp.maximum(_mxu(out, pb(pre + "mlp_w1")) + pf(pre + "mlp_b1"), 0.0)
        out = out + _mxu(ff, pb(pre + "mlp_w2")) + pf(pre + "mlp_b2")
        x = out * pf(pre + "bn3_scale") + pf(pre + "bn3_shift")

    # ---- edge fusion: x[src] + x[dst] as a one-hot matmul (bf16 operands), then MLP ----
    e_in = jnp.dot(oh_src + oh_dst, x.astype(jnp.bfloat16),
                   preferred_element_type=jnp.float32)                            # (E, H)
    e_h = jnp.maximum(_mxu(e_in, pb("ef_w1")) + pf("ef_b1"), 0.0)
    e_act = _mxu(e_h, pb("ef_w2")) + pf("ef_b2")

    # ---- fused lane-dense heads (one 128-wide matmul each) + segmented log-softmax ----
    node_logits = _mxu(x, pfull("node_head_w")) + pfull("node_head_b")            # (N, 128)
    node_out_ref[...] = _segmented_log_softmax(node_logits, node_segments)
    edge_logits = _mxu(e_act, pfull("edge_head_w")) + pfull("edge_head_b")        # (E, 128)
    edge_out_ref[...] = _segmented_log_softmax(edge_logits, edge_segments)


# ---------------------------- parameter packing ----------------------------

def pack_params(params, num_heads=NUM_HEADS):
    """Fold eval-mode norms/scales and pack every weight into ONE lane-dense f32 slab.
    Returns (slab, layout, node_segments, edge_segments); layout maps name -> (row, r, c)."""
    entries, layout = [], {}
    rows = 0

    def add(name, arr):
        nonlocal rows
        a = np.asarray(arr, np.float32)
        if a.ndim == 1:
            a = a[None, :]
        r, c = a.shape
        assert c <= SLAB_LANES
        layout[name] = (rows, r, c)
        entries.append((rows, a))
        rows += _round_up(r, 8)                 # keep every band sublane-aligned

    # featurizers: fold BatchRenorm eval affine into the first Linear
    for name in sorted(params["featurizers"].keys()):
        fp = params["featurizers"][name]
        s = np.asarray(fp["bn_scale"], np.float32)
        t = np.asarray(fp["bn_shift"], np.float32)
        w1 = np.asarray(fp["w1"], np.float32)
        b1 = np.asarray(fp["b1"], np.float32)
        add(name + "/w1", w1 * s.reshape(-1, 1))
        add(name + "/b1", b1 + t @ w1)
        add(name + "/w2", fp["w2"]); add(name + "/b2", fp["b2"])
        add(name + "/ln_g", fp["ln_g"]); add(name + "/ln_b", fp["ln_b"])

    add("noise_w", params["noise_w"]); add("noise_b", params["noise_b"])

    scale = 1.0 / float(np.sqrt(HIDDEN // num_heads))
    for li, lp in enumerate(params["layers"]):
        pre = f"layer{li}/"
        add(pre + "gin_w1", lp["gin_w1"]); add(pre + "gin_b1", lp["gin_b1"])
        add(pre + "gin_w2", lp["gin_w2"]); add(pre + "gin_b2", lp["gin_b2"])
        add(pre + "bn1_scale", lp["bn1_scale"]); add(pre + "bn1_shift", lp["bn1_shift"])
        wq = np.asarray(lp["wq"], np.float32) * scale          # fold 1/sqrt(d_head) into Q
        bq = np.asarray(lp["bq"], np.float32) * scale
        add(pre + "w_qkv", np.concatenate([wq, np.asarray(lp["wk"], np.float32),
                                           np.asarray(lp["wv"], np.float32)], axis=1))
        add(pre + "b_qkv", np.concatenate([bq, np.asarray(lp["bk"], np.float32),
                                           np.asarray(lp["bv"], np.float32)], axis=1))
        add(pre + "wo", lp["wo"]); add(pre + "bo", lp["bo"])
        add(pre + "bn2_scale", lp["bn2_scale"]); add(pre + "bn2_shift", lp["bn2_shift"])
        add(pre + "mlp_w1", lp["mlp_w1"]); add(pre + "mlp_b1", lp["mlp_b1"])
        add(pre + "mlp_w2", lp["mlp_w2"]); add(pre + "mlp_b2", lp["mlp_b2"])
        add(pre + "bn3_scale", lp["bn3_scale"]); add(pre + "bn3_shift", lp["bn3_shift"])

    ef = params["edge_fusion"]
    add("ef_w1", ef["w1"]); add("ef_b1", ef["b1"])
    add("ef_w2", ef["w2"]); add("ef_b2", ef["b2"])

    # fuse all node heads (and edge heads) into one lane-dense matmul each
    node_names = tuple(NODE_LABELS.keys())
    edge_names = tuple(EDGE_LABELS.keys())
    add("node_head_w", np.concatenate(
        [np.asarray(params["node_heads"][k]["w"], np.float32) for k in node_names], 1))
    add("node_head_b", np.concatenate(
        [np.asarray(params["node_heads"][k]["b"], np.float32) for k in node_names], 1))
    add("edge_head_w", np.concatenate(
        [np.asarray(params["edge_heads"][k]["w"], np.float32) for k in edge_names], 1))
    add("edge_head_b", np.concatenate(
        [np.asarray(params["edge_heads"][k]["b"], np.float32) for k in edge_names], 1))

    slab = np.zeros((_round_up(rows, 8), SLAB_LANES), np.float32)
    for off, a in entries:
        slab[off:off + a.shape[0], :a.shape[1]] = a

    node_segments, c = [], 0
    for k in node_names:
        node_segments.append((k, c, c + NODE_LABELS[k])); c += NODE_LABELS[k]
    edge_segments, c = [], 0
    for k in edge_names:
        edge_segments.append((k, c, c + EDGE_LABELS[k])); c += EDGE_LABELS[k]

    return jnp.asarray(slab), layout, tuple(node_segments), tuple(edge_segments)


# ---------------------------- forward wrapper ----------------------------

def make_decoder_forward(layout, node_segments, edge_segments, n_nodes, n_edges):
    feat_cols, c = [], 0
    for name in sorted(STRUCT_FEATS.keys()):
        feat_cols.append((name, c, STRUCT_FEATS[name])); c += STRUCT_FEATS[name]
    lat_off = c

    kernel = functools.partial(
        _decoder_kernel, layout=layout, feat_cols=tuple(feat_cols), lat_off=lat_off,
        num_heads=NUM_HEADS, num_layers=NUM_LAYERS,
        node_segments=node_segments, edge_segments=edge_segments,
        n_nodes=n_nodes, n_edges=n_edges)

    out_shape = (jax.ShapeDtypeStruct((n_nodes, SLAB_LANES), jnp.float32),
                 jax.ShapeDtypeStruct((n_edges, SLAB_LANES), jnp.float32))

    # single pallas_call, no grid: the entire working set (<1 MiB) lives in VMEM
    call = pl.pallas_call(
        kernel, out_shape=out_shape,
        compiler_params=pltpu.CompilerParams(vmem_limit_bytes=32 * 1024 * 1024))

    def forward(slab, feats, latents, batch_vec, edge_index):
        node_in = jnp.concatenate([feats[name] for name, _, _ in feat_cols] + [latents], 1)
        bvec = batch_vec.astype(jnp.int32)
        batch_col = bvec.reshape(n_nodes, 1)
        batch_row = bvec.reshape(1, n_nodes)
        ei_rows = edge_index.astype(jnp.int32)              # (2, E) [src; dst]
        ei_cols = jnp.transpose(ei_rows)                     # (E, 2)
        node_slab, edge_slab = call(node_in, batch_col, batch_row, ei_cols, ei_rows, slab)
        node_logits = {k: node_slab[:, lo:hi] for k, lo, hi in node_segments}
        edge_logits = {k: edge_slab[:, lo:hi] for k, lo, hi in edge_segments}
        return node_logits, edge_logits

    return jax.jit(forward)


# ---------------------------- parameters ----------------------------

def init_params(key):
    keys = iter(jax.random.split(key, 256))

    def nrm(shape, s=0.1):
        return s * jax.random.normal(next(keys), shape, jnp.float32)

    featurizers = {}
    for name, dim in STRUCT_FEATS.items():
        featurizers[name] = dict(
            bn_scale=1.0 + nrm((1, dim), 0.05), bn_shift=nrm((1, dim), 0.05),
            w1=nrm((dim, HIDDEN)), b1=nrm((1, HIDDEN)),
            w2=nrm((HIDDEN, HIDDEN)), b2=nrm((1, HIDDEN)),
            ln_g=1.0 + nrm((1, HIDDEN), 0.05), ln_b=nrm((1, HIDDEN), 0.05),
        )
    layers = []
    for _ in range(NUM_LAYERS):
        layers.append(dict(
            gin_w1=nrm((HIDDEN, HIDDEN)), gin_b1=nrm((1, HIDDEN)),
            gin_w2=nrm((HIDDEN, HIDDEN)), gin_b2=nrm((1, HIDDEN)),
            bn1_scale=1.0 + nrm((1, HIDDEN), 0.05), bn1_shift=nrm((1, HIDDEN), 0.05),
            wq=nrm((HIDDEN, HIDDEN)), bq=nrm((1, HIDDEN)),
            wk=nrm((HIDDEN, HIDDEN)), bk=nrm((1, HIDDEN)),
            wv=nrm((HIDDEN, HIDDEN)), bv=nrm((1, HIDDEN)),
            wo=nrm((HIDDEN, HIDDEN)), bo=nrm((1, HIDDEN)),
            bn2_scale=1.0 + nrm((1, HIDDEN), 0.05), bn2_shift=nrm((1, HIDDEN), 0.05),
            mlp_w1=nrm((HIDDEN, 2 * HIDDEN)), mlp_b1=nrm((1, 2 * HIDDEN)),
            mlp_w2=nrm((2 * HIDDEN, HIDDEN)), mlp_b2=nrm((1, HIDDEN)),
            bn3_scale=1.0 + nrm((1, HIDDEN), 0.05), bn3_shift=nrm((1, HIDDEN), 0.05),
        ))
    return dict(
        featurizers=featurizers,
        noise_w=nrm((LATENT, HIDDEN)), noise_b=nrm((1, HIDDEN)),
        layers=layers,
        edge_fusion=dict(w1=nrm((HIDDEN, HIDDEN)), b1=nrm((1, HIDDEN)),
                         w2=nrm((HIDDEN, HIDDEN)), b2=nrm((1, HIDDEN))),
        node_heads={name: dict(w=nrm((HIDDEN, d)), b=nrm((1, d)))
                    for name, d in NODE_LABELS.items()},
        edge_heads={name: dict(w=nrm((HIDDEN, d)), b=nrm((1, d)))
                    for name, d in EDGE_LABELS.items()},
    )


# ---------------------------- main ----------------------------

if __name__ == "__main__":
    key = jax.random.PRNGKey(0)
    pkey, lkey, fkey = jax.random.split(key, 3)
    params = init_params(pkey)
    slab, layout, node_segments, edge_segments = pack_params(params)

    # two graphs (9 and 7 nodes), ring topology with both edge directions
    sizes = [9, 7]
    n_nodes = sum(sizes)
    batch_np = np.concatenate([np.full(s, g, np.int32) for g, s in enumerate(sizes)])
    src, dst = [], []
    off = 0
    for s in sizes:
        for i in range(s):
            a, b = off + i, off + (i + 1) % s
            src += [a, b]
            dst += [b, a]
        off += s
    edge_index = jnp.asarray(np.stack([src, dst]).astype(np.int32))     # (2, 32)
    batch_vec = jnp.asarray(batch_np)                                   # (16,)
    n_edges = edge_index.shape[1]

    fkeys = jax.random.split(fkey, len(STRUCT_FEATS))
    feats = {name: jax.random.normal(k, (n_nodes, d), jnp.float32)
             for (name, d), k in zip(STRUCT_FEATS.items(), fkeys)}
    latents = jax.random.normal(lkey, (n_nodes, LATENT), jnp.float32)   # latents=None path

    fwd = make_decoder_forward(layout, node_segments, edge_segments, n_nodes, n_edges)
    node_logits, edge_logits = fwd(slab, feats, latents, batch_vec, edge_index)
    jax.block_until_ready(node_logits)
    jax.block_until_ready(edge_logits)

    for name, v in node_logits.items():
        assert v.shape == (n_nodes, NODE_LABELS[name])
        np.testing.assert_allclose(np.exp(np.asarray(v)).sum(-1), 1.0, rtol=1e-4, atol=1e-4)
    for name, v in edge_logits.items():
        assert v.shape == (n_edges, EDGE_LABELS[name])
        np.testing.assert_allclose(np.exp(np.asarray(v)).sum(-1), 1.0, rtol=1e-4, atol=1e-4)
    print("KERNEL_OK")
</pallas_src>

<mosaic_0001>
module attributes {stable_mosaic.version = 11 : i64} {
  func.func @_decoder_kernel(%arg0: memref<16x36xf32, #tpu.memory_space<vmem>>, %arg1: memref<16x1xi32, #tpu.memory_space<vmem>>, %arg2: memref<1x16xi32, #tpu.memory_space<vmem>>, %arg3: memref<32x2xi32, #tpu.memory_space<vmem>>, %arg4: memref<2x32xi32, #tpu.memory_space<vmem>>, %arg5: memref<976x128xf32, #tpu.memory_space<vmem>>, %arg6: memref<16x128xf32, #tpu.memory_space<vmem>>, %arg7: memref<32x128xf32, #tpu.memory_space<vmem>>) attributes {dimension_semantics = [], scalar_prefetch = 0 : i64, scratch_operands = 0 : i64, tpu.core_type = #tpu.core_type<tc>} {
    %c0 = arith.constant 0 : index
    %c0_0 = arith.constant 0 : index
    %0 = vector.load %arg1[%c0, %c0_0] : memref<16x1xi32, #tpu.memory_space<vmem>>, vector<16x1xi32>
    %c0_1 = arith.constant 0 : index
    %c0_2 = arith.constant 0 : index
    %1 = vector.load %arg2[%c0_1, %c0_2] : memref<1x16xi32, #tpu.memory_space<vmem>>, vector<1x16xi32>
    %2 = vector.broadcast %0 : vector<16x1xi32> to vector<16x16xi32>
    %3 = vector.broadcast %1 : vector<1x16xi32> to vector<16x16xi32>
    %4 = arith.cmpi eq, %2, %3 : vector<16x16xi32>
    %cst = arith.constant 0.000000e+00 : f32
    %cst_3 = arith.constant -1.000000e+09 : f32
    %5 = vector.broadcast %cst : f32 to vector<16x16xf32>
    %6 = vector.broadcast %cst_3 : f32 to vector<16x16xf32>
    %7 = arith.select %4, %5, %6 : vector<16x16xi1>, vector<16x16xf32>
    %c0_4 = arith.constant 0 : index
    %c0_5 = arith.constant 0 : index
    %8 = vector.load %arg3[%c0_4, %c0_5] : memref<32x2xi32, #tpu.memory_space<vmem>>, vector<32x2xi32>
    %c0_6 = arith.constant 0 : index
    %c0_7 = arith.constant 0 : index
    %9 = vector.load %arg4[%c0_6, %c0_7] : memref<2x32xi32, #tpu.memory_space<vmem>>, vector<2x32xi32>
    %10 = tpu.iota {dimensions = array<i32: 1>} : vector<32x16xi32>
    %11 = tpu.iota {dimensions = array<i32: 0>} : vector<16x32xi32>
    %12 = vector.extract_strided_slice %8 {offsets = [0, 0], sizes = [32, 1], strides = [1, 1]} : vector<32x2xi32> to vector<32x1xi32>
    %13 = vector.broadcast %12 : vector<32x1xi32> to vector<32x16xi32>
    %14 = arith.cmpi eq, %10, %13 : vector<32x16xi32>
    %cst_8 = arith.constant 1.000000e+00 : f32
    %cst_9 = arith.constant 0.000000e+00 : f32
    %15 = vector.broadcast %cst_8 : f32 to vector<32x16xf32>
    %16 = vector.broadcast %cst_9 : f32 to vector<32x16xf32>
    %17 = arith.select %14, %15, %16 : vector<32x16xi1>, vector<32x16xf32>
    %18 = arith.truncf %17 : vector<32x16xf32> to vector<32x16xbf16>
    %19 = vector.extract_strided_slice %8 {offsets = [0, 1], sizes = [32, 1], strides = [1, 1]} : vector<32x2xi32> to vector<32x1xi32>
    %20 = vector.broadcast %19 : vector<32x1xi32> to vector<32x16xi32>
    %21 = arith.cmpi eq, %10, %20 : vector<32x16xi32>
    %cst_10 = arith.constant 1.000000e+00 : f32
    %cst_11 = arith.constant 0.000000e+00 : f32
    %22 = vector.broadcast %cst_10 : f32 to vector<32x16xf32>
    %23 = vector.broadcast %cst_11 : f32 to vector<32x16xf32>
    %24 = arith.select %21, %22, %23 : vector<32x16xi1>, vector<32x16xf32>
    %25 = arith.truncf %24 : vector<32x16xf32> to vector<32x16xbf16>
    %26 = vector.extract_strided_slice %9 {offsets = [1, 0], sizes = [1, 32], strides = [1, 1]} : vector<2x32xi32> to vector<1x32xi32>
    %27 = vector.broadcast %26 : vector<1x32xi32> to vector<16x32xi32>
    %28 = arith.cmpi eq, %11, %27 : vector<16x32xi32>
    %cst_12 = arith.constant 1.000000e+00 : f32
    %cst_13 = arith.constant 0.000000e+00 : f32
    %29 = vector.broadcast %cst_12 : f32 to vector<16x32xf32>
    %30 = vector.broadcast %cst_13 : f32 to vector<16x32xf32>
    %31 = arith.select %28, %29, %30 : vector<16x32xi1>, vector<16x32xf32>
    %32 = arith.truncf %31 : vector<16x32xf32> to vector<16x32xbf16>
    %c0_14 = arith.constant 0 : index
    %c0_15 = arith.constant 0 : index
    %33 = vector.load %arg0[%c0_14, %c0_15] : memref<16x36xf32, #tpu.memory_space<vmem>>, vector<16x36xf32>
    %34 = vector.extract_strided_slice %33 {offsets = [0, 0], sizes = [16, 8], strides = [1, 1]} : vector<16x36xf32> to vector<16x8xf32>
    %c0_16 = arith.constant 0 : index
    %c0_17 = arith.constant 0 : index
    %35 = vector.load %arg5[%c0_16, %c0_17] : memref<976x128xf32, #tpu.memory_space<vmem>>, vector<8x32xf32>
    %36 = arith.truncf %35 : vector<8x32xf32> to vector<8x32xbf16>
    %37 = arith.truncf %34 : vector<16x8xf32> to vector<16x8xbf16>
    %cst_18 = arith.constant dense<0.000000e+00> : vector<16x32xf32>
    %38 = tpu.matmul %37, %36, %cst_18 {dimension_numbers = #tpu.dot_dimension_numbers<[1], [0], [0], [1], [0, 0, 1, 1], [], []>} : vector<16x8xbf16>, vector<8x32xbf16>, vector<16x32xf32> -> vector<16x32xf32>
    %c8 = arith.constant 8 : index
    %c0_19 = arith.constant 0 : index
    %39 = vector.load %arg5[%c8, %c0_19] : memref<976x128xf32, #tpu.memory_space<vmem>>, vector<1x32xf32>
    %40 = vector.broadcast %39 : vector<1x32xf32> to vector<16x32xf32>
    %41 = arith.addf %38, %40 : vector<16x32xf32>
    %cst_20 = arith.constant 0.000000e+00 : f32
    %42 = vector.broadcast %cst_20 : f32 to vector<16x32xf32>
    %43 = arith.maximumf %41, %42 : vector<16x32xf32>
    %c16 = arith.constant 16 : index
    %c0_21 = arith.constant 0 : index
    %44 = vector.load %arg5[%c16, %c0_21] : memref<976x128xf32, #tpu.memory_space<vmem>>, vector<32x32xf32>
    %45 = arith.truncf %44 : vector<32x32xf32> to vector<32x32xbf16>
    %46 = arith.truncf %43 : vector<16x32xf32> to vector<16x32xbf16>
    %cst_22 = arith.constant dense<0.000000e+00> : vector<16x32xf32>
    %47 = tpu.matmul %46, %45, %cst_22 {dimension_numbers = #tpu.dot_dimension_numbers<[1], [0], [0], [1], [0, 0, 1, 1], [], []>} : vector<16x32xbf16>, vector<32x32xbf16>, vector<16x32xf32> -> vector<16x32xf32>
    %c48 = arith.constant 48 : index
    %c0_23 = arith.constant 0 : index
    %48 = vector.load %arg5[%c48, %c0_23] : memref<976x128xf32, #tpu.memory_space<vmem>>, vector<1x32xf32>
    %49 = vector.broadcast %48 : vector<1x32xf32> to vector<16x32xf32>
    %50 = arith.addf %47, %49 : vector<16x32xf32>
    %c56 = arith.constant 56 : index
    %c0_24 = arith.constant 0 : index
    %51 = vector.load %arg5[%c56, %c0_24] : memref<976x128xf32, #tpu.memory_space<vmem>>, vector<1x32xf32>
    %c64 = arith.constant 64 : index
    %c0_25 = arith.constant 0 : index
    %52 = vector.load %arg5[%c64, %c0_25] : memref<976x128xf32, #tpu.memory_space<vmem>>, vector<1x32xf32>
    %cst_26 = arith.constant dense<0.000000e+00> : vector<16xf32>
    %53 = vector.multi_reduction <add>, %50, %cst_26 [1] : vector<16x32xf32> to vector<16xf32>
    %54 = vector.shape_cast %53 : vector<16xf32> to vector<16x1xf32>
    %cst_27 = arith.constant 3.200000e+01 : f32
    %55 = vector.broadcast %cst_27 : f32 to vector<16x1xf32>
    %56 = arith.divf %54, %55 : vector<16x1xf32>
    %57 = vector.broadcast %56 : vector<16x1xf32> to vector<16x32xf32>
    %58 = arith.subf %50, %57 : vector<16x32xf32>
    %59 = arith.mulf %58, %58 : vector<16x32xf32>
    %cst_28 = arith.constant dense<0.000000e+00> : vector<16xf32>
    %60 = vector.multi_reduction <add>, %59, %cst_28 [1] : vector<16x32xf32> to vector<16xf32>
    %61 = vector.shape_cast %60 : vector<16xf32> to vector<16x1xf32>
    %cst_29 = arith.constant 3.200000e+01 : f32
    %62 = vector.broadcast %cst_29 : f32 to vector<16x1xf32>
    %63 = arith.divf %61, %62 : vector<16x1xf32>
    %64 = vector.broadcast %56 : vector<16x1xf32> to vector<16x32xf32>
    %65 = arith.subf %50, %64 : vector<16x32xf32>
    %cst_30 = arith.constant 9.99999974E-6 : f32
    %66 = vector.broadcast %cst_30 : f32 to vector<16x1xf32>
    %67 = arith.addf %63, %66 : vector<16x1xf32>
    %68 = math.rsqrt %67 : vector<16x1xf32>
    %69 = vector.broadcast %68 : vector<16x1xf32> to vector<16x32xf32>
    %70 = arith.mulf %65, %69 : vector<16x32xf32>
    %71 = vector.broadcast %51 : vector<1x32xf32> to vector<16x32xf32>
    %72 = arith.mulf %70, %71 : vector<16x32xf32>
    %73 = vector.broadcast %52 : vector<1x32xf32> to vector<16x32xf32>
    %74 = arith.addf %72, %73 : vector<16x32xf32>
    %75 = vector.extract_strided_slice %33 {offsets = [0, 8], sizes = [16, 12], strides = [1, 1]} : vector<16x36xf32> to vector<16x12xf32>
    %c72 = arith.constant 72 : index
    %c0_31 = arith.constant 0 : index
    %76 = vector.load %arg5[%c72, %c0_31] : memref<976x128xf32, #tpu.memory_space<vmem>>, vector<12x32xf32>
    %77 = arith.truncf %76 : vector<12x32xf32> to vector<12x32xbf16>
    %78 = arith.truncf %75 : vector<16x12xf32> to vector<16x12xbf16>
    %cst_32 = arith.constant dense<0.000000e+00> : vector<16x32xf32>
    %79 = tpu.matmul %78, %77, %cst_32 {dimension_numbers = #tpu.dot_dimension_numbers<[1], [0], [0], [1], [0, 0, 1, 1], [], []>} : vector<16x12xbf16>, vector<12x32xbf16>, vector<16x32xf32> -> vector<16x32xf32>
    %c88 = arith.constant 88 : index
    %c0_33 = arith.constant 0 : index
    %80 = vector.load %arg5[%c88, %c0_33] : memref<976x128xf32, #tpu.memory_space<vmem>>, vector<1x32xf32>
    %81 = vector.broadcast %80 : vector<1x32xf32> to vector<16x32xf32>
    %82 = arith.addf %79, %81 : vector<16x32xf32>
    %cst_34 = arith.constant 0.000000e+00 : f32
    %83 = vector.broadcast %cst_34 : f32 to vector<16x32xf32>
    %84 = arith.maximumf %82, %83 : vector<16x32xf32>
    %c96 = arith.constant 96 : index
    %c0_35 = arith.constant 0 : index
    %85 = vector.load %arg5[%c96, %c0_35] : memref<976x128xf32, #tpu.memory_space<vmem>>, vector<32x32xf32>
    %86 = arith.truncf %85 : vector<32x32xf32> to vector<32x32xbf16>
    %87 = arith.truncf %84 : vector<16x32xf32> to vector<16x32xbf16>
    %cst_36 = arith.constant dense<0.000000e+00> : vector<16x32xf32>
    %88 = tpu.matmul %87, %86, %cst_36 {dimension_numbers = #tpu.dot_dimension_numbers<[1], [0], [0], [1], [0, 0, 1, 1], [], []>} : vector<16x32xbf16>, vector<32x32xbf16>, vector<16x32xf32> -> vector<16x32xf32>
    %c128 = arith.constant 128 : index
    %c0_37 = arith.constant 0 : index
    %89 = vector.load %arg5[%c128, %c0_37] : memref<976x128xf32, #tpu.memory_space<vmem>>, vector<1x32xf32>
    %90 = vector.broadcast %89 : vector<1x32xf32> to vector<16x32xf32>
    %91 = arith.addf %88, %90 : vector<16x32xf32>
    %c136 = arith.constant 136 : index
    %c0_38 = arith.constant 0 : index
    %92 = vector.load %arg5[%c136, %c0_38] : memref<976x128xf32, #tpu.memory_space<vmem>>, vector<1x32xf32>
    %c144 = arith.constant 144 : index
    %c0_39 = arith.constant 0 : index
    %93 = vector.load %arg5[%c144, %c0_39] : memref<976x128xf32, #tpu.memory_space<vmem>>, vector<1x32xf32>
    %cst_40 = arith.constant dense<0.000000e+00> : vector<16xf32>
    %94 = vector.multi_reduction <add>, %91, %cst_40 [1] : vector<16x32xf32> to vector<16xf32>
    %95 = vector.shape_cast %94 : vector<16xf32> to vector<16x1xf32>
    %cst_41 = arith.constant 3.200000e+01 : f32
    %96 = vector.broadcast %cst_41 : f32 to vector<16x1xf32>
    %97 = arith.divf %95, %96 : vector<16x1xf32>
    %98 = vector.broadcast %97 : vector<16x1xf32> to vector<16x32xf32>
    %99 = arith.subf %91, %98 : vector<16x32xf32>
    %100 = arith.mulf %99, %99 : vector<16x32xf32>
    %cst_42 = arith.constant dense<0.000000e+00> : vector<16xf32>
    %101 = vector.multi_reduction <add>, %100, %cst_42 [1] : vector<16x32xf32> to vector<16xf32>
    %102 = vector.shape_cast %101 : vector<16xf32> to vector<16x1xf32>
    %cst_43 = arith.constant 3.200000e+01 : f32
    %103 = vector.broadcast %cst_43 : f32 to vector<16x1xf32>
    %104 = arith.divf %102, %103 : vector<16x1xf32>
    %105 = vector.broadcast %97 : vector<16x1xf32> to vector<16x32xf32>
    %106 = arith.subf %91, %105 : vector<16x32xf32>
    %cst_44 = arith.constant 9.99999974E-6 : f32
    %107 = vector.broadcast %cst_44 : f32 to vector<16x1xf32>
    %108 = arith.addf %104, %107 : vector<16x1xf32>
    %109 = math.rsqrt %108 : vector<16x1xf32>
    %110 = vector.broadcast %109 : vector<16x1xf32> to vector<16x32xf32>
    %111 = arith.mulf %106, %110 : vector<16x32xf32>
    %112 = vector.broadcast %92 : vector<1x32xf32> to vector<16x32xf32>
    %113 = arith.mulf %111, %112 : vector<16x32xf32>
    %114 = vector.broadcast %93 : vector<1x32xf32> to vector<16x32xf32>
    %115 = arith.addf %113, %114 : vector<16x32xf32>
    %116 = arith.addf %74, %115 : vector<16x32xf32>
    %117 = vector.extract_strided_slice %33 {offsets = [0, 20], sizes = [16, 16], strides = [1, 1]} : vector<16x36xf32> to vector<16x16xf32>
    %c152 = arith.constant 152 : index
    %c0_45 = arith.constant 0 : index
    %118 = vector.load %arg5[%c152, %c0_45] : memref<976x128xf32, #tpu.memory_space<vmem>>, vector<16x32xf32>
    %119 = arith.truncf %118 : vector<16x32xf32> to vector<16x32xbf16>
    %120 = arith.truncf %117 : vector<16x16xf32> to vector<16x16xbf16>
    %cst_46 = arith.constant dense<0.000000e+00> : vector<16x32xf32>
    %121 = tpu.matmul %120, %119, %cst_46 {dimension_numbers = #tpu.dot_dimension_numbers<[1], [0], [0], [1], [0, 0, 1, 1], [], []>} : vector<16x16xbf16>, vector<16x32xbf16>, vector<16x32xf32> -> vector<16x32xf32>
    %122 = arith.addf %116, %121 : vector<16x32xf32>
    %c168 = arith.constant 168 : index
    %c0_47 = arith.constant 0 : index
    %123 = vector.load %arg5[%c168, %c0_47] : memref<976x128xf32, #tpu.memory_space<vmem>>, vector<1x32xf32>
    %124 = vector.broadcast %123 : vector<1x32xf32> to vector<16x32xf32>
    %125 = arith.addf %122, %124 : vector<16x32xf32>
    %126 = arith.truncf %125 : vector<16x32xf32> to vector<16x32xbf16>
    %cst_48 = arith.constant dense<0.000000e+00> : vector<32x32xf32>
    %127 = tpu.matmul %18, %126, %cst_48 {dimension_numbers = #tpu.dot_dimension_numbers<[1], [0], [0], [1], [0, 0, 1, 1], [], []>} : vector<32x16xbf16>, vector<16x32xbf16>, vector<32x32xf32> -> vector<32x32xf32>
    %128 = arith.truncf %127 : vector<32x32xf32> to vector<32x32xbf16>
    %cst_49 = arith.constant dense<0.000000e+00> : vector<16x32xf32>
    %129 = tpu.matmul %32, %128, %cst_49 {dimension_numbers = #tpu.dot_dimension_numbers<[1], [0], [0], [1], [0, 0, 1, 1], [], []>} : vector<16x32xbf16>, vector<32x32xbf16>, vector<16x32xf32> -> vector<16x32xf32>
    %130 = arith.addf %125, %129 : vector<16x32xf32>
    %c176 = arith.constant 176 : index
    %c0_50 = arith.constant 0 : index
    %131 = vector.load %arg5[%c176, %c0_50] : memref<976x128xf32, #tpu.memory_space<vmem>>, vector<32x32xf32>
    %132 = arith.truncf %131 : vector<32x32xf32> to vector<32x32xbf16>
    %133 = arith.truncf %130 : vector<16x32xf32> to vector<16x32xbf16>
    %cst_51 = arith.constant dense<0.000000e+00> : vector<16x32xf32>
    %134 = tpu.matmul %133, %132, %cst_51 {dimension_numbers = #tpu.dot_dimension_numbers<[1], [0], [0], [1], [0, 0, 1, 1], [], []>} : vector<16x32xbf16>, vector<32x32xbf16>, vector<16x32xf32> -> vector<16x32xf32>
    %c208 = arith.constant 208 : index
    %c0_52 = arith.constant 0 : index
    %135 = vector.load %arg5[%c208, %c0_52] : memref<976x128xf32, #tpu.memory_space<vmem>>, vector<1x32xf32>
    %136 = vector.broadcast %135 : vector<1x32xf32> to vector<16x32xf32>
    %137 = arith.addf %134, %136 : vector<16x32xf32>
    %cst_53 = arith.constant 0.000000e+00 : f32
    %138 = vector.broadcast %cst_53 : f32 to vector<16x32xf32>
    %139 = arith.maximumf %137, %138 : vector<16x32xf32>
    %c216 = arith.constant 216 : index
    %c0_54 = arith.constant 0 : index
    %140 = vector.load %arg5[%c216, %c0_54] : memref<976x128xf32, #tpu.memory_space<vmem>>, vector<32x32xf32>
    %141 = arith.truncf %140 : vector<32x32xf32> to vector<32x32xbf16>
    %142 = arith.truncf %139 : vector<16x32xf32> to vector<16x32xbf16>
    %cst_55 = arith.constant dense<0.000000e+00> : vector<16x32xf32>
    %143 = tpu.matmul %142, %141, %cst_55 {dimension_numbers = #tpu.dot_dimension_numbers<[1], [0], [0], [1], [0, 0, 1, 1], [], []>} : vector<16x32xbf16>, vector<32x32xbf16>, vector<16x32xf32> -> vector<16x32xf32>
    %c248 = arith.constant 248 : index
    %c0_56 = arith.constant 0 : index
    %144 = vector.load %arg5[%c248, %c0_56] : memref<976x128xf32, #tpu.memory_space<vmem>>, vector<1x32xf32>
    %145 = vector.broadcast %144 : vector<1x32xf32> to vector<16x32xf32>
    %146 = arith.addf %143, %145 : vector<16x32xf32>
    %147 = arith.addf %146, %125 : vector<16x32xf32>
    %c256 = arith.constant 256 : index
    %c0_57 = arith.constant 0 : index
    %148 = vector.load %arg5[%c256, %c0_57] : memref<976x128xf32, #tpu.memory_space<vmem>>, vector<1x32xf32>
    %149 = vector.broadcast %148 : vector<1x32xf32> to vector<16x32xf32>
    %150 = arith.mulf %147, %149 : vector<16x32xf32>
    %c264 = arith.constant 264 : index
    %c0_58 = arith.constant 0 : index
    %151 = vector.load %arg5[%c264, %c0_58] : memref<976x128xf32, #tpu.memory_space<vmem>>, vector<1x32xf32>
    %152 = vector.broadcast %151 : vector<1x32xf32> to vector<16x32xf32>
    %153 = arith.addf %150, %152 : vector<16x32xf32>
    %c272 = arith.constant 272 : index
    %c0_59 = arith.constant 0 : index
    %154 = vector.load %arg5[%c272, %c0_59] : memref<976x128xf32, #tpu.memory_space<vmem>>, vector<32x96xf32>
    %155 = arith.truncf %154 : vector<32x96xf32> to vector<32x96xbf16>
    %156 = arith.truncf %125 : vector<16x32xf32> to vector<16x32xbf16>
    %cst_60 = arith.constant dense<0.000000e+00> : vector<16x96xf32>
    %157 = tpu.matmul %156, %155, %cst_60 {dimension_numbers = #tpu.dot_dimension_numbers<[1], [0], [0], [1], [0, 0, 1, 1], [], []>} : vector<16x32xbf16>, vector<32x96xbf16>, vector<16x96xf32> -> vector<16x96xf32>
    %c304 = arith.constant 304 : index
    %c0_61 = arith.constant 0 : index
    %158 = vector.load %arg5[%c304, %c0_61] : memref<976x128xf32, #tpu.memory_space<vmem>>, vector<1x96xf32>
    %159 = vector.broadcast %158 : vector<1x96xf32> to vector<16x96xf32>
    %160 = arith.addf %157, %159 : vector<16x96xf32>
    %161 = vector.extract_strided_slice %160 {offsets = [0, 0], sizes = [16, 32], strides = [1, 1]} : vector<16x96xf32> to vector<16x32xf32>
    %162 = arith.truncf %161 : vector<16x32xf32> to vector<16x32xbf16>
    %163 = vector.extract_strided_slice %160 {offsets = [0, 32], sizes = [16, 32], strides = [1, 1]} : vector<16x96xf32> to vector<16x32xf32>
    %164 = arith.truncf %163 : vector<16x32xf32> to vector<16x32xbf16>
    %165 = vector.extract_strided_slice %160 {offsets = [0, 64], sizes = [16, 32], strides = [1, 1]} : vector<16x96xf32> to vector<16x32xf32>
    %166 = arith.truncf %165 : vector<16x32xf32> to vector<16x32xbf16>
    %c312 = arith.constant 312 : index
    %c0_62 = arith.constant 0 : index
    %167 = vector.load %arg5[%c312, %c0_62] : memref<976x128xf32, #tpu.memory_space<vmem>>, vector<32x32xf32>
    %168 = arith.truncf %167 : vector<32x32xf32> to vector<32x32xbf16>
    %cst_63 = arith.constant 0.000000e+00 : f32
    %169 = vector.broadcast %cst_63 : f32 to vector<16x32xf32>
    %170 = vector.extract_strided_slice %162 {offsets = [0, 0], sizes = [16, 8], strides = [1, 1]} : vector<16x32xbf16> to vector<16x8xbf16>
    %171 = vector.extract_strided_slice %164 {offsets = [0, 0], sizes = [16, 8], strides = [1, 1]} : vector<16x32xbf16> to vector<16x8xbf16>
    %cst_64 = arith.constant dense<0.000000e+00> : vector<16x16xf32>
    %172 = tpu.matmul %170, %171, %cst_64 {dimension_numbers = #tpu.dot_dimension_numbers<[1], [1], [0], [0], [0, 0, 1, 0], [], []>} : vector<16x8xbf16>, vector<16x8xbf16>, vector<16x16xf32> -> vector<16x16xf32>
    %173 = arith.addf %172, %7 : vector<16x16xf32>
    %cst_65 = arith.constant dense<0xFF800000> : vector<16xf32>
    %174 = vector.multi_reduction <maximumf>, %173, %cst_65 [1] : vector<16x16xf32> to vector<16xf32>
    %175 = vector.shape_cast %174 : vector<16xf32> to vector<16x1xf32>
    %176 = vector.broadcast %175 : vector<16x1xf32> to vector<16x16xf32>
    %177 = arith.subf %173, %176 : vector<16x16xf32>
    %178 = math.exp %177 : vector<16x16xf32>
    %cst_66 = arith.constant dense<0.000000e+00> : vector<16xf32>
    %179 = vector.multi_reduction <add>, %178, %cst_66 [1] : vector<16x16xf32> to vector<16xf32>
    %180 = vector.shape_cast %179 : vector<16xf32> to vector<16x1xf32>
    %181 = tpu.reciprocal %180 {approx = true} : vector<16x1xf32> -> vector<16x1xf32>
    %182 = vector.broadcast %181 : vector<16x1xf32> to vector<16x16xf32>
    %183 = arith.mulf %178, %182 : vector<16x16xf32>
    %184 = arith.truncf %183 : vector<16x16xf32> to vector<16x16xbf16>
    %185 = vector.extract_strided_slice %166 {offsets = [0, 0], sizes = [16, 8], strides = [1, 1]} : vector<16x32xbf16> to vector<16x8xbf16>
    %cst_67 = arith.constant dense<0.000000e+00> : vector<16x8xf32>
    %186 = tpu.matmul %184, %185, %cst_67 {dimension_numbers = #tpu.dot_dimension_numbers<[1], [0], [0], [1], [0, 0, 1, 1], [], []>} : vector<16x16xbf16>, vector<16x8xbf16>, vector<16x8xf32> -> vector<16x8xf32>
    %187 = arith.truncf %186 : vector<16x8xf32> to vector<16x8xbf16>
    %188 = vector.extract_strided_slice %168 {offsets = [0, 0], sizes = [8, 32], strides = [1, 1]} : vector<32x32xbf16> to vector<8x32xbf16>
    %cst_68 = arith.constant dense<0.000000e+00> : vector<16x32xf32>
    %189 = tpu.matmul %187, %188, %cst_68 {dimension_numbers = #tpu.dot_dimension_numbers<[1], [0], [0], [1], [0, 0, 1, 1], [], []>} : vector<16x8xbf16>, vector<8x32xbf16>, vector<16x32xf32> -> vector<16x32xf32>
    %190 = arith.addf %169, %189 : vector<16x32xf32>
    %191 = vector.extract_strided_slice %162 {offsets = [0, 8], sizes = [16, 8], strides = [1, 1]} : vector<16x32xbf16> to vector<16x8xbf16>
    %192 = vector.extract_strided_slice %164 {offsets = [0, 8], sizes = [16, 8], strides = [1, 1]} : vector<16x32xbf16> to vector<16x8xbf16>
    %cst_69 = arith.constant dense<0.000000e+00> : vector<16x16xf32>
    %193 = tpu.matmul %191, %192, %cst_69 {dimension_numbers = #tpu.dot_dimension_numbers<[1], [1], [0], [0], [0, 0, 1, 0], [], []>} : vector<16x8xbf16>, vector<16x8xbf16>, vector<16x16xf32> -> vector<16x16xf32>
    %194 = arith.addf %193, %7 : vector<16x16xf32>
    %cst_70 = arith.constant dense<0xFF800000> : vector<16xf32>
    %195 = vector.multi_reduction <maximumf>, %194, %cst_70 [1] : vector<16x16xf32> to vector<16xf32>
    %196 = vector.shape_cast %195 : vector<16xf32> to vector<16x1xf32>
    %197 = vector.broadcast %196 : vector<16x1xf32> to vector<16x16xf32>
    %198 = arith.subf %194, %197 : vector<16x16xf32>
    %199 = math.exp %198 : vector<16x16xf32>
    %cst_71 = arith.constant dense<0.000000e+00> : vector<16xf32>
    %200 = vector.multi_reduction <add>, %199, %cst_71 [1] : vector<16x16xf32> to vector<16xf32>
    %201 = vector.shape_cast %200 : vector<16xf32> to vector<16x1xf32>
    %202 = tpu.reciprocal %201 {approx = true} : vector<16x1xf32> -> vector<16x1xf32>
    %203 = vector.broadcast %202 : vector<16x1xf32> to vector<16x16xf32>
    %204 = arith.mulf %199, %203 : vector<16x16xf32>
    %205 = arith.truncf %204 : vector<16x16xf32> to vector<16x16xbf16>
    %206 = vector.extract_strided_slice %166 {offsets = [0, 8], sizes = [16, 8], strides = [1, 1]} : vector<16x32xbf16> to vector<16x8xbf16>
    %cst_72 = arith.constant dense<0.000000e+00> : vector<16x8xf32>
    %207 = tpu.matmul %205, %206, %cst_72 {dimension_numbers = #tpu.dot_dimension_numbers<[1], [0], [0], [1], [0, 0, 1, 1], [], []>} : vector<16x16xbf16>, vector<16x8xbf16>, vector<16x8xf32> -> vector<16x8xf32>
    %208 = arith.truncf %207 : vector<16x8xf32> to vector<16x8xbf16>
    %209 = vector.extract_strided_slice %168 {offsets = [8, 0], sizes = [8, 32], strides = [1, 1]} : vector<32x32xbf16> to vector<8x32xbf16>
    %cst_73 = arith.constant dense<0.000000e+00> : vector<16x32xf32>
    %210 = tpu.matmul %208, %209, %cst_73 {dimension_numbers = #tpu.dot_dimension_numbers<[1], [0], [0], [1], [0, 0, 1, 1], [], []>} : vector<16x8xbf16>, vector<8x32xbf16>, vector<16x32xf32> -> vector<16x32xf32>
    %211 = arith.addf %190, %210 : vector<16x32xf32>
    %212 = vector.extract_strided_slice %162 {offsets = [0, 16], sizes = [16, 8], strides = [1, 1]} : vector<16x32xbf16> to vector<16x8xbf16>
    %213 = vector.extract_strided_slice %164 {offsets = [0, 16], sizes = [16, 8], strides = [1, 1]} : vector<16x32xbf16> to vector<16x8xbf16>
    %cst_74 = arith.constant dense<0.000000e+00> : vector<16x16xf32>
    %214 = tpu.matmul %212, %213, %cst_74 {dimension_numbers = #tpu.dot_dimension_numbers<[1], [1], [0], [0], [0, 0, 1, 0], [], []>} : vector<16x8xbf16>, vector<16x8xbf16>, vector<16x16xf32> -> vector<16x16xf32>
    %215 = arith.addf %214, %7 : vector<16x16xf32>
    %cst_75 = arith.constant dense<0xFF800000> : vector<16xf32>
    %216 = vector.multi_reduction <maximumf>, %215, %cst_75 [1] : vector<16x16xf32> to vector<16xf32>
    %217 = vector.shape_cast %216 : vector<16xf32> to vector<16x1xf32>
    %218 = vector.broadcast %217 : vector<16x1xf32> to vector<16x16xf32>
    %219 = arith.subf %215, %218 : vector<16x16xf32>
    %220 = math.exp %219 : vector<16x16xf32>
    %cst_76 = arith.constant dense<0.000000e+00> : vector<16xf32>
    %221 = vector.multi_reduction <add>, %220, %cst_76 [1] : vector<16x16xf32> to vector<16xf32>
    %222 = vector.shape_cast %221 : vector<16xf32> to vector<16x1xf32>
    %223 = tpu.reciprocal %222 {approx = true} : vector<16x1xf32> -> vector<16x1xf32>
    %224 = vector.broadcast %223 : vector<16x1xf32> to vector<16x16xf32>
    %225 = arith.mulf %220, %224 : vector<16x16xf32>
    %226 = arith.truncf %225 : vector<16x16xf32> to vector<16x16xbf16>
    %227 = vector.extract_strided_slice %166 {offsets = [0, 16], sizes = [16, 8], strides = [1, 1]} : vector<16x32xbf16> to vector<16x8xbf16>
    %cst_77 = arith.constant dense<0.000000e+00> : vector<16x8xf32>
    %228 = tpu.matmul %226, %227, %cst_77 {dimension_numbers = #tpu.dot_dimension_numbers<[1], [0], [0], [1], [0, 0, 1, 1], [], []>} : vector<16x16xbf16>, vector<16x8xbf16>, vector<16x8xf32> -> vector<16x8xf32>
    %229 = arith.truncf %228 : vector<16x8xf32> to vector<16x8xbf16>
    %230 = vector.extract_strided_slice %168 {offsets = [16, 0], sizes = [8, 32], strides = [1, 1]} : vector<32x32xbf16> to vector<8x32xbf16>
    %cst_78 = arith.constant dense<0.000000e+00> : vector<16x32xf32>
    %231 = tpu.matmul %229, %230, %cst_78 {dimension_numbers = #tpu.dot_dimension_numbers<[1], [0], [0], [1], [0, 0, 1, 1], [], []>} : vector<16x8xbf16>, vector<8x32xbf16>, vector<16x32xf32> -> vector<16x32xf32>
    %232 = arith.addf %211, %231 : vector<16x32xf32>
    %233 = vector.extract_strided_slice %162 {offsets = [0, 24], sizes = [16, 8], strides = [1, 1]} : vector<16x32xbf16> to vector<16x8xbf16>
    %234 = vector.extract_strided_slice %164 {offsets = [0, 24], sizes = [16, 8], strides = [1, 1]} : vector<16x32xbf16> to vector<16x8xbf16>
    %cst_79 = arith.constant dense<0.000000e+00> : vector<16x16xf32>
    %235 = tpu.matmul %233, %234, %cst_79 {dimension_numbers = #tpu.dot_dimension_numbers<[1], [1], [0], [0], [0, 0, 1, 0], [], []>} : vector<16x8xbf16>, vector<16x8xbf16>, vector<16x16xf32> -> vector<16x16xf32>
    %236 = arith.addf %235, %7 : vector<16x16xf32>
    %cst_80 = arith.constant dense<0xFF800000> : vector<16xf32>
    %237 = vector.multi_reduction <maximumf>, %236, %cst_80 [1] : vector<16x16xf32> to vector<16xf32>
    %238 = vector.shape_cast %237 : vector<16xf32> to vector<16x1xf32>
    %239 = vector.broadcast %238 : vector<16x1xf32> to vector<16x16xf32>
    %240 = arith.subf %236, %239 : vector<16x16xf32>
    %241 = math.exp %240 : vector<16x16xf32>
    %cst_81 = arith.constant dense<0.000000e+00> : vector<16xf32>
    %242 = vector.multi_reduction <add>, %241, %cst_81 [1] : vector<16x16xf32> to vector<16xf32>
    %243 = vector.shape_cast %242 : vector<16xf32> to vector<16x1xf32>
    %244 = tpu.reciprocal %243 {approx = true} : vector<16x1xf32> -> vector<16x1xf32>
    %245 = vector.broadcast %244 : vector<16x1xf32> to vector<16x16xf32>
    %246 = arith.mulf %241, %245 : vector<16x16xf32>
    %247 = arith.truncf %246 : vector<16x16xf32> to vector<16x16xbf16>
    %248 = vector.extract_strided_slice %166 {offsets = [0, 24], sizes = [16, 8], strides = [1, 1]} : vector<16x32xbf16> to vector<16x8xbf16>
    %cst_82 = arith.constant dense<0.000000e+00> : vector<16x8xf32>
    %249 = tpu.matmul %247, %248, %cst_82 {dimension_numbers = #tpu.dot_dimension_numbers<[1], [0], [0], [1], [0, 0, 1, 1], [], []>} : vector<16x16xbf16>, vector<16x8xbf16>, vector<16x8xf32> -> vector<16x8xf32>
    %250 = arith.truncf %249 : vector<16x8xf32> to vector<16x8xbf16>
    %251 = vector.extract_strided_slice %168 {offsets = [24, 0], sizes = [8, 32], strides = [1, 1]} : vector<32x32xbf16> to vector<8x32xbf16>
    %cst_83 = arith.constant dense<0.000000e+00> : vector<16x32xf32>
    %252 = tpu.matmul %250, %251, %cst_83 {dimension_numbers = #tpu.dot_dimension_numbers<[1], [0], [0], [1], [0, 0, 1, 1], [], []>} : vector<16x8xbf16>, vector<8x32xbf16>, vector<16x32xf32> -> vector<16x32xf32>
    %253 = arith.addf %232, %252 : vector<16x32xf32>
    %c344 = arith.constant 344 : index
    %c0_84 = arith.constant 0 : index
    %254 = vector.load %arg5[%c344, %c0_84] : memref<976x128xf32, #tpu.memory_space<vmem>>, vector<1x32xf32>
    %255 = vector.broadcast %254 : vector<1x32xf32> to vector<16x32xf32>
    %256 = arith.addf %253, %255 : vector<16x32xf32>
    %257 = arith.addf %256, %125 : vector<16x32xf32>
    %c352 = arith.constant 352 : index
    %c0_85 = arith.constant 0 : index
    %258 = vector.load %arg5[%c352, %c0_85] : memref<976x128xf32, #tpu.memory_space<vmem>>, vector<1x32xf32>
    %259 = vector.broadcast %258 : vector<1x32xf32> to vector<16x32xf32>
    %260 = arith.mulf %257, %259 : vector<16x32xf32>
    %c360 = arith.constant 360 : index
    %c0_86 = arith.constant 0 : index
    %261 = vector.load %arg5[%c360, %c0_86] : memref<976x128xf32, #tpu.memory_space<vmem>>, vector<1x32xf32>
    %262 = vector.broadcast %261 : vector<1x32xf32> to vector<16x32xf32>
    %263 = arith.addf %260, %262 : vector<16x32xf32>
    %264 = arith.addf %153, %263 : vector<16x32xf32>
    %c368 = arith.constant 368 : index
    %c0_87 = arith.constant 0 : index
    %265 = vector.load %arg5[%c368, %c0_87] : memref<976x128xf32, #tpu.memory_space<vmem>>, vector<32x64xf32>
    %266 = arith.truncf %265 : vector<32x64xf32> to vector<32x64xbf16>
    %267 = arith.truncf %264 : vector<16x32xf32> to vector<16x32xbf16>
    %cst_88 = arith.constant dense<0.000000e+00> : vector<16x64xf32>
    %268 = tpu.matmul %267, %266, %cst_88 {dimension_numbers = #tpu.dot_dimension_numbers<[1], [0], [0], [1], [0, 0, 1, 1], [], []>} : vector<16x32xbf16>, vector<32x64xbf16>, vector<16x64xf32> -> vector<16x64xf32>
    %c400 = arith.constant 400 : index
    %c0_89 = arith.constant 0 : index
    %269 = vector.load %arg5[%c400, %c0_89] : memref<976x128xf32, #tpu.memory_space<vmem>>, vector<1x64xf32>
    %270 = vector.broadcast %269 : vector<1x64xf32> to vector<16x64xf32>
    %271 = arith.addf %268, %270 : vector<16x64xf32>
    %cst_90 = arith.constant 0.000000e+00 : f32
    %272 = vector.broadcast %cst_90 : f32 to vector<16x64xf32>
    %273 = arith.maximumf %271, %272 : vector<16x64xf32>
    %c408 = arith.constant 408 : index
    %c0_91 = arith.constant 0 : index
    %274 = vector.load %arg5[%c408, %c0_91] : memref<976x128xf32, #tpu.memory_space<vmem>>, vector<64x32xf32>
    %275 = arith.truncf %274 : vector<64x32xf32> to vector<64x32xbf16>
    %276 = arith.truncf %273 : vector<16x64xf32> to vector<16x64xbf16>
    %cst_92 = arith.constant dense<0.000000e+00> : vector<16x32xf32>
    %277 = tpu.matmul %276, %275, %cst_92 {dimension_numbers = #tpu.dot_dimension_numbers<[1], [0], [0], [1], [0, 0, 1, 1], [], []>} : vector<16x64xbf16>, vector<64x32xbf16>, vector<16x32xf32> -> vector<16x32xf32>
    %278 = arith.addf %264, %277 : vector<16x32xf32>
    %c472 = arith.constant 472 : index
    %c0_93 = arith.constant 0 : index
    %279 = vector.load %arg5[%c472, %c0_93] : memref<976x128xf32, #tpu.memory_space<vmem>>, vector<1x32xf32>
    %280 = vector.broadcast %279 : vector<1x32xf32> to vector<16x32xf32>
    %281 = arith.addf %278, %280 : vector<16x32xf32>
    %c480 = arith.constant 480 : index
    %c0_94 = arith.constant 0 : index
    %282 = vector.load %arg5[%c480, %c0_94] : memref<976x128xf32, #tpu.memory_space<vmem>>, vector<1x32xf32>
    %283 = vector.broadcast %282 : vector<1x32xf32> to vector<16x32xf32>
    %284 = arith.mulf %281, %283 : vector<16x32xf32>
    %c488 = arith.constant 488 : index
    %c0_95 = arith.constant 0 : index
    %285 = vector.load %arg5[%c488, %c0_95] : memref<976x128xf32, #tpu.memory_space<vmem>>, vector<1x32xf32>
    %286 = vector.broadcast %285 : vector<1x32xf32> to vector<16x32xf32>
    %287 = arith.addf %284, %286 : vector<16x32xf32>
    %288 = arith.truncf %287 : vector<16x32xf32> to vector<16x32xbf16>
    %cst_96 = arith.constant dense<0.000000e+00> : vector<32x32xf32>
    %289 = tpu.matmul %18, %288, %cst_96 {dimension_numbers = #tpu.dot_dimension_numbers<[1], [0], [0], [1], [0, 0, 1, 1], [], []>} : vector<32x16xbf16>, vector<16x32xbf16>, vector<32x32xf32> -> vector<32x32xf32>
    %290 = arith.truncf %289 : vector<32x32xf32> to vector<32x32xbf16>
    %cst_97 = arith.constant dense<0.000000e+00> : vector<16x32xf32>
    %291 = tpu.matmul %32, %290, %cst_97 {dimension_numbers = #tpu.dot_dimension_numbers<[1], [0], [0], [1], [0, 0, 1, 1], [], []>} : vector<16x32xbf16>, vector<32x32xbf16>, vector<16x32xf32> -> vector<16x32xf32>
    %292 = arith.addf %287, %291 : vector<16x32xf32>
    %c496 = arith.constant 496 : index
    %c0_98 = arith.constant 0 : index
    %293 = vector.load %arg5[%c496, %c0_98] : memref<976x128xf32, #tpu.memory_space<vmem>>, vector<32x32xf32>
    %294 = arith.truncf %293 : vector<32x32xf32> to vector<32x32xbf16>
    %295 = arith.truncf %292 : vector<16x32xf32> to vector<16x32xbf16>
    %cst_99 = arith.constant dense<0.000000e+00> : vector<16x32xf32>
    %296 = tpu.matmul %295, %294, %cst_99 {dimension_numbers = #tpu.dot_dimension_numbers<[1], [0], [0], [1], [0, 0, 1, 1], [], []>} : vector<16x32xbf16>, vector<32x32xbf16>, vector<16x32xf32> -> vector<16x32xf32>
    %c528 = arith.constant 528 : index
    %c0_100 = arith.constant 0 : index
    %297 = vector.load %arg5[%c528, %c0_100] : memref<976x128xf32, #tpu.memory_space<vmem>>, vector<1x32xf32>
    %298 = vector.broadcast %297 : vector<1x32xf32> to vector<16x32xf32>
    %299 = arith.addf %296, %298 : vector<16x32xf32>
    %cst_101 = arith.constant 0.000000e+00 : f32
    %300 = vector.broadcast %cst_101 : f32 to vector<16x32xf32>
    %301 = arith.maximumf %299, %300 : vector<16x32xf32>
    %c536 = arith.constant 536 : index
    %c0_102 = arith.constant 0 : index
    %302 = vector.load %arg5[%c536, %c0_102] : memref<976x128xf32, #tpu.memory_space<vmem>>, vector<32x32xf32>
    %303 = arith.truncf %302 : vector<32x32xf32> to vector<32x32xbf16>
    %304 = arith.truncf %301 : vector<16x32xf32> to vector<16x32xbf16>
    %cst_103 = arith.constant dense<0.000000e+00> : vector<16x32xf32>
    %305 = tpu.matmul %304, %303, %cst_103 {dimension_numbers = #tpu.dot_dimension_numbers<[1], [0], [0], [1], [0, 0, 1, 1], [], []>} : vector<16x32xbf16>, vector<32x32xbf16>, vector<16x32xf32> -> vector<16x32xf32>
    %c568 = arith.constant 568 : index
    %c0_104 = arith.constant 0 : index
    %306 = vector.load %arg5[%c568, %c0_104] : memref<976x128xf32, #tpu.memory_space<vmem>>, vector<1x32xf32>
    %307 = vector.broadcast %306 : vector<1x32xf32> to vector<16x32xf32>
    %308 = arith.addf %305, %307 : vector<16x32xf32>
    %309 = arith.addf %308, %287 : vector<16x32xf32>
    %c576 = arith.constant 576 : index
    %c0_105 = arith.constant 0 : index
    %310 = vector.load %arg5[%c576, %c0_105] : memref<976x128xf32, #tpu.memory_space<vmem>>, vector<1x32xf32>
    %311 = vector.broadcast %310 : vector<1x32xf32> to vector<16x32xf32>
    %312 = arith.mulf %309, %311 : vector<16x32xf32>
    %c584 = arith.constant 584 : index
    %c0_106 = arith.constant 0 : index
    %313 = vector.load %arg5[%c584, %c0_106] : memref<976x128xf32, #tpu.memory_space<vmem>>, vector<1x32xf32>
    %314 = vector.broadcast %313 : vector<1x32xf32> to vector<16x32xf32>
    %315 = arith.addf %312, %314 : vector<16x32xf32>
    %c592 = arith.constant 592 : index
    %c0_107 = arith.constant 0 : index
    %316 = vector.load %arg5[%c592, %c0_107] : memref<976x128xf32, #tpu.memory_space<vmem>>, vector<32x96xf32>
    %317 = arith.truncf %316 : vector<32x96xf32> to vector<32x96xbf16>
    %318 = arith.truncf %287 : vector<16x32xf32> to vector<16x32xbf16>
    %cst_108 = arith.constant dense<0.000000e+00> : vector<16x96xf32>
    %319 = tpu.matmul %318, %317, %cst_108 {dimension_numbers = #tpu.dot_dimension_numbers<[1], [0], [0], [1], [0, 0, 1, 1], [], []>} : vector<16x32xbf16>, vector<32x96xbf16>, vector<16x96xf32> -> vector<16x96xf32>
    %c624 = arith.constant 624 : index
    %c0_109 = arith.constant 0 : index
    %320 = vector.load %arg5[%c624, %c0_109] : memref<976x128xf32, #tpu.memory_space<vmem>>, vector<1x96xf32>
    %321 = vector.broadcast %320 : vector<1x96xf32> to vector<16x96xf32>
    %322 = arith.addf %319, %321 : vector<16x96xf32>
    %323 = vector.extract_strided_slice %322 {offsets = [0, 0], sizes = [16, 32], strides = [1, 1]} : vector<16x96xf32> to vector<16x32xf32>
    %324 = arith.truncf %323 : vector<16x32xf32> to vector<16x32xbf16>
    %325 = vector.extract_strided_slice %322 {offsets = [0, 32], sizes = [16, 32], strides = [1, 1]} : vector<16x96xf32> to vector<16x32xf32>
    %326 = arith.truncf %325 : vector<16x32xf32> to vector<16x32xbf16>
    %327 = vector.extract_strided_slice %322 {offsets = [0, 64], sizes = [16, 32], strides = [1, 1]} : vector<16x96xf32> to vector<16x32xf32>
    %328 = arith.truncf %327 : vector<16x32xf32> to vector<16x32xbf16>
    %c632 = arith.constant 632 : index
    %c0_110 = arith.constant 0 : index
    %329 = vector.load %arg5[%c632, %c0_110] : memref<976x128xf32, #tpu.memory_space<vmem>>, vector<32x32xf32>
    %330 = arith.truncf %329 : vector<32x32xf32> to vector<32x32xbf16>
    %cst_111 = arith.constant 0.000000e+00 : f32
    %331 = vector.broadcast %cst_111 : f32 to vector<16x32xf32>
    %332 = vector.extract_strided_slice %324 {offsets = [0, 0], sizes = [16, 8], strides = [1, 1]} : vector<16x32xbf16> to vector<16x8xbf16>
    %333 = vector.extract_strided_slice %326 {offsets = [0, 0], sizes = [16, 8], strides = [1, 1]} : vector<16x32xbf16> to vector<16x8xbf16>
    %cst_112 = arith.constant dense<0.000000e+00> : vector<16x16xf32>
    %334 = tpu.matmul %332, %333, %cst_112 {dimension_numbers = #tpu.dot_dimension_numbers<[1], [1], [0], [0], [0, 0, 1, 0], [], []>} : vector<16x8xbf16>, vector<16x8xbf16>, vector<16x16xf32> -> vector<16x16xf32>
    %335 = arith.addf %334, %7 : vector<16x16xf32>
    %cst_113 = arith.constant dense<0xFF800000> : vector<16xf32>
    %336 = vector.multi_reduction <maximumf>, %335, %cst_113 [1] : vector<16x16xf32> to vector<16xf32>
    %337 = vector.shape_cast %336 : vector<16xf32> to vector<16x1xf32>
    %338 = vector.broadcast %337 : vector<16x1xf32> to vector<16x16xf32>
    %339 = arith.subf %335, %338 : vector<16x16xf32>
    %340 = math.exp %339 : vector<16x16xf32>
    %cst_114 = arith.constant dense<0.000000e+00> : vector<16xf32>
    %341 = vector.multi_reduction <add>, %340, %cst_114 [1] : vector<16x16xf32> to vector<16xf32>
    %342 = vector.shape_cast %341 : vector<16xf32> to vector<16x1xf32>
    %343 = tpu.reciprocal %342 {approx = true} : vector<16x1xf32> -> vector<16x1xf32>
    %344 = vector.broadcast %343 : vector<16x1xf32> to vector<16x16xf32>
    %345 = arith.mulf %340, %344 : vector<16x16xf32>
    %346 = arith.truncf %345 : vector<16x16xf32> to vector<16x16xbf16>
    %347 = vector.extract_strided_slice %328 {offsets = [0, 0], sizes = [16, 8], strides = [1, 1]} : vector<16x32xbf16> to vector<16x8xbf16>
    %cst_115 = arith.constant dense<0.000000e+00> : vector<16x8xf32>
    %348 = tpu.matmul %346, %347, %cst_115 {dimension_numbers = #tpu.dot_dimension_numbers<[1], [0], [0], [1], [0, 0, 1, 1], [], []>} : vector<16x16xbf16>, vector<16x8xbf16>, vector<16x8xf32> -> vector<16x8xf32>
    %349 = arith.truncf %348 : vector<16x8xf32> to vector<16x8xbf16>
    %350 = vector.extract_strided_slice %330 {offsets = [0, 0], sizes = [8, 32], strides = [1, 1]} : vector<32x32xbf16> to vector<8x32xbf16>
    %cst_116 = arith.constant dense<0.000000e+00> : vector<16x32xf32>
    %351 = tpu.matmul %349, %350, %cst_116 {dimension_numbers = #tpu.dot_dimension_numbers<[1], [0], [0], [1], [0, 0, 1, 1], [], []>} : vector<16x8xbf16>, vector<8x32xbf16>, vector<16x32xf32> -> vector<16x32xf32>
    %352 = arith.addf %331, %351 : vector<16x32xf32>
    %353 = vector.extract_strided_slice %324 {offsets = [0, 8], sizes = [16, 8], strides = [1, 1]} : vector<16x32xbf16> to vector<16x8xbf16>
    %354 = vector.extract_strided_slice %326 {offsets = [0, 8], sizes = [16, 8], strides = [1, 1]} : vector<16x32xbf16> to vector<16x8xbf16>
    %cst_117 = arith.constant dense<0.000000e+00> : vector<16x16xf32>
    %355 = tpu.matmul %353, %354, %cst_117 {dimension_numbers = #tpu.dot_dimension_numbers<[1], [1], [0], [0], [0, 0, 1, 0], [], []>} : vector<16x8xbf16>, vector<16x8xbf16>, vector<16x16xf32> -> vector<16x16xf32>
    %356 = arith.addf %355, %7 : vector<16x16xf32>
    %cst_118 = arith.constant dense<0xFF800000> : vector<16xf32>
    %357 = vector.multi_reduction <maximumf>, %356, %cst_118 [1] : vector<16x16xf32> to vector<16xf32>
    %358 = vector.shape_cast %357 : vector<16xf32> to vector<16x1xf32>
    %359 = vector.broadcast %358 : vector<16x1xf32> to vector<16x16xf32>
    %360 = arith.subf %356, %359 : vector<16x16xf32>
    %361 = math.exp %360 : vector<16x16xf32>
    %cst_119 = arith.constant dense<0.000000e+00> : vector<16xf32>
    %362 = vector.multi_reduction <add>, %361, %cst_119 [1] : vector<16x16xf32> to vector<16xf32>
    %363 = vector.shape_cast %362 : vector<16xf32> to vector<16x1xf32>
    %364 = tpu.reciprocal %363 {approx = true} : vector<16x1xf32> -> vector<16x1xf32>
    %365 = vector.broadcast %364 : vector<16x1xf32> to vector<16x16xf32>
    %366 = arith.mulf %361, %365 : vector<16x16xf32>
    %367 = arith.truncf %366 : vector<16x16xf32> to vector<16x16xbf16>
    %368 = vector.extract_strided_slice %328 {offsets = [0, 8], sizes = [16, 8], strides = [1, 1]} : vector<16x32xbf16> to vector<16x8xbf16>
    %cst_120 = arith.constant dense<0.000000e+00> : vector<16x8xf32>
    %369 = tpu.matmul %367, %368, %cst_120 {dimension_numbers = #tpu.dot_dimension_numbers<[1], [0], [0], [1], [0, 0, 1, 1], [], []>} : vector<16x16xbf16>, vector<16x8xbf16>, vector<16x8xf32> -> vector<16x8xf32>
    %370 = arith.truncf %369 : vector<16x8xf32> to vector<16x8xbf16>
    %371 = vector.extract_strided_slice %330 {offsets = [8, 0], sizes = [8, 32], strides = [1, 1]} : vector<32x32xbf16> to vector<8x32xbf16>
    %cst_121 = arith.constant dense<0.000000e+00> : vector<16x32xf32>
    %372 = tpu.matmul %370, %371, %cst_121 {dimension_numbers = #tpu.dot_dimension_numbers<[1], [0], [0], [1], [0, 0, 1, 1], [], []>} : vector<16x8xbf16>, vector<8x32xbf16>, vector<16x32xf32> -> vector<16x32xf32>
    %373 = arith.addf %352, %372 : vector<16x32xf32>
    %374 = vector.extract_strided_slice %324 {offsets = [0, 16], sizes = [16, 8], strides = [1, 1]} : vector<16x32xbf16> to vector<16x8xbf16>
    %375 = vector.extract_strided_slice %326 {offsets = [0, 16], sizes = [16, 8], strides = [1, 1]} : vector<16x32xbf16> to vector<16x8xbf16>
    %cst_122 = arith.constant dense<0.000000e+00> : vector<16x16xf32>
    %376 = tpu.matmul %374, %375, %cst_122 {dimension_numbers = #tpu.dot_dimension_numbers<[1], [1], [0], [0], [0, 0, 1, 0], [], []>} : vector<16x8xbf16>, vector<16x8xbf16>, vector<16x16xf32> -> vector<16x16xf32>
    %377 = arith.addf %376, %7 : vector<16x16xf32>
    %cst_123 = arith.constant dense<0xFF800000> : vector<16xf32>
    %378 = vector.multi_reduction <maximumf>, %377, %cst_123 [1] : vector<16x16xf32> to vector<16xf32>
    %379 = vector.shape_cast %378 : vector<16xf32> to vector<16x1xf32>
    %380 = vector.broadcast %379 : vector<16x1xf32> to vector<16x16xf32>
    %381 = arith.subf %377, %380 : vector<16x16xf32>
    %382 = math.exp %381 : vector<16x16xf32>
    %cst_124 = arith.constant dense<0.000000e+00> : vector<16xf32>
    %383 = vector.multi_reduction <add>, %382, %cst_124 [1] : vector<16x16xf32> to vector<16xf32>
    %384 = vector.shape_cast %383 : vector<16xf32> to vector<16x1xf32>
    %385 = tpu.reciprocal %384 {approx = true} : vector<16x1xf32> -> vector<16x1xf32>
    %386 = vector.broadcast %385 : vector<16x1xf32> to vector<16x16xf32>
    %387 = arith.mulf %382, %386 : vector<16x16xf32>
    %388 = arith.truncf %387 : vector<16x16xf32> to vector<16x16xbf16>
    %389 = vector.extract_strided_slice %328 {offsets = [0, 16], sizes = [16, 8], strides = [1, 1]} : vector<16x32xbf16> to vector<16x8xbf16>
    %cst_125 = arith.constant dense<0.000000e+00> : vector<16x8xf32>
    %390 = tpu.matmul %388, %389, %cst_125 {dimension_numbers = #tpu.dot_dimension_numbers<[1], [0], [0], [1], [0, 0, 1, 1], [], []>} : vector<16x16xbf16>, vector<16x8xbf16>, vector<16x8xf32> -> vector<16x8xf32>
    %391 = arith.truncf %390 : vector<16x8xf32> to vector<16x8xbf16>
    %392 = vector.extract_strided_slice %330 {offsets = [16, 0], sizes = [8, 32], strides = [1, 1]} : vector<32x32xbf16> to vector<8x32xbf16>
    %cst_126 = arith.constant dense<0.000000e+00> : vector<16x32xf32>
    %393 = tpu.matmul %391, %392, %cst_126 {dimension_numbers = #tpu.dot_dimension_numbers<[1], [0], [0], [1], [0, 0, 1, 1], [], []>} : vector<16x8xbf16>, vector<8x32xbf16>, vector<16x32xf32> -> vector<16x32xf32>
    %394 = arith.addf %373, %393 : vector<16x32xf32>
    %395 = vector.extract_strided_slice %324 {offsets = [0, 24], sizes = [16, 8], strides = [1, 1]} : vector<16x32xbf16> to vector<16x8xbf16>
    %396 = vector.extract_strided_slice %326 {offsets = [0, 24], sizes = [16, 8], strides = [1, 1]} : vector<16x32xbf16> to vector<16x8xbf16>
    %cst_127 = arith.constant dense<0.000000e+00> : vector<16x16xf32>
    %397 = tpu.matmul %395, %396, %cst_127 {dimension_numbers = #tpu.dot_dimension_numbers<[1], [1], [0], [0], [0, 0, 1, 0], [], []>} : vector<16x8xbf16>, vector<16x8xbf16>, vector<16x16xf32> -> vector<16x16xf32>
    %398 = arith.addf %397, %7 : vector<16x16xf32>
    %cst_128 = arith.constant dense<0xFF800000> : vector<16xf32>
    %399 = vector.multi_reduction <maximumf>, %398, %cst_128 [1] : vector<16x16xf32> to vector<16xf32>
    %400 = vector.shape_cast %399 : vector<16xf32> to vector<16x1xf32>
    %401 = vector.broadcast %400 : vector<16x1xf32> to vector<16x16xf32>
    %402 = arith.subf %398, %401 : vector<16x16xf32>
    %403 = math.exp %402 : vector<16x16xf32>
    %cst_129 = arith.constant dense<0.000000e+00> : vector<16xf32>
    %404 = vector.multi_reduction <add>, %403, %cst_129 [1] : vector<16x16xf32> to vector<16xf32>
    %405 = vector.shape_cast %404 : vector<16xf32> to vector<16x1xf32>
    %406 = tpu.reciprocal %405 {approx = true} : vector<16x1xf32> -> vector<16x1xf32>
    %407 = vector.broadcast %406 : vector<16x1xf32> to vector<16x16xf32>
    %408 = arith.mulf %403, %407 : vector<16x16xf32>
    %409 = arith.truncf %408 : vector<16x16xf32> to vector<16x16xbf16>
    %410 = vector.extract_strided_slice %328 {offsets = [0, 24], sizes = [16, 8], strides = [1, 1]} : vector<16x32xbf16> to vector<16x8xbf16>
    %cst_130 = arith.constant dense<0.000000e+00> : vector<16x8xf32>
    %411 = tpu.matmul %409, %410, %cst_130 {dimension_numbers = #tpu.dot_dimension_numbers<[1], [0], [0], [1], [0, 0, 1, 1], [], []>} : vector<16x16xbf16>, vector<16x8xbf16>, vector<16x8xf32> -> vector<16x8xf32>
    %412 = arith.truncf %411 : vector<16x8xf32> to vector<16x8xbf16>
    %413 = vector.extract_strided_slice %330 {offsets = [24, 0], sizes = [8, 32], strides = [1, 1]} : vector<32x32xbf16> to vector<8x32xbf16>
    %cst_131 = arith.constant dense<0.000000e+00> : vector<16x32xf32>
    %414 = tpu.matmul %412, %413, %cst_131 {dimension_numbers = #tpu.dot_dimension_numbers<[1], [0], [0], [1], [0, 0, 1, 1], [], []>} : vector<16x8xbf16>, vector<8x32xbf16>, vector<16x32xf32> -> vector<16x32xf32>
    %415 = arith.addf %394, %414 : vector<16x32xf32>
    %c664 = arith.constant 664 : index
    %c0_132 = arith.constant 0 : index
    %416 = vector.load %arg5[%c664, %c0_132] : memref<976x128xf32, #tpu.memory_space<vmem>>, vector<1x32xf32>
    %417 = vector.broadcast %416 : vector<1x32xf32> to vector<16x32xf32>
    %418 = arith.addf %415, %417 : vector<16x32xf32>
    %419 = arith.addf %418, %287 : vector<16x32xf32>
    %c672 = arith.constant 672 : index
    %c0_133 = arith.constant 0 : index
    %420 = vector.load %arg5[%c672, %c0_133] : memref<976x128xf32, #tpu.memory_space<vmem>>, vector<1x32xf32>
    %421 = vector.broadcast %420 : vector<1x32xf32> to vector<16x32xf32>
    %422 = arith.mulf %419, %421 : vector<16x32xf32>
    %c680 = arith.constant 680 : index
    %c0_134 = arith.constant 0 : index
    %423 = vector.load %arg5[%c680, %c0_134] : memref<976x128xf32, #tpu.memory_space<vmem>>, vector<1x32xf32>
    %424 = vector.broadcast %423 : vector<1x32xf32> to vector<16x32xf32>
    %425 = arith.addf %422, %424 : vector<16x32xf32>
    %426 = arith.addf %315, %425 : vector<16x32xf32>
    %c688 = arith.constant 688 : index
    %c0_135 = arith.constant 0 : index
    %427 = vector.load %arg5[%c688, %c0_135] : memref<976x128xf32, #tpu.memory_space<vmem>>, vector<32x64xf32>
    %428 = arith.truncf %427 : vector<32x64xf32> to vector<32x64xbf16>
    %429 = arith.truncf %426 : vector<16x32xf32> to vector<16x32xbf16>
    %cst_136 = arith.constant dense<0.000000e+00> : vector<16x64xf32>
    %430 = tpu.matmul %429, %428, %cst_136 {dimension_numbers = #tpu.dot_dimension_numbers<[1], [0], [0], [1], [0, 0, 1, 1], [], []>} : vector<16x32xbf16>, vector<32x64xbf16>, vector<16x64xf32> -> vector<16x64xf32>
    %c720 = arith.constant 720 : index
    %c0_137 = arith.constant 0 : index
    %431 = vector.load %arg5[%c720, %c0_137] : memref<976x128xf32, #tpu.memory_space<vmem>>, vector<1x64xf32>
    %432 = vector.broadcast %431 : vector<1x64xf32> to vector<16x64xf32>
    %433 = arith.addf %430, %432 : vector<16x64xf32>
    %cst_138 = arith.constant 0.000000e+00 : f32
    %434 = vector.broadcast %cst_138 : f32 to vector<16x64xf32>
    %435 = arith.maximumf %433, %434 : vector<16x64xf32>
    %c728 = arith.constant 728 : index
    %c0_139 = arith.constant 0 : index
    %436 = vector.load %arg5[%c728, %c0_139] : memref<976x128xf32, #tpu.memory_space<vmem>>, vector<64x32xf32>
    %437 = arith.truncf %436 : vector<64x32xf32> to vector<64x32xbf16>
    %438 = arith.truncf %435 : vector<16x64xf32> to vector<16x64xbf16>
    %cst_140 = arith.constant dense<0.000000e+00> : vector<16x32xf32>
    %439 = tpu.matmul %438, %437, %cst_140 {dimension_numbers = #tpu.dot_dimension_numbers<[1], [0], [0], [1], [0, 0, 1, 1], [], []>} : vector<16x64xbf16>, vector<64x32xbf16>, vector<16x32xf32> -> vector<16x32xf32>
    %440 = arith.addf %426, %439 : vector<16x32xf32>
    %c792 = arith.constant 792 : index
    %c0_141 = arith.constant 0 : index
    %441 = vector.load %arg5[%c792, %c0_141] : memref<976x128xf32, #tpu.memory_space<vmem>>, vector<1x32xf32>
    %442 = vector.broadcast %441 : vector<1x32xf32> to vector<16x32xf32>
    %443 = arith.addf %440, %442 : vector<16x32xf32>
    %c800 = arith.constant 800 : index
    %c0_142 = arith.constant 0 : index
    %444 = vector.load %arg5[%c800, %c0_142] : memref<976x128xf32, #tpu.memory_space<vmem>>, vector<1x32xf32>
    %445 = vector.broadcast %444 : vector<1x32xf32> to vector<16x32xf32>
    %446 = arith.mulf %443, %445 : vector<16x32xf32>
    %c808 = arith.constant 808 : index
    %c0_143 = arith.constant 0 : index
    %447 = vector.load %arg5[%c808, %c0_143] : memref<976x128xf32, #tpu.memory_space<vmem>>, vector<1x32xf32>
    %448 = vector.broadcast %447 : vector<1x32xf32> to vector<16x32xf32>
    %449 = arith.addf %446, %448 : vector<16x32xf32>
    %450 = arith.addf %18, %25 : vector<32x16xbf16>
    %451 = arith.truncf %449 : vector<16x32xf32> to vector<16x32xbf16>
    %cst_144 = arith.constant dense<0.000000e+00> : vector<32x32xf32>
    %452 = tpu.matmul %450, %451, %cst_144 {dimension_numbers = #tpu.dot_dimension_numbers<[1], [0], [0], [1], [0, 0, 1, 1], [], []>} : vector<32x16xbf16>, vector<16x32xbf16>, vector<32x32xf32> -> vector<32x32xf32>
    %c816 = arith.constant 816 : index
    %c0_145 = arith.constant 0 : index
    %453 = vector.load %arg5[%c816, %c0_145] : memref<976x128xf32, #tpu.memory_space<vmem>>, vector<32x32xf32>
    %454 = arith.truncf %453 : vector<32x32xf32> to vector<32x32xbf16>
    %455 = arith.truncf %452 : vector<32x32xf32> to vector<32x32xbf16>
    %cst_146 = arith.constant dense<0.000000e+00> : vector<32x32xf32>
    %456 = tpu.matmul %455, %454, %cst_146 {dimension_numbers = #tpu.dot_dimension_numbers<[1], [0], [0], [1], [0, 0, 1, 1], [], []>} : vector<32x32xbf16>, vector<32x32xbf16>, vector<32x32xf32> -> vector<32x32xf32>
    %c848 = arith.constant 848 : index
    %c0_147 = arith.constant 0 : index
    %457 = vector.load %arg5[%c848, %c0_147] : memref<976x128xf32, #tpu.memory_space<vmem>>, vector<1x32xf32>
    %458 = vector.broadcast %457 : vector<1x32xf32> to vector<32x32xf32>
    %459 = arith.addf %456, %458 : vector<32x32xf32>
    %cst_148 = arith.constant 0.000000e+00 : f32
    %460 = vector.broadcast %cst_148 : f32 to vector<32x32xf32>
    %461 = arith.maximumf %459, %460 : vector<32x32xf32>
    %c856 = arith.constant 856 : index
    %c0_149 = arith.constant 0 : index
    %462 = vector.load %arg5[%c856, %c0_149] : memref<976x128xf32, #tpu.memory_space<vmem>>, vector<32x32xf32>
    %463 = arith.truncf %462 : vector<32x32xf32> to vector<32x32xbf16>
    %464 = arith.truncf %461 : vector<32x32xf32> to vector<32x32xbf16>
    %cst_150 = arith.constant dense<0.000000e+00> : vector<32x32xf32>
    %465 = tpu.matmul %464, %463, %cst_150 {dimension_numbers = #tpu.dot_dimension_numbers<[1], [0], [0], [1], [0, 0, 1, 1], [], []>} : vector<32x32xbf16>, vector<32x32xbf16>, vector<32x32xf32> -> vector<32x32xf32>
    %c888 = arith.constant 888 : index
    %c0_151 = arith.constant 0 : index
    %466 = vector.load %arg5[%c888, %c0_151] : memref<976x128xf32, #tpu.memory_space<vmem>>, vector<1x32xf32>
    %467 = vector.broadcast %466 : vector<1x32xf32> to vector<32x32xf32>
    %468 = arith.addf %465, %467 : vector<32x32xf32>
    %c896 = arith.constant 896 : index
    %c0_152 = arith.constant 0 : index
    %469 = vector.load %arg5[%c896, %c0_152] : memref<976x128xf32, #tpu.memory_space<vmem>>, vector<32x128xf32>
    %470 = arith.truncf %449 : vector<16x32xf32> to vector<16x32xbf16>
    %471 = arith.truncf %469 : vector<32x128xf32> to vector<32x128xbf16>
    %cst_153 = arith.constant dense<0.000000e+00> : vector<16x128xf32>
    %472 = tpu.matmul %470, %471, %cst_153 {dimension_numbers = #tpu.dot_dimension_numbers<[1], [0], [0], [1], [0, 0, 1, 1], [], []>} : vector<16x32xbf16>, vector<32x128xbf16>, vector<16x128xf32> -> vector<16x128xf32>
    %c928 = arith.constant 928 : index
    %c0_154 = arith.constant 0 : index
    %473 = vector.load %arg5[%c928, %c0_154] : memref<976x128xf32, #tpu.memory_space<vmem>>, vector<1x128xf32>
    %474 = vector.broadcast %473 : vector<1x128xf32> to vector<16x128xf32>
    %475 = arith.addf %472, %474 : vector<16x128xf32>
    %476 = tpu.iota {dimensions = array<i32: 1>} : vector<16x128xi32>
    %cst_155 = arith.constant 0.000000e+00 : f32
    %477 = vector.broadcast %cst_155 : f32 to vector<16x128xf32>
    %c0_i32 = arith.constant 0 : i32
    %478 = vector.broadcast %c0_i32 : i32 to vector<16x128xi32>
    %479 = arith.cmpi sge, %476, %478 : vector<16x128xi32>
    %c10_i32 = arith.constant 10 : i32
    %480 = vector.broadcast %c10_i32 : i32 to vector<16x128xi32>
    %481 = arith.cmpi slt, %476, %480 : vector<16x128xi32>
    %482 = arith.andi %479, %481 : vector<16x128xi1>
    %cst_156 = arith.constant -1.000000e+09 : f32
    %483 = vector.broadcast %cst_156 : f32 to vector<16x128xf32>
    %484 = arith.select %482, %475, %483 : vector<16x128xi1>, vector<16x128xf32>
    %cst_157 = arith.constant dense<0xFF800000> : vector<16xf32>
    %485 = vector.multi_reduction <maximumf>, %484, %cst_157 [1] : vector<16x128xf32> to vector<16xf32>
    %486 = vector.shape_cast %485 : vector<16xf32> to vector<16x1xf32>
    %487 = vector.broadcast %486 : vector<16x1xf32> to vector<16x128xf32>
    %488 = arith.subf %475, %487 : vector<16x128xf32>
    %489 = math.exp %488 : vector<16x128xf32>
    %cst_158 = arith.constant 0.000000e+00 : f32
    %490 = vector.broadcast %cst_158 : f32 to vector<16x128xf32>
    %491 = arith.select %482, %489, %490 : vector<16x128xi1>, vector<16x128xf32>
    %cst_159 = arith.constant dense<0.000000e+00> : vector<16xf32>
    %492 = vector.multi_reduction <add>, %491, %cst_159 [1] : vector<16x128xf32> to vector<16xf32>
    %493 = vector.shape_cast %492 : vector<16xf32> to vector<16x1xf32>
    %494 = math.log %493 : vector<16x1xf32>
    %495 = vector.broadcast %494 : vector<16x1xf32> to vector<16x128xf32>
    %496 = arith.subf %488, %495 : vector<16x128xf32>
    %497 = arith.select %482, %496, %477 : vector<16x128xi1>, vector<16x128xf32>
    %c10_i32_160 = arith.constant 10 : i32
    %498 = vector.broadcast %c10_i32_160 : i32 to vector<16x128xi32>
    %499 = arith.cmpi sge, %476, %498 : vector<16x128xi32>
    %c14_i32 = arith.constant 14 : i32
    %500 = vector.broadcast %c14_i32 : i32 to vector<16x128xi32>
    %501 = arith.cmpi slt, %476, %500 : vector<16x128xi32>
    %502 = arith.andi %499, %501 : vector<16x128xi1>
    %cst_161 = arith.constant -1.000000e+09 : f32
    %503 = vector.broadcast %cst_161 : f32 to vector<16x128xf32>
    %504 = arith.select %502, %475, %503 : vector<16x128xi1>, vector<16x128xf32>
    %cst_162 = arith.constant dense<0xFF800000> : vector<16xf32>
    %505 = vector.multi_reduction <maximumf>, %504, %cst_162 [1] : vector<16x128xf32> to vector<16xf32>
    %506 = vector.shape_cast %505 : vector<16xf32> to vector<16x1xf32>
    %507 = vector.broadcast %506 : vector<16x1xf32> to vector<16x128xf32>
    %508 = arith.subf %475, %507 : vector<16x128xf32>
    %509 = math.exp %508 : vector<16x128xf32>
    %cst_163 = arith.constant 0.000000e+00 : f32
    %510 = vector.broadcast %cst_163 : f32 to vector<16x128xf32>
    %511 = arith.select %502, %509, %510 : vector<16x128xi1>, vector<16x128xf32>
    %cst_164 = arith.constant dense<0.000000e+00> : vector<16xf32>
    %512 = vector.multi_reduction <add>, %511, %cst_164 [1] : vector<16x128xf32> to vector<16xf32>
    %513 = vector.shape_cast %512 : vector<16xf32> to vector<16x1xf32>
    %514 = math.log %513 : vector<16x1xf32>
    %515 = vector.broadcast %514 : vector<16x1xf32> to vector<16x128xf32>
    %516 = arith.subf %508, %515 : vector<16x128xf32>
    %517 = arith.select %502, %516, %497 : vector<16x128xi1>, vector<16x128xf32>
    %c0_165 = arith.constant 0 : index
    %c0_166 = arith.constant 0 : index
    %518 = vector.load %arg6[%c0_165, %c0_166] : memref<16x128xf32, #tpu.memory_space<vmem>>, vector<16x128xf32>
    tpu.vector_store %arg6[%c0_165, %c0_166], %517 {strides = array<i32>} : memref<16x128xf32, #tpu.memory_space<vmem>>, vector<16x128xf32>,
    %c936 = arith.constant 936 : index
    %c0_167 = arith.constant 0 : index
    %519 = vector.load %arg5[%c936, %c0_167] : memref<976x128xf32, #tpu.memory_space<vmem>>, vector<32x128xf32>
    %520 = arith.truncf %468 : vector<32x32xf32> to vector<32x32xbf16>
    %521 = arith.truncf %519 : vector<32x128xf32> to vector<32x128xbf16>
    %cst_168 = arith.constant dense<0.000000e+00> : vector<32x128xf32>
    %522 = tpu.matmul %520, %521, %cst_168 {dimension_numbers = #tpu.dot_dimension_numbers<[1], [0], [0], [1], [0, 0, 1, 1], [], []>} : vector<32x32xbf16>, vector<32x128xbf16>, vector<32x128xf32> -> vector<32x128xf32>
    %c968 = arith.constant 968 : index
    %c0_169 = arith.constant 0 : index
    %523 = vector.load %arg5[%c968, %c0_169] : memref<976x128xf32, #tpu.memory_space<vmem>>, vector<1x128xf32>
    %524 = vector.broadcast %523 : vector<1x128xf32> to vector<32x128xf32>
    %525 = arith.addf %522, %524 : vector<32x128xf32>
    %526 = tpu.iota {dimensions = array<i32: 1>} : vector<32x128xi32>
    %cst_170 = arith.constant 0.000000e+00 : f32
    %527 = vector.broadcast %cst_170 : f32 to vector<32x128xf32>
    %c0_i32_171 = arith.constant 0 : i32
    %528 = vector.broadcast %c0_i32_171 : i32 to vector<32x128xi32>
    %529 = arith.cmpi sge, %526, %528 : vector<32x128xi32>
    %c5_i32 = arith.constant 5 : i32
    %530 = vector.broadcast %c5_i32 : i32 to vector<32x128xi32>
    %531 = arith.cmpi slt, %526, %530 : vector<32x128xi32>
    %532 = arith.andi %529, %531 : vector<32x128xi1>
    %cst_172 = arith.constant -1.000000e+09 : f32
    %533 = vector.broadcast %cst_172 : f32 to vector<32x128xf32>
    %534 = arith.select %532, %525, %533 : vector<32x128xi1>, vector<32x128xf32>
    %cst_173 = arith.constant dense<0xFF800000> : vector<32xf32>
    %535 = vector.multi_reduction <maximumf>, %534, %cst_173 [1] : vector<32x128xf32> to vector<32xf32>
    %536 = vector.shape_cast %535 : vector<32xf32> to vector<32x1xf32>
    %537 = vector.broadcast %536 : vector<32x1xf32> to vector<32x128xf32>
    %538 = arith.subf %525, %537 : vector<32x128xf32>
    %539 = math.exp %538 : vector<32x128xf32>
    %cst_174 = arith.constant 0.000000e+00 : f32
    %540 = vector.broadcast %cst_174 : f32 to vector<32x128xf32>
    %541 = arith.select %532, %539, %540 : vector<32x128xi1>, vector<32x128xf32>
    %cst_175 = arith.constant dense<0.000000e+00> : vector<32xf32>
    %542 = vector.multi_reduction <add>, %541, %cst_175 [1] : vector<32x128xf32> to vector<32xf32>
    %543 = vector.shape_cast %542 : vector<32xf32> to vector<32x1xf32>
    %544 = math.log %543 : vector<32x1xf32>
    %545 = vector.broadcast %544 : vector<32x1xf32> to vector<32x128xf32>
    %546 = arith.subf %538, %545 : vector<32x128xf32>
    %547 = arith.select %532, %546, %527 : vector<32x128xi1>, vector<32x128xf32>
    %c0_176 = arith.constant 0 : index
    %c0_177 = arith.constant 0 : index
    %548 = vector.load %arg7[%c0_176, %c0_177] : memref<32x128xf32, #tpu.memory_space<vmem>>, vector<32x128xf32>
    tpu.vector_store %arg7[%c0_176, %c0_177], %547 {strides = array<i32>} : memref<32x128xf32, #tpu.memory_space<vmem>>, vector<32x128xf32>,
    return
  }
}

</mosaic_0001>

<llo_original>
// kernel: forward.1
$region0: #{forward.1}
  #allocation0 [shape = 'u32[]', space=smem, size = 0x4, offset = 0x4, fixed_abs, tag = 'smem constant byte address 0x4 - core index']
  #allocation1 [shape = 'u32[144,128]{1,0:T(1,128)}', space=vmem, size = 0x12000, scoped, tag = 'internal scratch']
  %s0 = inlined_call_operand.vmem [shape: f32[16,36], index: 0, kind: input, shape index: {}]
  %s1 = inlined_call_operand.vmem [shape: s32[16,1], index: 1, kind: input, shape index: {}]
  %s2 = inlined_call_operand.vmem [shape: s32[1,16], index: 2, kind: input, shape index: {}]
  %s3 = inlined_call_operand.vmem [shape: s32[32,2], index: 3, kind: input, shape index: {}]
  %s4 = inlined_call_operand.vmem [shape: s32[2,32], index: 4, kind: input, shape index: {}]
  %s5 = inlined_call_operand.hbm [shape: f32[976,128], index: 5, kind: input, shape index: {}]
  %s6 = inlined_call_operand.vmem [shape: f32[16,128], index: 6, kind: output, shape index: {0}]
  %s7 = inlined_call_operand.vmem [shape: f32[32,128], index: 7, kind: output, shape index: {1}]
  %8 = xla_tuple %s6, %s7
  %s9 = sld [smem:[#allocation0]]
  $region46: #{forward.1} parent=0
    _
  %s11 = ssub.s32 1, %s9
  %s12 = scalar_select 0, %s11, %s9
  $region1: #{forward.1} parent=0
    #allocation2 [shape = 'u8[499712]{0}', space=vmem, size = 0x7a000, scoped, tag = 'input window, operand 5, single buffered']
    #allocation3 [shape = 's32[1]{0}', space=sflag, size = 0x4, scoped, tag = 'scoped memory for forward.1']
    %13 = vsyncpa [#allocation3], 0
    // Predicated region
    $region2: #{forward.1} parent=1 // pred_check
      _
    $region3: #{forward.1} parent=1 // pred_check_branch
      %15 = sbr.rel (0) target = $region5
    $region4: #{forward.1} parent=1 // pred_region
      _
    $region5: #{forward.1} parent=1 // pred_fallthru
      _
    // Predicated region
    $region6: #{forward.1} parent=1 // pred_check
      _
    $region7: #{forward.1} parent=1 // pred_check_branch
      %17 = sbr.rel (0) target = $region9
    $region8: #{forward.1} parent=1 // pred_region
      _
    $region9: #{forward.1} parent=1 // pred_fallthru
      _
    // Predicated region
    $region10: #{forward.1} parent=1 // pred_check
      _
    $region11: #{forward.1} parent=1 // pred_check_branch
      %19 = sbr.rel (0) target = $region13
    $region12: #{forward.1} parent=1 // pred_region
      _
    $region13: #{forward.1} parent=1 // pred_fallthru
      _
    // Predicated region
    $region14: #{forward.1} parent=1 // pred_check
      _
    $region15: #{forward.1} parent=1 // pred_check_branch
      %21 = sbr.rel (0) target = $region17
    $region16: #{forward.1} parent=1 // pred_region
      _
    $region17: #{forward.1} parent=1 // pred_fallthru
      _
    // Predicated region
    $region18: #{forward.1} parent=1 // pred_check
      _
    $region19: #{forward.1} parent=1 // pred_check_branch
      %23 = sbr.rel (0) target = $region21
    $region20: #{forward.1} parent=1 // pred_region
      _
    $region21: #{forward.1} parent=1 // pred_fallthru
      _
    // Predicated region
    $region22: #{forward.1} parent=1 // pred_check
      _
    $region23: #{forward.1} parent=1 // pred_check_branch
      %25 = sbr.rel (0) target = $region25
    $region24: #{forward.1} parent=1 // pred_region
      %s27 = ssub.s32 15616, 15616
      %28 = vsyncadd [#allocation3], %s27
      %s29 = sshll.u32 [#allocation2], 4
      %s30 = int_to_ptr.vmem [resolvable:$true] %s29
      %35 = dma.hbm_to_vmem [thread:$0]  %s5, 15616, %s30, [#allocation3], 128, 128, 8
    $region25: #{forward.1} parent=1 // pred_fallthru
      _
    // Predicated region
    $region26: #{forward.1} parent=1 // pred_check
      _
    $region27: #{forward.1} parent=1 // pred_check_branch
      %37 = sbr.rel (0) target = $region29
    $region28: #{forward.1} parent=1 // pred_region
      %38 = dma.done [#allocation3], 15616
    $region29: #{forward.1} parent=1 // pred_fallthru
      _
    %v40 = vld [vmem:[%s1] sm:$0xff]
    %v41 = vld [vmem:[%s1 + $0x8] sm:$0xff]
    %v42 = vld [vmem:[%s2] sm:$0x1]
    %43 = vset.pattern.permute.xlu0 0
    %44 = vperm.xlu0 %43, %v40
    %v45 = vpop.permute.xlu0 %44
    %46 = vset.pattern.permute.xlu0 0
    %47 = vperm.xlu0 %46, %v41
    %v48 = vpop.permute.xlu0 %47
    %v49 = vlaneseq
    %v50 = vshrl.u32 %v49, 7
    %v51 = vsub.s32 0, %v50
    %v52 = vrot.slane %v42, %v51
    %vm53 = vcmp.eq.s32.totalorder %v45, %v52
    %vm54 = vcmp.eq.s32.totalorder %v48, %v52
    %v55 = vsel %vm53, 0.0, -1e+09
    %v56 = vsel %vm54, 0.0, -1e+09
    %v57 = vld [vmem:[%s3] sm:$0xff]
    %v58 = vld [vmem:[%s3 + $0x8] sm:$0xff]
    %v59 = vld [vmem:[%s3 + $0x10] sm:$0xff]
    %v60 = vld [vmem:[%s3 + $0x18] sm:$0xff]
    %v61 = vld [vmem:[%s4] sm:$0x3]
    %v62 = vlaneseq
    %v63 = vand.u32 %v62, 127
    %v64 = vlaneseq
    %v65 = vshrl.u32 %v64, 7
    %v66 = vadd.s32 %v65, 8
    %67 = vset.pattern.permute.xlu0 0
    %68 = vperm.xlu0 %67, %v57
    %v69 = vpop.permute.xlu0 %68
    %70 = vset.pattern.permute.xlu0 0
    %71 = vperm.xlu0 %70, %v58
    %v72 = vpop.permute.xlu0 %71
    %73 = vset.pattern.permute.xlu0 0
    %74 = vperm.xlu0 %73, %v59
    %v75 = vpop.permute.xlu0 %74
    %76 = vset.pattern.permute.xlu0 0
    %77 = vperm.xlu0 %76, %v60
    %v78 = vpop.permute.xlu0 %77
    %vm79 = vcmp.eq.s32.totalorder %v63, %v69
    %vm80 = vcmp.eq.s32.totalorder %v63, %v72
    %vm81 = vcmp.eq.s32.totalorder %v63, %v75
    %vm82 = vcmp.eq.s32.totalorder %v63, %v78
    %v83 = vsel %vm79, 1.0, 0.0
    %v84 = vsel %vm80, 1.0, 0.0
    %v85 = vsel %vm81, 1.0, 0.0
    %v86 = vsel %vm82, 1.0, 0.0
    %v87 = vpack.c.bf16 %v84, %v83
    %v88 = vpack.c.bf16 %v86, %v85
    %89 = vset.pattern.permute.xlu0 1
    %90 = vperm.xlu0 %89, %v57
    %v91 = vpop.permute.xlu0 %90
    %92 = vset.pattern.permute.xlu0 1
    %93 = vperm.xlu0 %92, %v58
    %v94 = vpop.permute.xlu0 %93
    %95 = vset.pattern.permute.xlu0 1
    %96 = vperm.xlu0 %95, %v59
    %v97 = vpop.permute.xlu0 %96
    %98 = vset.pattern.permute.xlu0 1
    %99 = vperm.xlu0 %98, %v60
    %v100 = vpop.permute.xlu0 %99
    %vm101 = vcmp.eq.s32.totalorder %v63, %v91
    %vm102 = vcmp.eq.s32.totalorder %v63, %v94
    %vm103 = vcmp.eq.s32.totalorder %v63, %v97
    %vm104 = vcmp.eq.s32.totalorder %v63, %v100
    %v105 = vsel %vm101, 1.0, 0.0
    %v106 = vsel %vm102, 1.0, 0.0
    %v107 = vsel %vm103, 1.0, 0.0
    %v108 = vsel %vm104, 1.0, 0.0
    %v109 = vpack.c.bf16 %v106, %v105
    %v110 = vpack.c.bf16 %v108, %v107
    %v111 = vlaneseq
    %v112 = vshrl.u32 %v111, 7
    %v113 = vsub.s32 1, %v112
    %v114 = vrot.slane %v61, %v113
    %vm115 = vcmp.eq.s32.totalorder %v65, %v114
    %vm116 = vcmp.eq.s32.totalorder %v66, %v114
    %v117 = vsel %vm115, 1.0, 0.0
    %v118 = vsel %vm116, 1.0, 0.0
    %v119 = vpack.c.bf16 %v118, %v117
    %v120 = vld [vmem:[%s0] sm:$0xff]
    %v121 = vld [vmem:[%s0 + $0x8] sm:$0xff]
    %v122 = vld [vmem:[#allocation2] sm:$0xff]
    %v123 = vpack.c.bf16 %v122, %v122
    %v124 = vpack.c.bf16 %v121, %v120
    %v125 = vld [vmem:[#allocation2 + $0x8] sm:$0x1]
    %v126 = vlaneseq
    %v127 = vshrl.u32 %v126, 7
    %v128 = vsub.s32 0, %v127
    %v129 = vrot.slane %v125, %v128
    %vm130 = vcmask 64512
    %v132 = vsel %vm130, %v124, 0
    %vm134 = vcmask 1043456
    %v136 = vsel %vm134, %v123, 0
    %138 = vmatprep.subr.bf16.mxu0 0
    %139 = vmatpush1.bf16.msra.mxu0 %v136
    %140 = vmatprep.subr.bf16.mxu0 0
    %141 = vmatpush1.bf16.msra.mxu0 0
    %142 = vmatprep.subr.bf16.mxu0 0
    %143 = vmatpush1.bf16.msra.mxu0 0
    %144 = vmatprep.subr.bf16.mxu0 0
    %145 = vmatpush1.bf16.msra.mxu0 0
    %146 = vmatprep.subr.bf16.mxu0 0
    %147 = vmatpush1.bf16.msra.mxu0 0
    %148 = vmatprep.subr.bf16.mxu0 0
    %149 = vmatpush1.bf16.msra.mxu0 0
    %150 = vmatprep.subr.bf16.mxu0 0
    %151 = vmatpush1.bf16.msra.mxu0 0
    %152 = vmatprep.subr.bf16.mxu0 0
    %153 = vmatpush1.bf16.msra.mxu0 0
    %154 = vmatprep.subr.bf16.mxu0 0
    %155 = vmatpush1.bf16.msra.mxu0 0
    %156 = vmatprep.subr.bf16.mxu0 0
    %157 = vmatpush1.bf16.msra.mxu0 0
    %158 = vmatprep.subr.bf16.mxu0 0
    %159 = vmatpush1.bf16.msra.mxu0 0
    %160 = vmatprep.subr.bf16.mxu0 0
    %161 = vmatpush1.bf16.msra.mxu0 0
    %162 = vmatprep.subr.bf16.mxu0 0
    %163 = vmatpush1.bf16.msra.mxu0 0
    %164 = vmatprep.subr.bf16.mxu0 0
    %165 = vmatpush1.bf16.msra.mxu0 0
    %166 = vmatprep.subr.bf16.mxu0 0
    %167 = vmatpush1.bf16.msra.mxu0 0
    %168 = vmatprep.subr.bf16.mxu0 0
    %169 = vmatpush1.bf16.msra.mxu0 0
    %170 = vmatprep.mubr.bf16.mxu0 0
    %171 = vmatmul.mubr.bf16.gmra.mrb[0].mxu0 %v132
    %v172 = vpop.f32.mrb[0].mxu0
    %v173 = vadd.f32 %v129, %v172
    %v174 = vpop.f32.mrb[0].mxu0
    %v175 = vpop.f32.mrb[0].mxu0
    %v176 = vadd.f32 %v129, %v175
    %v177 = vpop.f32.mrb[0].mxu0
    %178 = vdwg.mxu0
    %v179 = vmax.f32 %v173, 0.0
    %v180 = vmax.f32 %v176, 0.0
    %v181 = vld [vmem:[#allocation2 + $0x10] sm:$0xff]
    %v182 = vld [vmem:[#allocation2 + $0x18] sm:$0xff]
    %v183 = vld [vmem:[#allocation2 + $0x20] sm:$0xff]
    %v184 = vld [vmem:[#allocation2 + $0x28] sm:$0xff]
    %v185 = vpack.c.bf16 %v182, %v181
    %v186 = vpack.c.bf16 %v184, %v183
    %v187 = vpack.c.bf16 %v180, %v179
    %v188 = vld [vmem:[#allocation2 + $0x30] sm:$0x1]
    %v189 = vlaneseq
    %v190 = vshrl.u32 %v189, 7
    %v191 = vsub.s32 0, %v190
    %v192 = vrot.slane %v188, %v191
    %vm193 = vcmask 261120
    %v195 = vsel %vm193, %v187, 0
    %197 = vmatprep.subr.bf16.mxu0 0
    %198 = vmatpush1.bf16.msra.mxu0 %v185
    %199 = vmatprep.subr.bf16.mxu0 0
    %200 = vmatpush1.bf16.msra.mxu0 %v186
    %201 = vmatprep.subr.bf16.mxu0 0
    %202 = vmatpush1.bf16.msra.mxu0 0
    %203 = vmatprep.subr.bf16.mxu0 0
    %204 = vmatpush1.bf16.msra.mxu0 0
    %205 = vmatprep.subr.bf16.mxu0 0
    %206 = vmatpush1.bf16.msra.mxu0 0
    %207 = vmatprep.subr.bf16.mxu0 0
    %208 = vmatpush1.bf16.msra.mxu0 0
    %209 = vmatprep.subr.bf16.mxu0 0
    %210 = vmatpush1.bf16.msra.mxu0 0
    %211 = vmatprep.subr.bf16.mxu0 0
    %212 = vmatpush1.bf16.msra.mxu0 0
    %213 = vmatprep.subr.bf16.mxu0 0
    %214 = vmatpush1.bf16.msra.mxu0 0
    %215 = vmatprep.subr.bf16.mxu0 0
    %216 = vmatpush1.bf16.msra.mxu0 0
    %217 = vmatprep.subr.bf16.mxu0 0
    %218 = vmatpush1.bf16.msra.mxu0 0
    %219 = vmatprep.subr.bf16.mxu0 0
    %220 = vmatpush1.bf16.msra.mxu0 0
    %221 = vmatprep.subr.bf16.mxu0 0
    %222 = vmatpush1.bf16.msra.mxu0 0
    %223 = vmatprep.subr.bf16.mxu0 0
    %224 = vmatpush1.bf16.msra.mxu0 0
    %225 = vmatprep.subr.bf16.mxu0 0
    %226 = vmatpush1.bf16.msra.mxu0 0
    %227 = vmatprep.subr.bf16.mxu0 0
    %228 = vmatpush1.bf16.msra.mxu0 0
    %229 = vmatprep.mubr.bf16.mxu0 0
    %230 = vmatmul.mubr.bf16.gmra.mrb[0].mxu0 %v195
    %v231 = vpop.f32.mrb[0].mxu0
    %v232 = vadd.f32 %v192, %v231
    %v233 = vpop.f32.mrb[0].mxu0
    %v234 = vpop.f32.mrb[0].mxu0
    %v235 = vadd.f32 %v192, %v234
    %v236 = vpop.f32.mrb[0].mxu0
    %237 = vdwg.mxu0
    %v238 = vld [vmem:[#allocation2 + $0x38] sm:$0x1]
    %v239 = vld [vmem:[#allocation2 + $0x40] sm:$0x1]
    %v240 = vsel %vm193, %v232, 0.0
    %241 = vadd.xlane.f32.xlu0 %v240
    %v242 = vpop.xlane.xlu0 %241
    %v243 = vsel %vm193, %v235, 0.0
    %244 = vadd.xlane.f32.xlu0 %v243
    %v245 = vpop.xlane.xlu0 %244
    %v246 = vrcp.pop 32.0
    %v247 = vmul.f32 %v242, %v246
    %v248 = vmul.f32 %v245, %v246
    %v249 = vsub.f32 %v232, %v247
    %v250 = vsub.f32 %v235, %v248
    %v251 = vmul.f32 %v249, %v249
    %v252 = vmul.f32 %v250, %v250
    %v253 = vsel %vm193, %v251, 0.0
    %254 = vadd.xlane.f32.xlu0 %v253
    %v255 = vpop.xlane.xlu0 %254
    %v256 = vsel %vm193, %v252, 0.0
    %257 = vadd.xlane.f32.xlu0 %v256
    %v258 = vpop.xlane.xlu0 %257
    %v259 = vmul.f32 %v255, %v246
    %v260 = vmul.f32 %v258, %v246
    %v261 = vadd.f32 %v259, 1e-05
    %v262 = vadd.f32 %v260, 1e-05
    %v263 = vrsqrt.pop %v261
    %v264 = vrsqrt.pop %v262
    %v265 = vmul.f32 %v249, %v263
    %v266 = vmul.f32 %v250, %v264
    %v267 = vlaneseq
    %v268 = vshrl.u32 %v267, 7
    %v269 = vsub.s32 0, %v268
    %v270 = vrot.slane %v238, %v269
    %v271 = vmul.f32 %v265, %v270
    %v272 = vmul.f32 %v266, %v270
    %v273 = vlaneseq
    %v274 = vshrl.u32 %v273, 7
    %v275 = vsub.s32 0, %v274
    %v276 = vrot.slane %v239, %v275
    %v277 = vadd.f32 %v271, %v276
    %v278 = vadd.f32 %v272, %v276
    %v279 = vld [vmem:[#allocation2 + $0x48] sm:$0xff]
    %v280 = vld [vmem:[#allocation2 + $0x50] sm:$0xf]
    %v281 = vpack.c.bf16 %v280, %v279
    %v282 = vld [vmem:[#allocation2 + $0x58] sm:$0x1]
    %v283 = vlaneseq
    %v284 = vshrl.u32 %v283, 7
    %v285 = vsub.s32 0, %v284
    %v286 = vrot.slane %v282, %v285
    %288 = vrot.lane.b32.xlu0 %v124, 120
    %v289 = vpop.permute.xlu0 %288
    %vm290 = vcmask 97280
    %v292 = vsel %vm290, %v289, 0
    %vm294 = vcmask 1045504
    %v296 = vsel %vm294, %v281, 0
    %298 = vmatprep.subr.bf16.mxu0 0
    %299 = vmatpush1.bf16.msra.mxu0 %v296
    %300 = vmatprep.subr.bf16.mxu0 0
    %301 = vmatpush1.bf16.msra.mxu0 0
    %302 = vmatprep.subr.bf16.mxu0 0
    %303 = vmatpush1.bf16.msra.mxu0 0
    %304 = vmatprep.subr.bf16.mxu0 0
    %305 = vmatpush1.bf16.msra.mxu0 0
    %306 = vmatprep.subr.bf16.mxu0 0
    %307 = vmatpush1.bf16.msra.mxu0 0
    %308 = vmatprep.subr.bf16.mxu0 0
    %309 = vmatpush1.bf16.msra.mxu0 0
    %310 = vmatprep.subr.bf16.mxu0 0
    %311 = vmatpush1.bf16.msra.mxu0 0
    %312 = vmatprep.subr.bf16.mxu0 0
    %313 = vmatpush1.bf16.msra.mxu0 0
    %314 = vmatprep.subr.bf16.mxu0 0
    %315 = vmatpush1.bf16.msra.mxu0 0
    %316 = vmatprep.subr.bf16.mxu0 0
    %317 = vmatpush1.bf16.msra.mxu0 0
    %318 = vmatprep.subr.bf16.mxu0 0
    %319 = vmatpush1.bf16.msra.mxu0 0
    %320 = vmatprep.subr.bf16.mxu0 0
    %321 = vmatpush1.bf16.msra.mxu0 0
    %322 = vmatprep.subr.bf16.mxu0 0
    %323 = vmatpush1.bf16.msra.mxu0 0
    %324 = vmatprep.subr.bf16.mxu0 0
    %325 = vmatpush1.bf16.msra.mxu0 0
    %326 = vmatprep.subr.bf16.mxu0 0
    %327 = vmatpush1.bf16.msra.mxu0 0
    %328 = vmatprep.subr.bf16.mxu0 0
    %329 = vmatpush1.bf16.msra.mxu0 0
    %330 = vmatprep.mubr.bf16.mxu0 0
    %331 = vmatmul.mubr.bf16.gmra.mrb[0].mxu0 %v292
    %v332 = vpop.f32.mrb[0].mxu0
    %v333 = vadd.f32 %v286, %v332
    %v334 = vpop.f32.mrb[0].mxu0
    %v335 = vpop.f32.mrb[0].mxu0
    %v336 = vadd.f32 %v286, %v335
    %v337 = vpop.f32.mrb[0].mxu0
    %338 = vdwg.mxu0
    %v339 = vmax.f32 %v333, 0.0
    %v340 = vmax.f32 %v336, 0.0
    %v341 = vld [vmem:[#allocation2 + $0x60] sm:$0xff]
    %v342 = vld [vmem:[#allocation2 + $0x68] sm:$0xff]
    %v343 = vld [vmem:[#allocation2 + $0x70] sm:$0xff]
    %v344 = vld [vmem:[#allocation2 + $0x78] sm:$0xff]
    %v345 = vpack.c.bf16 %v342, %v341
    %v346 = vpack.c.bf16 %v344, %v343
    %v347 = vpack.c.bf16 %v340, %v339
    %v348 = vld [vmem:[#allocation2 + $0x80] sm:$0x1]
    %v349 = vlaneseq
    %v350 = vshrl.u32 %v349, 7
    %v351 = vsub.s32 0, %v350
    %v352 = vrot.slane %v348, %v351
    %v354 = vsel %vm193, %v347, 0
    %356 = vmatprep.subr.bf16.mxu0 0
    %357 = vmatpush1.bf16.msra.mxu0 %v345
    %358 = vmatprep.subr.bf16.mxu0 0
    %359 = vmatpush1.bf16.msra.mxu0 %v346
    %360 = vmatprep.subr.bf16.mxu0 0
    %361 = vmatpush1.bf16.msra.mxu0 0
    %362 = vmatprep.subr.bf16.mxu0 0
    %363 = vmatpush1.bf16.msra.mxu0 0
    %364 = vmatprep.subr.bf16.mxu0 0
    %365 = vmatpush1.bf16.msra.mxu0 0
    %366 = vmatprep.subr.bf16.mxu0 0
    %367 = vmatpush1.bf16.msra.mxu0 0
    %368 = vmatprep.subr.bf16.mxu0 0
    %369 = vmatpush1.bf16.msra.mxu0 0
    %370 = vmatprep.subr.bf16.mxu0 0
    %371 = vmatpush1.bf16.msra.mxu0 0
    %372 = vmatprep.subr.bf16.mxu0 0
    %373 = vmatpush1.bf16.msra.mxu0 0
    %374 = vmatprep.subr.bf16.mxu0 0
    %375 = vmatpush1.bf16.msra.mxu0 0
    %376 = vmatprep.subr.bf16.mxu0 0
    %377 = vmatpush1.bf16.msra.mxu0 0
    %378 = vmatprep.subr.bf16.mxu0 0
    %379 = vmatpush1.bf16.msra.mxu0 0
    %380 = vmatprep.subr.bf16.mxu0 0
    %381 = vmatpush1.bf16.msra.mxu0 0
    %382 = vmatprep.subr.bf16.mxu0 0
    %383 = vmatpush1.bf16.msra.mxu0 0
    %384 = vmatprep.subr.bf16.mxu0 0
    %385 = vmatpush1.bf16.msra.mxu0 0
    %386 = vmatprep.subr.bf16.mxu0 0
    %387 = vmatpush1.bf16.msra.mxu0 0
    %388 = vmatprep.mubr.bf16.mxu0 0
    %389 = vmatmul.mubr.bf16.gmra.mrb[0].mxu0 %v354
    %v390 = vpop.f32.mrb[0].mxu0
    %v391 = vadd.f32 %v352, %v390
    %v392 = vpop.f32.mrb[0].mxu0
    %v393 = vpop.f32.mrb[0].mxu0
    %v394 = vadd.f32 %v352, %v393
    %v395 = vpop.f32.mrb[0].mxu0
    %396 = vdwg.mxu0
    %v397 = vld [vmem:[#allocation2 + $0x88] sm:$0x1]
    %v398 = vld [vmem:[#allocation2 + $0x90] sm:$0x1]
    %v399 = vsel %vm193, %v391, 0.0
    %400 = vadd.xlane.f32.xlu0 %v399
    %v401 = vpop.xlane.xlu0 %400
    %v402 = vsel %vm193, %v394, 0.0
    %403 = vadd.xlane.f32.xlu0 %v402
    %v404 = vpop.xlane.xlu0 %403
    %v405 = vmul.f32 %v401, %v246
    %v406 = vmul.f32 %v404, %v246
    %v407 = vsub.f32 %v391, %v405
    %v408 = vsub.f32 %v394, %v406
    %v409 = vmul.f32 %v407, %v407
    %v410 = vmul.f32 %v408, %v408
    %v411 = vsel %vm193, %v409, 0.0
    %412 = vadd.xlane.f32.xlu0 %v411
    %v413 = vpop.xlane.xlu0 %412
    %v414 = vsel %vm193, %v410, 0.0
    %415 = vadd.xlane.f32.xlu0 %v414
    %v416 = vpop.xlane.xlu0 %415
    %v417 = vmul.f32 %v413, %v246
    %v418 = vmul.f32 %v416, %v246
    %v419 = vadd.f32 %v417, 1e-05
    %v420 = vadd.f32 %v418, 1e-05
    %v421 = vrsqrt.pop %v419
    %v422 = vrsqrt.pop %v420
    %v423 = vmul.f32 %v407, %v421
    %v424 = vmul.f32 %v408, %v422
    %v425 = vlaneseq
    %v426 = vshrl.u32 %v425, 7
    %v427 = vsub.s32 0, %v426
    %v428 = vrot.slane %v397, %v427
    %v429 = vmul.f32 %v423, %v428
    %v430 = vmul.f32 %v424, %v428
    %v431 = vlaneseq
    %v432 = vshrl.u32 %v431, 7
    %v433 = vsub.s32 0, %v432
    %v434 = vrot.slane %v398, %v433
    %v435 = vadd.f32 %v429, %v434
    %v436 = vadd.f32 %v430, %v434
    %v437 = vadd.f32 %v277, %v435
    %v438 = vadd.f32 %v278, %v436
    %v439 = vld [vmem:[#allocation2 + $0x98] sm:$0xff]
    %v440 = vld [vmem:[#allocation2 + $0xa0] sm:$0xff]
    %v441 = vpack.c.bf16 %v440, %v439
    %442 = vrot.lane.b32.xlu0 %v124, 108
    %v443 = vpop.permute.xlu0 %442
    %vm444 = vcmask 130048
    %v446 = vsel %vm444, %v443, 0
    %448 = vmatprep.subr.bf16.mxu0 0
    %449 = vmatpush1.bf16.msra.mxu0 %v441
    %450 = vmatprep.subr.bf16.mxu0 0
    %451 = vmatpush1.bf16.msra.mxu0 0
    %452 = vmatprep.subr.bf16.mxu0 0
    %453 = vmatpush1.bf16.msra.mxu0 0
    %454 = vmatprep.subr.bf16.mxu0 0
    %455 = vmatpush1.bf16.msra.mxu0 0
    %456 = vmatprep.subr.bf16.mxu0 0
    %457 = vmatpush1.bf16.msra.mxu0 0
    %458 = vmatprep.subr.bf16.mxu0 0
    %459 = vmatpush1.bf16.msra.mxu0 0
    %460 = vmatprep.subr.bf16.mxu0 0
    %461 = vmatpush1.bf16.msra.mxu0 0
    %462 = vmatprep.subr.bf16.mxu0 0
    %463 = vmatpush1.bf16.msra.mxu0 0
    %464 = vmatprep.subr.bf16.mxu0 0
    %465 = vmatpush1.bf16.msra.mxu0 0
    %466 = vmatprep.subr.bf16.mxu0 0
    %467 = vmatpush1.bf16.msra.mxu0 0
    %468 = vmatprep.subr.bf16.mxu0 0
    %469 = vmatpush1.bf16.msra.mxu0 0
    %470 = vmatprep.subr.bf16.mxu0 0
    %471 = vmatpush1.bf16.msra.mxu0 0
    %472 = vmatprep.subr.bf16.mxu0 0
    %473 = vmatpush1.bf16.msra.mxu0 0
    %474 = vmatprep.subr.bf16.mxu0 0
    %475 = vmatpush1.bf16.msra.mxu0 0
    %476 = vmatprep.subr.bf16.mxu0 0
    %477 = vmatpush1.bf16.msra.mxu0 0
    %478 = vmatprep.subr.bf16.mxu0 0
    %479 = vmatpush1.bf16.msra.mxu0 0
    %480 = vmatprep.mubr.bf16.mxu0 0
    %481 = vmatmul.mubr.bf16.gmra.mrb[0].mxu0 %v446
    %v482 = vpop.f32.mrb[0].mxu0
    %v483 = vadd.f32 0.0, %v482
    %v484 = vpop.f32.mrb[0].mxu0
    %v485 = vpop.f32.mrb[0].mxu0
    %v486 = vadd.f32 0.0, %v485
    %v487 = vpop.f32.mrb[0].mxu0
    %488 = vdwg.mxu0
    %v489 = vadd.f32 %v437, %v483
    %v490 = vadd.f32 %v438, %v486
    %v491 = vld [vmem:[#allocation2 + $0xa8] sm:$0x1]
    %v492 = vlaneseq
    %v493 = vshrl.u32 %v492, 7
    %v494 = vsub.s32 0, %v493
    %v495 = vrot.slane %v491, %v494
    %v496 = vadd.f32 %v489, %v495
    %v497 = vadd.f32 %v490, %v495
    %v498 = vpack.c.bf16 %v497, %v496
    %v500 = vsel %vm444, %v87, 0
    %v503 = vsel %vm444, %v88, 0
    %505 = vmatprep.subr.bf16.mxu0 0
    %506 = vmatpush1.bf16.msra.mxu0 %v498
    %507 = vmatprep.subr.bf16.mxu0 0
    %508 = vmatpush1.bf16.msra.mxu0 0
    %509 = vmatprep.subr.bf16.mxu0 0
    %510 = vmatpush1.bf16.msra.mxu0 0
    %511 = vmatprep.subr.bf16.mxu0 0
    %512 = vmatpush1.bf16.msra.mxu0 0
    %513 = vmatprep.subr.bf16.mxu0 0
    %514 = vmatpush1.bf16.msra.mxu0 0
    %515 = vmatprep.subr.bf16.mxu0 0
    %516 = vmatpush1.bf16.msra.mxu0 0
    %517 = vmatprep.subr.bf16.mxu0 0
    %518 = vmatpush1.bf16.msra.mxu0 0
    %519 = vmatprep.subr.bf16.mxu0 0
    %520 = vmatpush1.bf16.msra.mxu0 0
    %521 = vmatprep.subr.bf16.mxu0 0
    %522 = vmatpush1.bf16.msra.mxu0 0
    %523 = vmatprep.subr.bf16.mxu0 0
    %524 = vmatpush1.bf16.msra.mxu0 0
    %525 = vmatprep.subr.bf16.mxu0 0
    %526 = vmatpush1.bf16.msra.mxu0 0
    %527 = vmatprep.subr.bf16.mxu0 0
    %528 = vmatpush1.bf16.msra.mxu0 0
    %529 = vmatprep.subr.bf16.mxu0 0
    %530 = vmatpush1.bf16.msra.mxu0 0
    %531 = vmatprep.subr.bf16.mxu0 0
    %532 = vmatpush1.bf16.msra.mxu0 0
    %533 = vmatprep.subr.bf16.mxu0 0
    %534 = vmatpush1.bf16.msra.mxu0 0
    %535 = vmatprep.subr.bf16.mxu0 0
    %536 = vmatpush1.bf16.msra.mxu0 0
    %537 = vmatprep.mubr.bf16.mxu0 0
    %538 = vmatmul.mubr.bf16.gmra.mrb[0].mxu0 %v500
    %v539 = vpop.f32.mrb[0].mxu0
    %v540 = vadd.f32 0.0, %v539
    %v541 = vpop.f32.mrb[0].mxu0
    %v542 = vpop.f32.mrb[0].mxu0
    %v543 = vadd.f32 0.0, %v542
    %v544 = vpop.f32.mrb[0].mxu0
    %545 = vmatprep.mubr.bf16.mxu0 0
    %546 = vmatmul.mubr.bf16.gmra.mrb[0].mxu0 %v503
    %v547 = vpop.f32.mrb[0].mxu0
    %v548 = vadd.f32 0.0, %v547
    %v549 = vpop.f32.mrb[0].mxu0
    %v550 = vpop.f32.mrb[0].mxu0
    %v551 = vadd.f32 0.0, %v550
    %v552 = vpop.f32.mrb[0].mxu0
    %553 = vdwg.mxu0
    %v554 = vpack.c.bf16 %v543, %v540
    %v555 = vpack.c.bf16 %v551, %v548
    %v557 = vsel %vm193, %v119, 0
    %559 = vmatprep.subr.bf16.mxu0 0
    %560 = vmatpush1.bf16.msra.mxu0 %v554
    %561 = vmatprep.subr.bf16.mxu0 0
    %562 = vmatpush1.bf16.msra.mxu0 %v555
    %563 = vmatprep.subr.bf16.mxu0 0
    %564 = vmatpush1.bf16.msra.mxu0 0
    %565 = vmatprep.subr.bf16.mxu0 0
    %566 = vmatpush1.bf16.msra.mxu0 0
    %567 = vmatprep.subr.bf16.mxu0 0
    %568 = vmatpush1.bf16.msra.mxu0 0
    %569 = vmatprep.subr.bf16.mxu0 0
    %570 = vmatpush1.bf16.msra.mxu0 0
    %571 = vmatprep.subr.bf16.mxu0 0
    %572 = vmatpush1.bf16.msra.mxu0 0
    %573 = vmatprep.subr.bf16.mxu0 0
    %574 = vmatpush1.bf16.msra.mxu0 0
    %575 = vmatprep.subr.bf16.mxu0 0
    %576 = vmatpush1.bf16.msra.mxu0 0
    %577 = vmatprep.subr.bf16.mxu0 0
    %578 = vmatpush1.bf16.msra.mxu0 0
    %579 = vmatprep.subr.bf16.mxu0 0
    %580 = vmatpush1.bf16.msra.mxu0 0
    %581 = vmatprep.subr.bf16.mxu0 0
    %582 = vmatpush1.bf16.msra.mxu0 0
    %583 = vmatprep.subr.bf16.mxu0 0
    %584 = vmatpush1.bf16.msra.mxu0 0
    %585 = vmatprep.subr.bf16.mxu0 0
    %586 = vmatpush1.bf16.msra.mxu0 0
    %587 = vmatprep.subr.bf16.mxu0 0
    %588 = vmatpush1.bf16.msra.mxu0 0
    %589 = vmatprep.subr.bf16.mxu0 0
    %590 = vmatpush1.bf16.msra.mxu0 0
    %591 = vmatprep.mubr.bf16.mxu0 0
    %592 = vmatmul.mubr.bf16.gmra.mrb[0].mxu0 %v557
    %v593 = vpop.f32.mrb[0].mxu0
    %v594 = vadd.f32 0.0, %v593
    %v595 = vpop.f32.mrb[0].mxu0
    %v596 = vpop.f32.mrb[0].mxu0
    %v597 = vadd.f32 0.0, %v596
    %v598 = vpop.f32.mrb[0].mxu0
    %599 = vdwg.mxu0
    %v600 = vadd.f32 %v496, %v594
    %v601 = vadd.f32 %v497, %v597
    %v602 = vld [vmem:[#allocation2 + $0xb0] sm:$0xff]
    %v603 = vld [vmem:[#allocation2 + $0xb8] sm:$0xff]
    %v604 = vld [vmem:[#allocation2 + $0xc0] sm:$0xff]
    %v605 = vld [vmem:[#allocation2 + $0xc8] sm:$0xff]
    %v606 = vpack.c.bf16 %v603, %v602
    %v607 = vpack.c.bf16 %v605, %v604
    %v608 = vpack.c.bf16 %v601, %v600
    %v609 = vld [vmem:[#allocation2 + $0xd0] sm:$0x1]
    %v610 = vlaneseq
    %v611 = vshrl.u32 %v610, 7
    %v612 = vsub.s32 0, %v611
    %v613 = vrot.slane %v609, %v612
    %v615 = vsel %vm193, %v608, 0
    %617 = vmatprep.subr.bf16.mxu0 0
    %618 = vmatpush1.bf16.msra.mxu0 %v606
    %619 = vmatprep.subr.bf16.mxu0 0
    %620 = vmatpush1.bf16.msra.mxu0 %v607
    %621 = vmatprep.subr.bf16.mxu0 0
    %622 = vmatpush1.bf16.msra.mxu0 0
    %623 = vmatprep.subr.bf16.mxu0 0
    %624 = vmatpush1.bf16.msra.mxu0 0
    %625 = vmatprep.subr.bf16.mxu0 0
    %626 = vmatpush1.bf16.msra.mxu0 0
    %627 = vmatprep.subr.bf16.mxu0 0
    %628 = vmatpush1.bf16.msra.mxu0 0
    %629 = vmatprep.subr.bf16.mxu0 0
    %630 = vmatpush1.bf16.msra.mxu0 0
    %631 = vmatprep.subr.bf16.mxu0 0
    %632 = vmatpush1.bf16.msra.mxu0 0
    %633 = vmatprep.subr.bf16.mxu0 0
    %634 = vmatpush1.bf16.msra.mxu0 0
    %635 = vmatprep.subr.bf16.mxu0 0
    %636 = vmatpush1.bf16.msra.mxu0 0
    %637 = vmatprep.subr.bf16.mxu0 0
    %638 = vmatpush1.bf16.msra.mxu0 0
    %639 = vmatprep.subr.bf16.mxu0 0
    %640 = vmatpush1.bf16.msra.mxu0 0
    %641 = vmatprep.subr.bf16.mxu0 0
    %642 = vmatpush1.bf16.msra.mxu0 0
    %643 = vmatprep.subr.bf16.mxu0 0
    %644 = vmatpush1.bf16.msra.mxu0 0
    %645 = vmatprep.subr.bf16.mxu0 0
    %646 = vmatpush1.bf16.msra.mxu0 0
    %647 = vmatprep.subr.bf16.mxu0 0
    %648 = vmatpush1.bf16.msra.mxu0 0
    %649 = vmatprep.mubr.bf16.mxu0 0
    %650 = vmatmul.mubr.bf16.gmra.mrb[0].mxu0 %v615
    %v651 = vpop.f32.mrb[0].mxu0
    %v652 = vadd.f32 %v613, %v651
    %v653 = vpop.f32.mrb[0].mxu0
    %v654 = vpop.f32.mrb[0].mxu0
    %v655 = vadd.f32 %v613, %v654
    %v656 = vpop.f32.mrb[0].mxu0
    %657 = vdwg.mxu0
    %v658 = vmax.f32 %v652, 0.0
    %v659 = vmax.f32 %v655, 0.0
    %v660 = vld [vmem:[#allocation2 + $0xd8] sm:$0xff]
    %v661 = vld [vmem:[#allocation2 + $0xe0] sm:$0xff]
    %v662 = vld [vmem:[#allocation2 + $0xe8] sm:$0xff]
    %v663 = vld [vmem:[#allocation2 + $0xf0] sm:$0xff]
    %v664 = vpack.c.bf16 %v661, %v660
    %v665 = vpack.c.bf16 %v663, %v662
    %v666 = vpack.c.bf16 %v659, %v658
    %v667 = vld [vmem:[#allocation2 + $0xf8] sm:$0x1]
    %v668 = vlaneseq
    %v669 = vshrl.u32 %v668, 7
    %v670 = vsub.s32 0, %v669
    %v671 = vrot.slane %v667, %v670
    %v673 = vsel %vm193, %v666, 0
    %675 = vmatprep.subr.bf16.mxu0 0
    %676 = vmatpush1.bf16.msra.mxu0 %v664
    %677 = vmatprep.subr.bf16.mxu0 0
    %678 = vmatpush1.bf16.msra.mxu0 %v665
    %679 = vmatprep.subr.bf16.mxu0 0
    %680 = vmatpush1.bf16.msra.mxu0 0
    %681 = vmatprep.subr.bf16.mxu0 0
    %682 = vmatpush1.bf16.msra.mxu0 0
    %683 = vmatprep.subr.bf16.mxu0 0
    %684 = vmatpush1.bf16.msra.mxu0 0
    %685 = vmatprep.subr.bf16.mxu0 0
    %686 = vmatpush1.bf16.msra.mxu0 0
    %687 = vmatprep.subr.bf16.mxu0 0
    %688 = vmatpush1.bf16.msra.mxu0 0
    %689 = vmatprep.subr.bf16.mxu0 0
    %690 = vmatpush1.bf16.msra.mxu0 0
    %691 = vmatprep.subr.bf16.mxu0 0
    %692 = vmatpush1.bf16.msra.mxu0 0
    %693 = vmatprep.subr.bf16.mxu0 0
    %694 = vmatpush1.bf16.msra.mxu0 0
    %695 = vmatprep.subr.bf16.mxu0 0
    %696 = vmatpush1.bf16.msra.mxu0 0
    %697 = vmatprep.subr.bf16.mxu0 0
    %698 = vmatpush1.bf16.msra.mxu0 0
    %699 = vmatprep.subr.bf16.mxu0 0
    %700 = vmatpush1.bf16.msra.mxu0 0
    %701 = vmatprep.subr.bf16.mxu0 0
    %702 = vmatpush1.bf16.msra.mxu0 0
    %703 = vmatprep.subr.bf16.mxu0 0
    %704 = vmatpush1.bf16.msra.mxu0 0
    %705 = vmatprep.subr.bf16.mxu0 0
    %706 = vmatpush1.bf16.msra.mxu0 0
    %707 = vmatprep.mubr.bf16.mxu0 0
    %708 = vmatmul.mubr.bf16.gmra.mrb[0].mxu0 %v673
    %v709 = vpop.f32.mrb[0].mxu0
    %v710 = vadd.f32 %v671, %v709
    %v711 = vpop.f32.mrb[0].mxu0
    %v712 = vpop.f32.mrb[0].mxu0
    %v713 = vadd.f32 %v671, %v712
    %v714 = vpop.f32.mrb[0].mxu0
    %715 = vdwg.mxu0
    %v716 = vadd.f32 %v710, %v496
    %v717 = vadd.f32 %v713, %v497
    %v718 = vld [vmem:[#allocation2 + $0x100] sm:$0x1]
    %v719 = vlaneseq
    %v720 = vshrl.u32 %v719, 7
    %v721 = vsub.s32 0, %v720
    %v722 = vrot.slane %v718, %v721
    %v723 = vmul.f32 %v716, %v722
    %v724 = vmul.f32 %v717, %v722
    %v725 = vld [vmem:[#allocation2 + $0x108] sm:$0x1]
    %v726 = vlaneseq
    %v727 = vshrl.u32 %v726, 7
    %v728 = vsub.s32 0, %v727
    %v729 = vrot.slane %v725, %v728
    %v730 = vadd.f32 %v723, %v729
    %v731 = vadd.f32 %v724, %v729
    %v732 = vld [vmem:[#allocation2 + $0x110] sm:$0xff]
    %v733 = vld [vmem:[#allocation2 + $0x118] sm:$0xff]
    %v734 = vld [vmem:[#allocation2 + $0x120] sm:$0xff]
    %v735 = vld [vmem:[#allocation2 + $0x128] sm:$0xff]
    %v736 = vpack.c.bf16 %v733, %v732
    %v737 = vpack.c.bf16 %v735, %v734
    %v738 = vld [vmem:[#allocation2 + $0x130] sm:$0x1]
    %v739 = vlaneseq
    %v740 = vshrl.u32 %v739, 7
    %v741 = vsub.s32 0, %v740
    %v742 = vrot.slane %v738, %v741
    %v744 = vsel %vm193, %v498, 0
    %746 = vmatprep.subr.bf16.mxu0 0
    %747 = vmatpush1.bf16.msra.mxu0 %v736
    %748 = vmatprep.subr.bf16.mxu0 0
    %749 = vmatpush1.bf16.msra.mxu0 %v737
    %750 = vmatprep.subr.bf16.mxu0 0
    %751 = vmatpush1.bf16.msra.mxu0 0
    %752 = vmatprep.subr.bf16.mxu0 0
    %753 = vmatpush1.bf16.msra.mxu0 0
    %754 = vmatprep.subr.bf16.mxu0 0
    %755 = vmatpush1.bf16.msra.mxu0 0
    %756 = vmatprep.subr.bf16.mxu0 0
    %757 = vmatpush1.bf16.msra.mxu0 0
    %758 = vmatprep.subr.bf16.mxu0 0
    %759 = vmatpush1.bf16.msra.mxu0 0
    %760 = vmatprep.subr.bf16.mxu0 0
    %761 = vmatpush1.bf16.msra.mxu0 0
    %762 = vmatprep.subr.bf16.mxu0 0
    %763 = vmatpush1.bf16.msra.mxu0 0
    %764 = vmatprep.subr.bf16.mxu0 0
    %765 = vmatpush1.bf16.msra.mxu0 0
    %766 = vmatprep.subr.bf16.mxu0 0
    %767 = vmatpush1.bf16.msra.mxu0 0
    %768 = vmatprep.subr.bf16.mxu0 0
    %769 = vmatpush1.bf16.msra.mxu0 0
    %770 = vmatprep.subr.bf16.mxu0 0
    %771 = vmatpush1.bf16.msra.mxu0 0
    %772 = vmatprep.subr.bf16.mxu0 0
    %773 = vmatpush1.bf16.msra.mxu0 0
    %774 = vmatprep.subr.bf16.mxu0 0
    %775 = vmatpush1.bf16.msra.mxu0 0
    %776 = vmatprep.subr.bf16.mxu0 0
    %777 = vmatpush1.bf16.msra.mxu0 0
    %778 = vmatprep.mubr.bf16.mxu0 0
    %779 = vmatmul.mubr.bf16.gmra.mrb[0].mxu0 %v744
    %v780 = vpop.f32.mrb[0].mxu0
    %v781 = vadd.f32 %v742, %v780
    %v782 = vpop.f32.mrb[0].mxu0
    %v783 = vpop.f32.mrb[0].mxu0
    %v784 = vadd.f32 %v742, %v783
    %v785 = vpop.f32.mrb[0].mxu0
    %786 = vdwg.mxu0
    %v787 = vpack.c.bf16 %v784, %v781
    %v788 = vld [vmem:[#allocation2 + $0x138] sm:$0xff]
    %v789 = vld [vmem:[#allocation2 + $0x140] sm:$0xff]
    %v790 = vld [vmem:[#allocation2 + $0x148] sm:$0xff]
    %v791 = vld [vmem:[#allocation2 + $0x150] sm:$0xff]
    %v792 = vpack.c.bf16 %v789, %v788
    %v793 = vpack.c.bf16 %v791, %v790
    %795 = vrot.lane.b32.xlu0 %v787, 96
    %v796 = vpop.permute.xlu0 %795
    %v798 = vsel %vm130, %v787, 0
    %v801 = vsel %vm130, %v796, 0
    %803 = vmatprep.subr.bf16.mxu0 0
    %804 = vmatpush1.bf16.xpose.msra.mxu0 %v801
    %805 = vmatprep.subr.bf16.mxu0 0
    %806 = vmatpush1.bf16.xpose.msra.mxu0 0
    %807 = vmatprep.subr.bf16.mxu0 0
    %808 = vmatpush1.bf16.xpose.msra.mxu0 0
    %809 = vmatprep.subr.bf16.mxu0 0
    %810 = vmatpush1.bf16.xpose.msra.mxu0 0
    %811 = vmatprep.subr.bf16.mxu0 0
    %812 = vmatpush1.bf16.xpose.msra.mxu0 0
    %813 = vmatprep.subr.bf16.mxu0 0
    %814 = vmatpush1.bf16.xpose.msra.mxu0 0
    %815 = vmatprep.subr.bf16.mxu0 0
    %816 = vmatpush1.bf16.xpose.msra.mxu0 0
    %817 = vmatprep.subr.bf16.mxu0 0
    %818 = vmatpush1.bf16.xpose.msra.mxu0 0
    %819 = vmatprep.subr.bf16.mxu0 0
    %820 = vmatpush1.bf16.xpose.msra.mxu0 0
    %821 = vmatprep.subr.bf16.mxu0 0
    %822 = vmatpush1.bf16.xpose.msra.mxu0 0
    %823 = vmatprep.subr.bf16.mxu0 0
    %824 = vmatpush1.bf16.xpose.msra.mxu0 0
    %825 = vmatprep.subr.bf16.mxu0 0
    %826 = vmatpush1.bf16.xpose.msra.mxu0 0
    %827 = vmatprep.subr.bf16.mxu0 0
    %828 = vmatpush1.bf16.xpose.msra.mxu0 0
    %829 = vmatprep.subr.bf16.mxu0 0
    %830 = vmatpush1.bf16.xpose.msra.mxu0 0
    %831 = vmatprep.subr.bf16.mxu0 0
    %832 = vmatpush1.bf16.xpose.msra.mxu0 0
    %833 = vmatprep.subr.bf16.mxu0 0
    %834 = vmatpush1.bf16.xpose.msra.mxu0 0
    %835 = vmatprep.mubr.bf16.mxu0 0
    %836 = vmatmul.mubr.bf16.gmra.mrb[0].mxu0 %v798
    %v837 = vpop.f32.mrb[0].mxu0
    %v838 = vadd.f32 %v55, %v837
    %v839 = vpop.f32.mrb[0].mxu0
    %v840 = vpop.f32.mrb[0].mxu0
    %v841 = vadd.f32 %v56, %v840
    %v842 = vpop.f32.mrb[0].mxu0
    %843 = vdwg.mxu0
    %v844 = vsel %vm444, %v838, -inf
    %845 = vmax.xlane.f32.xlu0 %v844
    %v846 = vpop.xlane.xlu0 %845
    %v847 = vsel %vm444, %v841, -inf
    %848 = vmax.xlane.f32.xlu0 %v847
    %v849 = vpop.xlane.xlu0 %848
    %v850 = vsub.f32 %v838, %v846
    %v851 = vsub.f32 %v841, %v849
    %v852 = vmul.f32 %v850, 1.442695
    %v853 = vpow.pop %v852
    %v854 = vmul.f32 %v851, 1.442695
    %v855 = vpow.pop %v854
    %v856 = vsel %vm444, %v853, 0.0
    %857 = vadd.xlane.f32.xlu0 %v856
    %v858 = vpop.xlane.xlu0 %857
    %v859 = vsel %vm444, %v855, 0.0
    %860 = vadd.xlane.f32.xlu0 %v859
    %v861 = vpop.xlane.xlu0 %860
    %v862 = vrcp.pop %v858
    %v863 = vrcp.pop %v861
    %v864 = vmul.f32 %v853, %v862
    %v865 = vmul.f32 %v855, %v863
    %v866 = vpack.c.bf16 %v865, %v864
    %867 = vrot.lane.b32.xlu0 %v787, 64
    %v868 = vpop.permute.xlu0 %867
    %v871 = vsel %vm444, %v866, 0
    %873 = vmatprep.subr.bf16.mxu0 0
    %874 = vmatpush1.bf16.msra.mxu0 %v868
    %875 = vmatprep.subr.bf16.mxu0 0
    %876 = vmatpush1.bf16.msra.mxu0 0
    %877 = vmatprep.subr.bf16.mxu0 0
    %878 = vmatpush1.bf16.msra.mxu0 0
    %879 = vmatprep.subr.bf16.mxu0 0
    %880 = vmatpush1.bf16.msra.mxu0 0
    %881 = vmatprep.subr.bf16.mxu0 0
    %882 = vmatpush1.bf16.msra.mxu0 0
    %883 = vmatprep.subr.bf16.mxu0 0
    %884 = vmatpush1.bf16.msra.mxu0 0
    %885 = vmatprep.subr.bf16.mxu0 0
    %886 = vmatpush1.bf16.msra.mxu0 0
    %887 = vmatprep.subr.bf16.mxu0 0
    %888 = vmatpush1.bf16.msra.mxu0 0
    %889 = vmatprep.subr.bf16.mxu0 0
    %890 = vmatpush1.bf16.msra.mxu0 0
    %891 = vmatprep.subr.bf16.mxu0 0
    %892 = vmatpush1.bf16.msra.mxu0 0
    %893 = vmatprep.subr.bf16.mxu0 0
    %894 = vmatpush1.bf16.msra.mxu0 0
    %895 = vmatprep.subr.bf16.mxu0 0
    %896 = vmatpush1.bf16.msra.mxu0 0
    %897 = vmatprep.subr.bf16.mxu0 0
    %898 = vmatpush1.bf16.msra.mxu0 0
    %899 = vmatprep.subr.bf16.mxu0 0
    %900 = vmatpush1.bf16.msra.mxu0 0
    %901 = vmatprep.subr.bf16.mxu0 0
    %902 = vmatpush1.bf16.msra.mxu0 0
    %903 = vmatprep.subr.bf16.mxu0 0
    %904 = vmatpush1.bf16.msra.mxu0 0
    %905 = vmatprep.mubr.bf16.mxu0 0
    %906 = vmatmul.mubr.bf16.gmra.mrb[0].mxu0 %v871
    %v907 = vpop.f32.mrb[0].mxu0
    %v908 = vadd.f32 0.0, %v907
    %v909 = vpop.f32.mrb[0].mxu0
    %v910 = vpop.f32.mrb[0].mxu0
    %v911 = vadd.f32 0.0, %v910
    %v912 = vpop.f32.mrb[0].mxu0
    %913 = vdwg.mxu0
    %v914 = vpack.c.bf16 %v911, %v908
    %915 = vrot.lane.b32.xlu0 %v787, 120
    %v916 = vpop.permute.xlu0 %915
    %917 = vrot.lane.b32.xlu0 %v787, 88
    %v918 = vpop.permute.xlu0 %917
    %v920 = vsel %vm130, %v916, 0
    %v923 = vsel %vm130, %v918, 0
    %925 = vmatprep.subr.bf16.mxu0 0
    %926 = vmatpush1.bf16.xpose.msra.mxu0 %v923
    %927 = vmatprep.subr.bf16.mxu0 0
    %928 = vmatpush1.bf16.xpose.msra.mxu0 0
    %929 = vmatprep.subr.bf16.mxu0 0
    %930 = vmatpush1.bf16.xpose.msra.mxu0 0
    %931 = vmatprep.subr.bf16.mxu0 0
    %932 = vmatpush1.bf16.xpose.msra.mxu0 0
    %933 = vmatprep.subr.bf16.mxu0 0
    %934 = vmatpush1.bf16.xpose.msra.mxu0 0
    %935 = vmatprep.subr.bf16.mxu0 0
    %936 = vmatpush1.bf16.xpose.msra.mxu0 0
    %937 = vmatprep.subr.bf16.mxu0 0
    %938 = vmatpush1.bf16.xpose.msra.mxu0 0
    %939 = vmatprep.subr.bf16.mxu0 0
    %940 = vmatpush1.bf16.xpose.msra.mxu0 0
    %941 = vmatprep.subr.bf16.mxu0 0
    %942 = vmatpush1.bf16.xpose.msra.mxu0 0
    %943 = vmatprep.subr.bf16.mxu0 0
    %944 = vmatpush1.bf16.xpose.msra.mxu0 0
    %945 = vmatprep.subr.bf16.mxu0 0
    %946 = vmatpush1.bf16.xpose.msra.mxu0 0
    %947 = vmatprep.subr.bf16.mxu0 0
    %948 = vmatpush1.bf16.xpose.msra.mxu0 0
    %949 = vmatprep.subr.bf16.mxu0 0
    %950 = vmatpush1.bf16.xpose.msra.mxu0 0
    %951 = vmatprep.subr.bf16.mxu0 0
    %952 = vmatpush1.bf16.xpose.msra.mxu0 0
    %953 = vmatprep.subr.bf16.mxu0 0
    %954 = vmatpush1.bf16.xpose.msra.mxu0 0
    %955 = vmatprep.subr.bf16.mxu0 0
    %956 = vmatpush1.bf16.xpose.msra.mxu0 0
    %957 = vmatprep.mubr.bf16.mxu0 0
    %958 = vmatmul.mubr.bf16.gmra.mrb[0].mxu0 %v920
    %v959 = vpop.f32.mrb[0].mxu0
    %v960 = vadd.f32 %v55, %v959
    %v961 = vpop.f32.mrb[0].mxu0
    %v962 = vpop.f32.mrb[0].mxu0
    %v963 = vadd.f32 %v56, %v962
    %v964 = vpop.f32.mrb[0].mxu0
    %965 = vdwg.mxu0
    %v966 = vsel %vm444, %v960, -inf
    %967 = vmax.xlane.f32.xlu0 %v966
    %v968 = vpop.xlane.xlu0 %967
    %v969 = vsel %vm444, %v963, -inf
    %970 = vmax.xlane.f32.xlu0 %v969
    %v971 = vpop.xlane.xlu0 %970
    %v972 = vsub.f32 %v960, %v968
    %v973 = vsub.f32 %v963, %v971
    %v974 = vmul.f32 %v972, 1.442695
    %v975 = vpow.pop %v974
    %v976 = vmul.f32 %v973, 1.442695
    %v977 = vpow.pop %v976
    %v978 = vsel %vm444, %v975, 0.0
    %979 = vadd.xlane.f32.xlu0 %v978
    %v980 = vpop.xlane.xlu0 %979
    %v981 = vsel %vm444, %v977, 0.0
    %982 = vadd.xlane.f32.xlu0 %v981
    %v983 = vpop.xlane.xlu0 %982
    %v984 = vrcp.pop %v980
    %v985 = vrcp.pop %v983
    %v986 = vmul.f32 %v975, %v984
    %v987 = vmul.f32 %v977, %v985
    %v988 = vpack.c.bf16 %v987, %v986
    %989 = vrot.lane.b32.xlu0 %v787, 56
    %v990 = vpop.permute.xlu0 %989
    %v993 = vsel %vm444, %v988, 0
    %995 = vmatprep.subr.bf16.mxu0 0
    %996 = vmatpush1.bf16.msra.mxu0 %v990
    %997 = vmatprep.subr.bf16.mxu0 0
    %998 = vmatpush1.bf16.msra.mxu0 0
    %999 = vmatprep.subr.bf16.mxu0 0
    %1000 = vmatpush1.bf16.msra.mxu0 0
    %1001 = vmatprep.subr.bf16.mxu0 0
    %1002 = vmatpush1.bf16.msra.mxu0 0
    %1003 = vmatprep.subr.bf16.mxu0 0
    %1004 = vmatpush1.bf16.msra.mxu0 0
    %1005 = vmatprep.subr.bf16.mxu0 0
    %1006 = vmatpush1.bf16.msra.mxu0 0
    %1007 = vmatprep.subr.bf16.mxu0 0
    %1008 = vmatpush1.bf16.msra.mxu0 0
    %1009 = vmatprep.subr.bf16.mxu0 0
    %1010 = vmatpush1.bf16.msra.mxu0 0
    %1011 = vmatprep.subr.bf16.mxu0 0
    %1012 = vmatpush1.bf16.msra.mxu0 0
    %1013 = vmatprep.subr.bf16.mxu0 0
    %1014 = vmatpush1.bf16.msra.mxu0 0
    %1015 = vmatprep.subr.bf16.mxu0 0
    %1016 = vmatpush1.bf16.msra.mxu0 0
    %1017 = vmatprep.subr.bf16.mxu0 0
    %1018 = vmatpush1.bf16.msra.mxu0 0
    %1019 = vmatprep.subr.bf16.mxu0 0
    %1020 = vmatpush1.bf16.msra.mxu0 0
    %1021 = vmatprep.subr.bf16.mxu0 0
    %1022 = vmatpush1.bf16.msra.mxu0 0
    %1023 = vmatprep.subr.bf16.mxu0 0
    %1024 = vmatpush1.bf16.msra.mxu0 0
    %1025 = vmatprep.subr.bf16.mxu0 0
    %1026 = vmatpush1.bf16.msra.mxu0 0
    %1027 = vmatprep.mubr.bf16.mxu0 0
    %1028 = vmatmul.mubr.bf16.gmra.mrb[0].mxu0 %v993
    %v1029 = vpop.f32.mrb[0].mxu0
    %v1030 = vadd.f32 0.0, %v1029
    %v1031 = vpop.f32.mrb[0].mxu0
    %v1032 = vpop.f32.mrb[0].mxu0
    %v1033 = vadd.f32 0.0, %v1032
    %v1034 = vpop.f32.mrb[0].mxu0
    %1035 = vdwg.mxu0
    %v1036 = vpack.c.bf16 %v1033, %v1030
    %v1038 = vrot.slane %v792, 4
    %v1040 = vsel %vm130, %v1036, 0
    %v1043 = vsel %vm134, %v1038, 0
    %1045 = vmatprep.subr.bf16.mxu0 0
    %1046 = vmatpush1.bf16.msra.mxu0 %v1043
    %1047 = vmatprep.subr.bf16.mxu0 0
    %1048 = vmatpush1.bf16.msra.mxu0 0
    %1049 = vmatprep.subr.bf16.mxu0 0
    %1050 = vmatpush1.bf16.msra.mxu0 0
    %1051 = vmatprep.subr.bf16.mxu0 0
    %1052 = vmatpush1.bf16.msra.mxu0 0
    %1053 = vmatprep.subr.bf16.mxu0 0
    %1054 = vmatpush1.bf16.msra.mxu0 0
    %1055 = vmatprep.subr.bf16.mxu0 0
    %1056 = vmatpush1.bf16.msra.mxu0 0
    %1057 = vmatprep.subr.bf16.mxu0 0
    %1058 = vmatpush1.bf16.msra.mxu0 0
    %1059 = vmatprep.subr.bf16.mxu0 0
    %1060 = vmatpush1.bf16.msra.mxu0 0
    %1061 = vmatprep.subr.bf16.mxu0 0
    %1062 = vmatpush1.bf16.msra.mxu0 0
    %1063 = vmatprep.subr.bf16.mxu0 0
    %1064 = vmatpush1.bf16.msra.mxu0 0
    %1065 = vmatprep.subr.bf16.mxu0 0
    %1066 = vmatpush1.bf16.msra.mxu0 0
    %1067 = vmatprep.subr.bf16.mxu0 0
    %1068 = vmatpush1.bf16.msra.mxu0 0
    %1069 = vmatprep.subr.bf16.mxu0 0
    %1070 = vmatpush1.bf16.msra.mxu0 0
    %1071 = vmatprep.subr.bf16.mxu0 0
    %1072 = vmatpush1.bf16.msra.mxu0 0
    %1073 = vmatprep.subr.bf16.mxu0 0
    %1074 = vmatpush1.bf16.msra.mxu0 0
    %1075 = vmatprep.subr.bf16.mxu0 0
    %1076 = vmatpush1.bf16.msra.mxu0 0
    %1077 = vmatprep.mubr.bf16.mxu0 0
    %1078 = vmatmul.mubr.bf16.gmra.mrb[0].mxu0 %v1040
    %v1079 = vpop.f32.mrb[0].mxu0
    %v1080 = vadd.f32 0.0, %v1079
    %v1081 = vpop.f32.mrb[0].mxu0
    %v1082 = vpop.f32.mrb[0].mxu0
    %v1083 = vadd.f32 0.0, %v1082
    %v1084 = vpop.f32.mrb[0].mxu0
    %1085 = vdwg.mxu0
    %v1087 = vsel %vm130, %v914, 0
    %v1090 = vsel %vm134, %v792, 0
    %1092 = vmatprep.subr.bf16.mxu0 0
    %1093 = vmatpush1.bf16.msra.mxu0 %v1090
    %1094 = vmatprep.subr.bf16.mxu0 0
    %1095 = vmatpush1.bf16.msra.mxu0 0
    %1096 = vmatprep.subr.bf16.mxu0 0
    %1097 = vmatpush1.bf16.msra.mxu0 0
    %1098 = vmatprep.subr.bf16.mxu0 0
    %1099 = vmatpush1.bf16.msra.mxu0 0
    %1100 = vmatprep.subr.bf16.mxu0 0
    %1101 = vmatpush1.bf16.msra.mxu0 0
    %1102 = vmatprep.subr.bf16.mxu0 0
    %1103 = vmatpush1.bf16.msra.mxu0 0
    %1104 = vmatprep.subr.bf16.mxu0 0
    %1105 = vmatpush1.bf16.msra.mxu0 0
    %1106 = vmatprep.subr.bf16.mxu0 0
    %1107 = vmatpush1.bf16.msra.mxu0 0
    %1108 = vmatprep.subr.bf16.mxu0 0
    %1109 = vmatpush1.bf16.msra.mxu0 0
    %1110 = vmatprep.subr.bf16.mxu0 0
    %1111 = vmatpush1.bf16.msra.mxu0 0
    %1112 = vmatprep.subr.bf16.mxu0 0
    %1113 = vmatpush1.bf16.msra.mxu0 0
    %1114 = vmatprep.subr.bf16.mxu0 0
    %1115 = vmatpush1.bf16.msra.mxu0 0
    %1116 = vmatprep.subr.bf16.mxu0 0
    %1117 = vmatpush1.bf16.msra.mxu0 0
    %1118 = vmatprep.subr.bf16.mxu0 0
    %1119 = vmatpush1.bf16.msra.mxu0 0
    %1120 = vmatprep.subr.bf16.mxu0 0
    %1121 = vmatpush1.bf16.msra.mxu0 0
    %1122 = vmatprep.subr.bf16.mxu0 0
    %1123 = vmatpush1.bf16.msra.mxu0 0
    %1124 = vmatprep.mubr.bf16.mxu0 0
    %1125 = vmatmul.mubr.bf16.gmra.mrb[0].mxu0 %v1087
    %v1126 = vpop.f32.mrb[0].mxu0
    %v1127 = vadd.f32 %v1080, %v1126
    %v1128 = vpop.f32.mrb[0].mxu0
    %v1129 = vpop.f32.mrb[0].mxu0
    %v1130 = vadd.f32 %v1083, %v1129
    %v1131 = vpop.f32.mrb[0].mxu0
    %1132 = vdwg.mxu0
    %1133 = vrot.lane.b32.xlu0 %v787, 112
    %v1134 = vpop.permute.xlu0 %1133
    %1135 = vrot.lane.b32.xlu0 %v787, 80
    %v1136 = vpop.permute.xlu0 %1135
    %v1138 = vsel %vm130, %v1134, 0
    %v1141 = vsel %vm130, %v1136, 0
    %1143 = vmatprep.subr.bf16.mxu0 0
    %1144 = vmatpush1.bf16.xpose.msra.mxu0 %v1141
    %1145 = vmatprep.subr.bf16.mxu0 0
    %1146 = vmatpush1.bf16.xpose.msra.mxu0 0
    %1147 = vmatprep.subr.bf16.mxu0 0
    %1148 = vmatpush1.bf16.xpose.msra.mxu0 0
    %1149 = vmatprep.subr.bf16.mxu0 0
    %1150 = vmatpush1.bf16.xpose.msra.mxu0 0
    %1151 = vmatprep.subr.bf16.mxu0 0
    %1152 = vmatpush1.bf16.xpose.msra.mxu0 0
    %1153 = vmatprep.subr.bf16.mxu0 0
    %1154 = vmatpush1.bf16.xpose.msra.mxu0 0
    %1155 = vmatprep.subr.bf16.mxu0 0
    %1156 = vmatpush1.bf16.xpose.msra.mxu0 0
    %1157 = vmatprep.subr.bf16.mxu0 0
    %1158 = vmatpush1.bf16.xpose.msra.mxu0 0
    %1159 = vmatprep.subr.bf16.mxu0 0
    %1160 = vmatpush1.bf16.xpose.msra.mxu0 0
    %1161 = vmatprep.subr.bf16.mxu0 0
    %1162 = vmatpush1.bf16.xpose.msra.mxu0 0
    %1163 = vmatprep.subr.bf16.mxu0 0
    %1164 = vmatpush1.bf16.xpose.msra.mxu0 0
    %1165 = vmatprep.subr.bf16.mxu0 0
    %1166 = vmatpush1.bf16.xpose.msra.mxu0 0
    %1167 = vmatprep.subr.bf16.mxu0 0
    %1168 = vmatpush1.bf16.xpose.msra.mxu0 0
    %1169 = vmatprep.subr.bf16.mxu0 0
    %1170 = vmatpush1.bf16.xpose.msra.mxu0 0
    %1171 = vmatprep.subr.bf16.mxu0 0
    %1172 = vmatpush1.bf16.xpose.msra.mxu0 0
    %1173 = vmatprep.subr.bf16.mxu0 0
    %1174 = vmatpush1.bf16.xpose.msra.mxu0 0
    %1175 = vmatprep.mubr.bf16.mxu0 0
    %1176 = vmatmul.mubr.bf16.gmra.mrb[0].mxu0 %v1138
    %v1177 = vpop.f32.mrb[0].mxu0
    %v1178 = vadd.f32 %v55, %v1177
    %v1179 = vpop.f32.mrb[0].mxu0
    %v1180 = vpop.f32.mrb[0].mxu0
    %v1181 = vadd.f32 %v56, %v1180
    %v1182 = vpop.f32.mrb[0].mxu0
    %1183 = vdwg.mxu0
    %v1184 = vsel %vm444, %v1178, -inf
    %1185 = vmax.xlane.f32.xlu0 %v1184
    %v1186 = vpop.xlane.xlu0 %1185
    %v1187 = vsel %vm444, %v1181, -inf
    %1188 = vmax.xlane.f32.xlu0 %v1187
    %v1189 = vpop.xlane.xlu0 %1188
    %v1190 = vsub.f32 %v1178, %v1186
    %v1191 = vsub.f32 %v1181, %v1189
    %v1192 = vmul.f32 %v1190, 1.442695
    %v1193 = vpow.pop %v1192
    %v1194 = vmul.f32 %v1191, 1.442695
    %v1195 = vpow.pop %v1194
    %v1196 = vsel %vm444, %v1193, 0.0
    %1197 = vadd.xlane.f32.xlu0 %v1196
    %v1198 = vpop.xlane.xlu0 %1197
    %v1199 = vsel %vm444, %v1195, 0.0
    %1200 = vadd.xlane.f32.xlu0 %v1199
    %v1201 = vpop.xlane.xlu0 %1200
    %v1202 = vrcp.pop %v1198
    %v1203 = vrcp.pop %v1201
    %v1204 = vmul.f32 %v1193, %v1202
    %v1205 = vmul.f32 %v1195, %v1203
    %v1206 = vpack.c.bf16 %v1205, %v1204
    %1207 = vrot.lane.b32.xlu0 %v787, 48
    %v1208 = vpop.permute.xlu0 %1207
    %v1211 = vsel %vm444, %v1206, 0
    %1213 = vmatprep.subr.bf16.mxu0 0
    %1214 = vmatpush1.bf16.msra.mxu0 %v1208
    %1215 = vmatprep.subr.bf16.mxu0 0
    %1216 = vmatpush1.bf16.msra.mxu0 0
    %1217 = vmatprep.subr.bf16.mxu0 0
    %1218 = vmatpush1.bf16.msra.mxu0 0
    %1219 = vmatprep.subr.bf16.mxu0 0
    %1220 = vmatpush1.bf16.msra.mxu0 0
    %1221 = vmatprep.subr.bf16.mxu0 0
    %1222 = vmatpush1.bf16.msra.mxu0 0
    %1223 = vmatprep.subr.bf16.mxu0 0
    %1224 = vmatpush1.bf16.msra.mxu0 0
    %1225 = vmatprep.subr.bf16.mxu0 0
    %1226 = vmatpush1.bf16.msra.mxu0 0
    %1227 = vmatprep.subr.bf16.mxu0 0
    %1228 = vmatpush1.bf16.msra.mxu0 0
    %1229 = vmatprep.subr.bf16.mxu0 0
    %1230 = vmatpush1.bf16.msra.mxu0 0
    %1231 = vmatprep.subr.bf16.mxu0 0
    %1232 = vmatpush1.bf16.msra.mxu0 0
    %1233 = vmatprep.subr.bf16.mxu0 0
    %1234 = vmatpush1.bf16.msra.mxu0 0
    %1235 = vmatprep.subr.bf16.mxu0 0
    %1236 = vmatpush1.bf16.msra.mxu0 0
    %1237 = vmatprep.subr.bf16.mxu0 0
    %1238 = vmatpush1.bf16.msra.mxu0 0
    %1239 = vmatprep.subr.bf16.mxu0 0
    %1240 = vmatpush1.bf16.msra.mxu0 0
    %1241 = vmatprep.subr.bf16.mxu0 0
    %1242 = vmatpush1.bf16.msra.mxu0 0
    %1243 = vmatprep.subr.bf16.mxu0 0
    %1244 = vmatpush1.bf16.msra.mxu0 0
    %1245 = vmatprep.mubr.bf16.mxu0 0
    %1246 = vmatmul.mubr.bf16.gmra.mrb[0].mxu0 %v1211
    %v1247 = vpop.f32.mrb[0].mxu0
    %v1248 = vadd.f32 0.0, %v1247
    %v1249 = vpop.f32.mrb[0].mxu0
    %v1250 = vpop.f32.mrb[0].mxu0
    %v1251 = vadd.f32 0.0, %v1250
    %v1252 = vpop.f32.mrb[0].mxu0
    %1253 = vdwg.mxu0
    %v1254 = vpack.c.bf16 %v1251, %v1248
    %v1256 = vsel %vm130, %v1254, 0
    %v1259 = vsel %vm134, %v793, 0
    %1261 = vmatprep.subr.bf16.mxu0 0
    %1262 = vmatpush1.bf16.msra.mxu0 %v1259
    %1263 = vmatprep.subr.bf16.mxu0 0
    %1264 = vmatpush1.bf16.msra.mxu0 0
    %1265 = vmatprep.subr.bf16.mxu0 0
    %1266 = vmatpush1.bf16.msra.mxu0 0
    %1267 = vmatprep.subr.bf16.mxu0 0
    %1268 = vmatpush1.bf16.msra.mxu0 0
    %1269 = vmatprep.subr.bf16.mxu0 0
    %1270 = vmatpush1.bf16.msra.mxu0 0
    %1271 = vmatprep.subr.bf16.mxu0 0
    %1272 = vmatpush1.bf16.msra.mxu0 0
    %1273 = vmatprep.subr.bf16.mxu0 0
    %1274 = vmatpush1.bf16.msra.mxu0 0
    %1275 = vmatprep.subr.bf16.mxu0 0
    %1276 = vmatpush1.bf16.msra.mxu0 0
    %1277 = vmatprep.subr.bf16.mxu0 0
    %1278 = vmatpush1.bf16.msra.mxu0 0
    %1279 = vmatprep.subr.bf16.mxu0 0
    %1280 = vmatpush1.bf16.msra.mxu0 0
    %1281 = vmatprep.subr.bf16.mxu0 0
    %1282 = vmatpush1.bf16.msra.mxu0 0
    %1283 = vmatprep.subr.bf16.mxu0 0
    %1284 = vmatpush1.bf16.msra.mxu0 0
    %1285 = vmatprep.subr.bf16.mxu0 0
    %1286 = vmatpush1.bf16.msra.mxu0 0
    %1287 = vmatprep.subr.bf16.mxu0 0
    %1288 = vmatpush1.bf16.msra.mxu0 0
    %1289 = vmatprep.subr.bf16.mxu0 0
    %1290 = vmatpush1.bf16.msra.mxu0 0
    %1291 = vmatprep.subr.bf16.mxu0 0
    %1292 = vmatpush1.bf16.msra.mxu0 0
    %1293 = vmatprep.mubr.bf16.mxu0 0
    %1294 = vmatmul.mubr.bf16.gmra.mrb[0].mxu0 %v1256
    %v1295 = vpop.f32.mrb[0].mxu0
    %v1296 = vadd.f32 0.0, %v1295
    %v1297 = vpop.f32.mrb[0].mxu0
    %v1298 = vpop.f32.mrb[0].mxu0
    %v1299 = vadd.f32 0.0, %v1298
    %v1300 = vpop.f32.mrb[0].mxu0
    %1301 = vdwg.mxu0
    %v1302 = vadd.f32 %v1127, %v1296
    %v1303 = vadd.f32 %v1130, %v1299
    %1304 = vrot.lane.b32.xlu0 %v787, 104
    %v1305 = vpop.permute.xlu0 %1304
    %1306 = vrot.lane.b32.xlu0 %v787, 72
    %v1307 = vpop.permute.xlu0 %1306
    %v1309 = vsel %vm130, %v1305, 0
    %v1312 = vsel %vm130, %v1307, 0
    %1314 = vmatprep.subr.bf16.mxu0 0
    %1315 = vmatpush1.bf16.xpose.msra.mxu0 %v1312
    %1316 = vmatprep.subr.bf16.mxu0 0
    %1317 = vmatpush1.bf16.xpose.msra.mxu0 0
    %1318 = vmatprep.subr.bf16.mxu0 0
    %1319 = vmatpush1.bf16.xpose.msra.mxu0 0
    %1320 = vmatprep.subr.bf16.mxu0 0
    %1321 = vmatpush1.bf16.xpose.msra.mxu0 0
    %1322 = vmatprep.subr.bf16.mxu0 0
    %1323 = vmatpush1.bf16.xpose.msra.mxu0 0
    %1324 = vmatprep.subr.bf16.mxu0 0
    %1325 = vmatpush1.bf16.xpose.msra.mxu0 0
    %1326 = vmatprep.subr.bf16.mxu0 0
    %1327 = vmatpush1.bf16.xpose.msra.mxu0 0
    %1328 = vmatprep.subr.bf16.mxu0 0
    %1329 = vmatpush1.bf16.xpose.msra.mxu0 0
    %1330 = vmatprep.subr.bf16.mxu0 0
    %1331 = vmatpush1.bf16.xpose.msra.mxu0 0
    %1332 = vmatprep.subr.bf16.mxu0 0
    %1333 = vmatpush1.bf16.xpose.msra.mxu0 0
    %1334 = vmatprep.subr.bf16.mxu0 0
    %1335 = vmatpush1.bf16.xpose.msra.mxu0 0
    %1336 = vmatprep.subr.bf16.mxu0 0
    %1337 = vmatpush1.bf16.xpose.msra.mxu0 0
    %1338 = vmatprep.subr.bf16.mxu0 0
    %1339 = vmatpush1.bf16.xpose.msra.mxu0 0
    %1340 = vmatprep.subr.bf16.mxu0 0
    %1341 = vmatpush1.bf16.xpose.msra.mxu0 0
    %1342 = vmatprep.subr.bf16.mxu0 0
    %1343 = vmatpush1.bf16.xpose.msra.mxu0 0
    %1344 = vmatprep.subr.bf16.mxu0 0
    %1345 = vmatpush1.bf16.xpose.msra.mxu0 0
    %1346 = vmatprep.mubr.bf16.mxu0 0
    %1347 = vmatmul.mubr.bf16.gmra.mrb[0].mxu0 %v1309
    %v1348 = vpop.f32.mrb[0].mxu0
    %v1349 = vadd.f32 %v55, %v1348
    %v1350 = vpop.f32.mrb[0].mxu0
    %v1351 = vpop.f32.mrb[0].mxu0
    %v1352 = vadd.f32 %v56, %v1351
    %v1353 = vpop.f32.mrb[0].mxu0
    %1354 = vdwg.mxu0
    %v1355 = vsel %vm444, %v1349, -inf
    %1356 = vmax.xlane.f32.xlu0 %v1355
    %v1357 = vpop.xlane.xlu0 %1356
    %v1358 = vsel %vm444, %v1352, -inf
    %1359 = vmax.xlane.f32.xlu0 %v1358
    %v1360 = vpop.xlane.xlu0 %1359
    %v1361 = vsub.f32 %v1349, %v1357
    %v1362 = vsub.f32 %v1352, %v1360
    %v1363 = vmul.f32 %v1361, 1.442695
    %v1364 = vpow.pop %v1363
    %v1365 = vmul.f32 %v1362, 1.442695
    %v1366 = vpow.pop %v1365
    %v1367 = vsel %vm444, %v1364, 0.0
    %1368 = vadd.xlane.f32.xlu0 %v1367
    %v1369 = vpop.xlane.xlu0 %1368
    %v1370 = vsel %vm444, %v1366, 0.0
    %1371 = vadd.xlane.f32.xlu0 %v1370
    %v1372 = vpop.xlane.xlu0 %1371
    %v1373 = vrcp.pop %v1369
    %v1374 = vrcp.pop %v1372
    %v1375 = vmul.f32 %v1364, %v1373
    %v1376 = vmul.f32 %v1366, %v1374
    %v1377 = vpack.c.bf16 %v1376, %v1375
    %1378 = vrot.lane.b32.xlu0 %v787, 40
    %v1379 = vpop.permute.xlu0 %1378
    %v1382 = vsel %vm444, %v1377, 0
    %1384 = vmatprep.subr.bf16.mxu0 0
    %1385 = vmatpush1.bf16.msra.mxu0 %v1379
    %1386 = vmatprep.subr.bf16.mxu0 0
    %1387 = vmatpush1.bf16.msra.mxu0 0
    %1388 = vmatprep.subr.bf16.mxu0 0
    %1389 = vmatpush1.bf16.msra.mxu0 0
    %1390 = vmatprep.subr.bf16.mxu0 0
    %1391 = vmatpush1.bf16.msra.mxu0 0
    %1392 = vmatprep.subr.bf16.mxu0 0
    %1393 = vmatpush1.bf16.msra.mxu0 0
    %1394 = vmatprep.subr.bf16.mxu0 0
    %1395 = vmatpush1.bf16.msra.mxu0 0
    %1396 = vmatprep.subr.bf16.mxu0 0
    %1397 = vmatpush1.bf16.msra.mxu0 0
    %1398 = vmatprep.subr.bf16.mxu0 0
    %1399 = vmatpush1.bf16.msra.mxu0 0
    %1400 = vmatprep.subr.bf16.mxu0 0
    %1401 = vmatpush1.bf16.msra.mxu0 0
    %1402 = vmatprep.subr.bf16.mxu0 0
    %1403 = vmatpush1.bf16.msra.mxu0 0
    %1404 = vmatprep.subr.bf16.mxu0 0
    %1405 = vmatpush1.bf16.msra.mxu0 0
    %1406 = vmatprep.subr.bf16.mxu0 0
    %1407 = vmatpush1.bf16.msra.mxu0 0
    %1408 = vmatprep.subr.bf16.mxu0 0
    %1409 = vmatpush1.bf16.msra.mxu0 0
    %1410 = vmatprep.subr.bf16.mxu0 0
    %1411 = vmatpush1.bf16.msra.mxu0 0
    %1412 = vmatprep.subr.bf16.mxu0 0
    %1413 = vmatpush1.bf16.msra.mxu0 0
    %1414 = vmatprep.subr.bf16.mxu0 0
    %1415 = vmatpush1.bf16.msra.mxu0 0
    %1416 = vmatprep.mubr.bf16.mxu0 0
    %1417 = vmatmul.mubr.bf16.gmra.mrb[0].mxu0 %v1382
    %v1418 = vpop.f32.mrb[0].mxu0
    %v1419 = vadd.f32 0.0, %v1418
    %v1420 = vpop.f32.mrb[0].mxu0
    %v1421 = vpop.f32.mrb[0].mxu0
    %v1422 = vadd.f32 0.0, %v1421
    %v1423 = vpop.f32.mrb[0].mxu0
    %1424 = vdwg.mxu0
    %v1425 = vpack.c.bf16 %v1422, %v1419
    %v1427 = vrot.slane %v793, 4
    %v1429 = vsel %vm130, %v1425, 0
    %v1432 = vsel %vm134, %v1427, 0
    %1434 = vmatprep.subr.bf16.mxu0 0
    %1435 = vmatpush1.bf16.msra.mxu0 %v1432
    %1436 = vmatprep.subr.bf16.mxu0 0
    %1437 = vmatpush1.bf16.msra.mxu0 0
    %1438 = vmatprep.subr.bf16.mxu0 0
    %1439 = vmatpush1.bf16.msra.mxu0 0
    %1440 = vmatprep.subr.bf16.mxu0 0
    %1441 = vmatpush1.bf16.msra.mxu0 0
    %1442 = vmatprep.subr.bf16.mxu0 0
    %1443 = vmatpush1.bf16.msra.mxu0 0
    %1444 = vmatprep.subr.bf16.mxu0 0
    %1445 = vmatpush1.bf16.msra.mxu0 0
    %1446 = vmatprep.subr.bf16.mxu0 0
    %1447 = vmatpush1.bf16.msra.mxu0 0
    %1448 = vmatprep.subr.bf16.mxu0 0
    %1449 = vmatpush1.bf16.msra.mxu0 0
    %1450 = vmatprep.subr.bf16.mxu0 0
    %1451 = vmatpush1.bf16.msra.mxu0 0
    %1452 = vmatprep.subr.bf16.mxu0 0
    %1453 = vmatpush1.bf16.msra.mxu0 0
    %1454 = vmatprep.subr.bf16.mxu0 0
    %1455 = vmatpush1.bf16.msra.mxu0 0
    %1456 = vmatprep.subr.bf16.mxu0 0
    %1457 = vmatpush1.bf16.msra.mxu0 0
    %1458 = vmatprep.subr.bf16.mxu0 0
    %1459 = vmatpush1.bf16.msra.mxu0 0
    %1460 = vmatprep.subr.bf16.mxu0 0
    %1461 = vmatpush1.bf16.msra.mxu0 0
    %1462 = vmatprep.subr.bf16.mxu0 0
    %1463 = vmatpush1.bf16.msra.mxu0 0
    %1464 = vmatprep.subr.bf16.mxu0 0
    %1465 = vmatpush1.bf16.msra.mxu0 0
    %1466 = vmatprep.mubr.bf16.mxu0 0
    %1467 = vmatmul.mubr.bf16.gmra.mrb[0].mxu0 %v1429
    %v1468 = vpop.f32.mrb[0].mxu0
    %v1469 = vadd.f32 0.0, %v1468
    %v1470 = vpop.f32.mrb[0].mxu0
    %v1471 = vpop.f32.mrb[0].mxu0
    %v1472 = vadd.f32 0.0, %v1471
    %v1473 = vpop.f32.mrb[0].mxu0
    %1474 = vdwg.mxu0
    %v1475 = vadd.f32 %v1302, %v1469
    %v1476 = vadd.f32 %v1303, %v1472
    %v1477 = vld [vmem:[#allocation2 + $0x158] sm:$0x1]
    %v1478 = vlaneseq
    %v1479 = vshrl.u32 %v1478, 7
    %v1480 = vsub.s32 0, %v1479
    %v1481 = vrot.slane %v1477, %v1480
    %v1482 = vadd.f32 %v1475, %v1481
    %v1483 = vadd.f32 %v1476, %v1481
    %v1484 = vadd.f32 %v1482, %v496
    %v1485 = vadd.f32 %v1483, %v497
    %v1486 = vld [vmem:[#allocation2 + $0x160] sm:$0x1]
    %v1487 = vlaneseq
    %v1488 = vshrl.u32 %v1487, 7
    %v1489 = vsub.s32 0, %v1488
    %v1490 = vrot.slane %v1486, %v1489
    %v1491 = vmul.f32 %v1484, %v1490
    %v1492 = vmul.f32 %v1485, %v1490
    %v1493 = vld [vmem:[#allocation2 + $0x168] sm:$0x1]
    %v1494 = vlaneseq
    %v1495 = vshrl.u32 %v1494, 7
    %v1496 = vsub.s32 0, %v1495
    %v1497 = vrot.slane %v1493, %v1496
    %v1498 = vadd.f32 %v1491, %v1497
    %v1499 = vadd.f32 %v1492, %v1497
    %v1500 = vadd.f32 %v730, %v1498
    %v1501 = vadd.f32 %v731, %v1499
    %v1502 = vld [vmem:[#allocation2 + $0x170] sm:$0xff]
    %v1503 = vld [vmem:[#allocation2 + $0x178] sm:$0xff]
    %v1504 = vld [vmem:[#allocation2 + $0x180] sm:$0xff]
    %v1505 = vld [vmem:[#allocation2 + $0x188] sm:$0xff]
    %v1506 = vpack.c.bf16 %v1503, %v1502
    %v1507 = vpack.c.bf16 %v1505, %v1504
    %v1508 = vpack.c.bf16 %v1501, %v1500
    %v1509 = vld [vmem:[#allocation2 + $0x190] sm:$0x1]
    %v1510 = vlaneseq
    %v1511 = vshrl.u32 %v1510, 7
    %v1512 = vsub.s32 0, %v1511
    %v1513 = vrot.slane %v1509, %v1512
    %v1515 = vsel %vm193, %v1508, 0
    %1517 = vmatprep.subr.bf16.mxu0 0
    %1518 = vmatpush1.bf16.msra.mxu0 %v1506
    %1519 = vmatprep.subr.bf16.mxu0 0
    %1520 = vmatpush1.bf16.msra.mxu0 %v1507
    %1521 = vmatprep.subr.bf16.mxu0 0
    %1522 = vmatpush1.bf16.msra.mxu0 0
    %1523 = vmatprep.subr.bf16.mxu0 0
    %1524 = vmatpush1.bf16.msra.mxu0 0
    %1525 = vmatprep.subr.bf16.mxu0 0
    %1526 = vmatpush1.bf16.msra.mxu0 0
    %1527 = vmatprep.subr.bf16.mxu0 0
    %1528 = vmatpush1.bf16.msra.mxu0 0
    %1529 = vmatprep.subr.bf16.mxu0 0
    %1530 = vmatpush1.bf16.msra.mxu0 0
    %1531 = vmatprep.subr.bf16.mxu0 0
    %1532 = vmatpush1.bf16.msra.mxu0 0
    %1533 = vmatprep.subr.bf16.mxu0 0
    %1534 = vmatpush1.bf16.msra.mxu0 0
    %1535 = vmatprep.subr.bf16.mxu0 0
    %1536 = vmatpush1.bf16.msra.mxu0 0
    %1537 = vmatprep.subr.bf16.mxu0 0
    %1538 = vmatpush1.bf16.msra.mxu0 0
    %1539 = vmatprep.subr.bf16.mxu0 0
    %1540 = vmatpush1.bf16.msra.mxu0 0
    %1541 = vmatprep.subr.bf16.mxu0 0
    %1542 = vmatpush1.bf16.msra.mxu0 0
    %1543 = vmatprep.subr.bf16.mxu0 0
    %1544 = vmatpush1.bf16.msra.mxu0 0
    %1545 = vmatprep.subr.bf16.mxu0 0
    %1546 = vmatpush1.bf16.msra.mxu0 0
    %1547 = vmatprep.subr.bf16.mxu0 0
    %1548 = vmatpush1.bf16.msra.mxu0 0
    %1549 = vmatprep.mubr.bf16.mxu0 0
    %1550 = vmatmul.mubr.bf16.gmra.mrb[0].mxu0 %v1515
    %v1551 = vpop.f32.mrb[0].mxu0
    %v1552 = vadd.f32 %v1513, %v1551
    %v1553 = vpop.f32.mrb[0].mxu0
    %v1554 = vpop.f32.mrb[0].mxu0
    %v1555 = vadd.f32 %v1513, %v1554
    %v1556 = vpop.f32.mrb[0].mxu0
    %1557 = vdwg.mxu0
    %v1558 = vmax.f32 %v1552, 0.0
    %v1559 = vmax.f32 %v1555, 0.0
    %v1560 = vld [vmem:[#allocation2 + $0x198] sm:$0xff]
    %v1561 = vld [vmem:[#allocation2 + $0x1a0] sm:$0xff]
    %v1562 = vld [vmem:[#allocation2 + $0x1a8] sm:$0xff]
    %v1563 = vld [vmem:[#allocation2 + $0x1b0] sm:$0xff]
    %v1564 = vld [vmem:[#allocation2 + $0x1b8] sm:$0xff]
    %v1565 = vld [vmem:[#allocation2 + $0x1c0] sm:$0xff]
    %v1566 = vld [vmem:[#allocation2 + $0x1c8] sm:$0xff]
    %v1567 = vld [vmem:[#allocation2 + $0x1d0] sm:$0xff]
    %v1568 = vpack.c.bf16 %v1561, %v1560
    %v1569 = vpack.c.bf16 %v1563, %v1562
    %v1570 = vpack.c.bf16 %v1565, %v1564
    %v1571 = vpack.c.bf16 %v1567, %v1566
    %v1572 = vpack.c.bf16 %v1559, %v1558
    %vm1573 = vcmask 523264
    %v1575 = vsel %vm1573, %v1572, 0
    %1577 = vmatprep.subr.bf16.mxu0 0
    %1578 = vmatpush1.bf16.msra.mxu0 %v1568
    %1579 = vmatprep.subr.bf16.mxu0 0
    %1580 = vmatpush1.bf16.msra.mxu0 %v1569
    %1581 = vmatprep.subr.bf16.mxu0 0
    %1582 = vmatpush1.bf16.msra.mxu0 %v1570
    %1583 = vmatprep.subr.bf16.mxu0 0
    %1584 = vmatpush1.bf16.msra.mxu0 %v1571
    %1585 = vmatprep.subr.bf16.mxu0 0
    %1586 = vmatpush1.bf16.msra.mxu0 0
    %1587 = vmatprep.subr.bf16.mxu0 0
    %1588 = vmatpush1.bf16.msra.mxu0 0
    %1589 = vmatprep.subr.bf16.mxu0 0
    %1590 = vmatpush1.bf16.msra.mxu0 0
    %1591 = vmatprep.subr.bf16.mxu0 0
    %1592 = vmatpush1.bf16.msra.mxu0 0
    %1593 = vmatprep.subr.bf16.mxu0 0
    %1594 = vmatpush1.bf16.msra.mxu0 0
    %1595 = vmatprep.subr.bf16.mxu0 0
    %1596 = vmatpush1.bf16.msra.mxu0 0
    %1597 = vmatprep.subr.bf16.mxu0 0
    %1598 = vmatpush1.bf16.msra.mxu0 0
    %1599 = vmatprep.subr.bf16.mxu0 0
    %1600 = vmatpush1.bf16.msra.mxu0 0
    %1601 = vmatprep.subr.bf16.mxu0 0
    %1602 = vmatpush1.bf16.msra.mxu0 0
    %1603 = vmatprep.subr.bf16.mxu0 0
    %1604 = vmatpush1.bf16.msra.mxu0 0
    %1605 = vmatprep.subr.bf16.mxu0 0
    %1606 = vmatpush1.bf16.msra.mxu0 0
    %1607 = vmatprep.subr.bf16.mxu0 0
    %1608 = vmatpush1.bf16.msra.mxu0 0
    %1609 = vmatprep.mubr.bf16.mxu0 0
    %1610 = vmatmul.mubr.bf16.gmra.mrb[0].mxu0 %v1575
    %v1611 = vpop.f32.mrb[0].mxu0
    %v1612 = vadd.f32 0.0, %v1611
    %v1613 = vpop.f32.mrb[0].mxu0
    %v1614 = vpop.f32.mrb[0].mxu0
    %v1615 = vadd.f32 0.0, %v1614
    %v1616 = vpop.f32.mrb[0].mxu0
    %1617 = vdwg.mxu0
    %v1618 = vadd.f32 %v1500, %v1612
    %v1619 = vadd.f32 %v1501, %v1615
    %v1620 = vld [vmem:[#allocation2 + $0x1d8] sm:$0x1]
    %v1621 = vlaneseq
    %v1622 = vshrl.u32 %v1621, 7
    %v1623 = vsub.s32 0, %v1622
    %v1624 = vrot.slane %v1620, %v1623
    %v1625 = vadd.f32 %v1618, %v1624
    %v1626 = vadd.f32 %v1619, %v1624
    %v1627 = vld [vmem:[#allocation2 + $0x1e0] sm:$0x1]
    %v1628 = vlaneseq
    %v1629 = vshrl.u32 %v1628, 7
    %v1630 = vsub.s32 0, %v1629
    %v1631 = vrot.slane %v1627, %v1630
    %v1632 = vmul.f32 %v1625, %v1631
    %v1633 = vmul.f32 %v1626, %v1631
    %v1634 = vld [vmem:[#allocation2 + $0x1e8] sm:$0x1]
    %v1635 = vlaneseq
    %v1636 = vshrl.u32 %v1635, 7
    %v1637 = vsub.s32 0, %v1636
    %v1638 = vrot.slane %v1634, %v1637
    %v1639 = vadd.f32 %v1632, %v1638
    %v1640 = vadd.f32 %v1633, %v1638
    %v1641 = vpack.c.bf16 %v1640, %v1639
    %1642 = vmatprep.subr.bf16.mxu0 0
    %1643 = vmatpush1.bf16.msra.mxu0 %v1641
    %1644 = vmatprep.subr.bf16.mxu0 0
    %1645 = vmatpush1.bf16.msra.mxu0 0
    %1646 = vmatprep.subr.bf16.mxu0 0
    %1647 = vmatpush1.bf16.msra.mxu0 0
    %1648 = vmatprep.subr.bf16.mxu0 0
    %1649 = vmatpush1.bf16.msra.mxu0 0
    %1650 = vmatprep.subr.bf16.mxu0 0
    %1651 = vmatpush1.bf16.msra.mxu0 0
    %1652 = vmatprep.subr.bf16.mxu0 0
    %1653 = vmatpush1.bf16.msra.mxu0 0
    %1654 = vmatprep.subr.bf16.mxu0 0
    %1655 = vmatpush1.bf16.msra.mxu0 0
    %1656 = vmatprep.subr.bf16.mxu0 0
    %1657 = vmatpush1.bf16.msra.mxu0 0
    %1658 = vmatprep.subr.bf16.mxu0 0
    %1659 = vmatpush1.bf16.msra.mxu0 0
    %1660 = vmatprep.subr.bf16.mxu0 0
    %1661 = vmatpush1.bf16.msra.mxu0 0
    %1662 = vmatprep.subr.bf16.mxu0 0
    %1663 = vmatpush1.bf16.msra.mxu0 0
    %1664 = vmatprep.subr.bf16.mxu0 0
    %1665 = vmatpush1.bf16.msra.mxu0 0
    %1666 = vmatprep.subr.bf16.mxu0 0
    %1667 = vmatpush1.bf16.msra.mxu0 0
    %1668 = vmatprep.subr.bf16.mxu0 0
    %1669 = vmatpush1.bf16.msra.mxu0 0
    %1670 = vmatprep.subr.bf16.mxu0 0
    %1671 = vmatpush1.bf16.msra.mxu0 0
    %1672 = vmatprep.subr.bf16.mxu0 0
    %1673 = vmatpush1.bf16.msra.mxu0 0
    %1674 = vmatprep.mubr.bf16.mxu0 0
    %1675 = vmatmul.mubr.bf16.gmra.mrb[0].mxu0 %v500
    %v1676 = vpop.f32.mrb[0].mxu0
    %v1677 = vadd.f32 0.0, %v1676
    %v1678 = vpop.f32.mrb[0].mxu0
    %v1679 = vpop.f32.mrb[0].mxu0
    %v1680 = vadd.f32 0.0, %v1679
    %v1681 = vpop.f32.mrb[0].mxu0
    %1682 = vmatprep.mubr.bf16.mxu0 0
    %1683 = vmatmul.mubr.bf16.gmra.mrb[0].mxu0 %v503
    %v1684 = vpop.f32.mrb[0].mxu0
    %v1685 = vadd.f32 0.0, %v1684
    %v1686 = vpop.f32.mrb[0].mxu0
    %v1687 = vpop.f32.mrb[0].mxu0
    %v1688 = vadd.f32 0.0, %v1687
    %v1689 = vpop.f32.mrb[0].mxu0
    %1690 = vdwg.mxu0
    %v1691 = vpack.c.bf16 %v1680, %v1677
    %v1692 = vpack.c.bf16 %v1688, %v1685
    %1693 = vmatprep.subr.bf16.mxu0 0
    %1694 = vmatpush1.bf16.msra.mxu0 %v1691
    %1695 = vmatprep.subr.bf16.mxu0 0
    %1696 = vmatpush1.bf16.msra.mxu0 %v1692
    %1697 = vmatprep.subr.bf16.mxu0 0
    %1698 = vmatpush1.bf16.msra.mxu0 0
    %1699 = vmatprep.subr.bf16.mxu0 0
    %1700 = vmatpush1.bf16.msra.mxu0 0
    %1701 = vmatprep.subr.bf16.mxu0 0
    %1702 = vmatpush1.bf16.msra.mxu0 0
    %1703 = vmatprep.subr.bf16.mxu0 0
    %1704 = vmatpush1.bf16.msra.mxu0 0
    %1705 = vmatprep.subr.bf16.mxu0 0
    %1706 = vmatpush1.bf16.msra.mxu0 0
    %1707 = vmatprep.subr.bf16.mxu0 0
    %1708 = vmatpush1.bf16.msra.mxu0 0
    %1709 = vmatprep.subr.bf16.mxu0 0
    %1710 = vmatpush1.bf16.msra.mxu0 0
    %1711 = vmatprep.subr.bf16.mxu0 0
    %1712 = vmatpush1.bf16.msra.mxu0 0
    %1713 = vmatprep.subr.bf16.mxu0 0
    %1714 = vmatpush1.bf16.msra.mxu0 0
    %1715 = vmatprep.subr.bf16.mxu0 0
    %1716 = vmatpush1.bf16.msra.mxu0 0
    %1717 = vmatprep.subr.bf16.mxu0 0
    %1718 = vmatpush1.bf16.msra.mxu0 0
    %1719 = vmatprep.subr.bf16.mxu0 0
    %1720 = vmatpush1.bf16.msra.mxu0 0
    %1721 = vmatprep.subr.bf16.mxu0 0
    %1722 = vmatpush1.bf16.msra.mxu0 0
    %1723 = vmatprep.subr.bf16.mxu0 0
    %1724 = vmatpush1.bf16.msra.mxu0 0
    %1725 = vmatprep.mubr.bf16.mxu0 0
    %1726 = vmatmul.mubr.bf16.gmra.mrb[0].mxu0 %v557
    %v1727 = vpop.f32.mrb[0].mxu0
    %v1728 = vadd.f32 0.0, %v1727
    %v1729 = vpop.f32.mrb[0].mxu0
    %v1730 = vpop.f32.mrb[0].mxu0
    %v1731 = vadd.f32 0.0, %v1730
    %v1732 = vpop.f32.mrb[0].mxu0
    %1733 = vdwg.mxu0
    %v1734 = vadd.f32 %v1639, %v1728
    %v1735 = vadd.f32 %v1640, %v1731
    %v1736 = vld [vmem:[#allocation2 + $0x1f0] sm:$0xff]
    %v1737 = vld [vmem:[#allocation2 + $0x1f8] sm:$0xff]
    %v1738 = vld [vmem:[#allocation2 + $0x200] sm:$0xff]
    %v1739 = vld [vmem:[#allocation2 + $0x208] sm:$0xff]
    %v1740 = vpack.c.bf16 %v1737, %v1736
    %v1741 = vpack.c.bf16 %v1739, %v1738
    %v1742 = vpack.c.bf16 %v1735, %v1734
    %v1743 = vld [vmem:[#allocation2 + $0x210] sm:$0x1]
    %v1744 = vlaneseq
    %v1745 = vshrl.u32 %v1744, 7
    %v1746 = vsub.s32 0, %v1745
    %v1747 = vrot.slane %v1743, %v1746
    %v1749 = vsel %vm193, %v1742, 0
    %1751 = vmatprep.subr.bf16.mxu0 0
    %1752 = vmatpush1.bf16.msra.mxu0 %v1740
    %1753 = vmatprep.subr.bf16.mxu0 0
    %1754 = vmatpush1.bf16.msra.mxu0 %v1741
    %1755 = vmatprep.subr.bf16.mxu0 0
    %1756 = vmatpush1.bf16.msra.mxu0 0
    %1757 = vmatprep.subr.bf16.mxu0 0
    %1758 = vmatpush1.bf16.msra.mxu0 0
    %1759 = vmatprep.subr.bf16.mxu0 0
    %1760 = vmatpush1.bf16.msra.mxu0 0
    %1761 = vmatprep.subr.bf16.mxu0 0
    %1762 = vmatpush1.bf16.msra.mxu0 0
    %1763 = vmatprep.subr.bf16.mxu0 0
    %1764 = vmatpush1.bf16.msra.mxu0 0
    %1765 = vmatprep.subr.bf16.mxu0 0
    %1766 = vmatpush1.bf16.msra.mxu0 0
    %1767 = vmatprep.subr.bf16.mxu0 0
    %1768 = vmatpush1.bf16.msra.mxu0 0
    %1769 = vmatprep.subr.bf16.mxu0 0
    %1770 = vmatpush1.bf16.msra.mxu0 0
    %1771 = vmatprep.subr.bf16.mxu0 0
    %1772 = vmatpush1.bf16.msra.mxu0 0
    %1773 = vmatprep.subr.bf16.mxu0 0
    %1774 = vmatpush1.bf16.msra.mxu0 0
    %1775 = vmatprep.subr.bf16.mxu0 0
    %1776 = vmatpush1.bf16.msra.mxu0 0
    %1777 = vmatprep.subr.bf16.mxu0 0
    %1778 = vmatpush1.bf16.msra.mxu0 0
    %1779 = vmatprep.subr.bf16.mxu0 0
    %1780 = vmatpush1.bf16.msra.mxu0 0
    %1781 = vmatprep.subr.bf16.mxu0 0
    %1782 = vmatpush1.bf16.msra.mxu0 0
    %1783 = vmatprep.mubr.bf16.mxu0 0
    %1784 = vmatmul.mubr.bf16.gmra.mrb[0].mxu0 %v1749
    %v1785 = vpop.f32.mrb[0].mxu0
    %v1786 = vadd.f32 %v1747, %v1785
    %v1787 = vpop.f32.mrb[0].mxu0
    %v1788 = vpop.f32.mrb[0].mxu0
    %v1789 = vadd.f32 %v1747, %v1788
    %v1790 = vpop.f32.mrb[0].mxu0
    %1791 = vdwg.mxu0
    %v1792 = vmax.f32 %v1786, 0.0
    %v1793 = vmax.f32 %v1789, 0.0
    %v1794 = vld [vmem:[#allocation2 + $0x218] sm:$0xff]
    %v1795 = vld [vmem:[#allocation2 + $0x220] sm:$0xff]
    %v1796 = vld [vmem:[#allocation2 + $0x228] sm:$0xff]
    %v1797 = vld [vmem:[#allocation2 + $0x230] sm:$0xff]
    %v1798 = vpack.c.bf16 %v1795, %v1794
    %v1799 = vpack.c.bf16 %v1797, %v1796
    %v1800 = vpack.c.bf16 %v1793, %v1792
    %v1801 = vld [vmem:[#allocation2 + $0x238] sm:$0x1]
    %v1802 = vlaneseq
    %v1803 = vshrl.u32 %v1802, 7
    %v1804 = vsub.s32 0, %v1803
    %v1805 = vrot.slane %v1801, %v1804
    %v1807 = vsel %vm193, %v1800, 0
    %1809 = vmatprep.subr.bf16.mxu0 0
    %1810 = vmatpush1.bf16.msra.mxu0 %v1798
    %1811 = vmatprep.subr.bf16.mxu0 0
    %1812 = vmatpush1.bf16.msra.mxu0 %v1799
    %1813 = vmatprep.subr.bf16.mxu0 0
    %1814 = vmatpush1.bf16.msra.mxu0 0
    %1815 = vmatprep.subr.bf16.mxu0 0
    %1816 = vmatpush1.bf16.msra.mxu0 0
    %1817 = vmatprep.subr.bf16.mxu0 0
    %1818 = vmatpush1.bf16.msra.mxu0 0
    %1819 = vmatprep.subr.bf16.mxu0 0
    %1820 = vmatpush1.bf16.msra.mxu0 0
    %1821 = vmatprep.subr.bf16.mxu0 0
    %1822 = vmatpush1.bf16.msra.mxu0 0
    %1823 = vmatprep.subr.bf16.mxu0 0
    %1824 = vmatpush1.bf16.msra.mxu0 0
    %1825 = vmatprep.subr.bf16.mxu0 0
    %1826 = vmatpush1.bf16.msra.mxu0 0
    %1827 = vmatprep.subr.bf16.mxu0 0
    %1828 = vmatpush1.bf16.msra.mxu0 0
    %1829 = vmatprep.subr.bf16.mxu0 0
    %1830 = vmatpush1.bf16.msra.mxu0 0
    %1831 = vmatprep.subr.bf16.mxu0 0
    %1832 = vmatpush1.bf16.msra.mxu0 0
    %1833 = vmatprep.subr.bf16.mxu0 0
    %1834 = vmatpush1.bf16.msra.mxu0 0
    %1835 = vmatprep.subr.bf16.mxu0 0
    %1836 = vmatpush1.bf16.msra.mxu0 0
    %1837 = vmatprep.subr.bf16.mxu0 0
    %1838 = vmatpush1.bf16.msra.mxu0 0
    %1839 = vmatprep.subr.bf16.mxu0 0
    %1840 = vmatpush1.bf16.msra.mxu0 0
    %1841 = vmatprep.mubr.bf16.mxu0 0
    %1842 = vmatmul.mubr.bf16.gmra.mrb[0].mxu0 %v1807
    %v1843 = vpop.f32.mrb[0].mxu0
    %v1844 = vadd.f32 %v1805, %v1843
    %v1845 = vpop.f32.mrb[0].mxu0
    %v1846 = vpop.f32.mrb[0].mxu0
    %v1847 = vadd.f32 %v1805, %v1846
    %v1848 = vpop.f32.mrb[0].mxu0
    %1849 = vdwg.mxu0
    %v1850 = vadd.f32 %v1844, %v1639
    %v1851 = vadd.f32 %v1847, %v1640
    %v1852 = vld [vmem:[#allocation2 + $0x240] sm:$0x1]
    %v1853 = vlaneseq
    %v1854 = vshrl.u32 %v1853, 7
    %v1855 = vsub.s32 0, %v1854
    %v1856 = vrot.slane %v1852, %v1855
    %v1857 = vmul.f32 %v1850, %v1856
    %v1858 = vmul.f32 %v1851, %v1856
    %v1859 = vld [vmem:[#allocation2 + $0x248] sm:$0x1]
    %v1860 = vlaneseq
    %v1861 = vshrl.u32 %v1860, 7
    %v1862 = vsub.s32 0, %v1861
    %v1863 = vrot.slane %v1859, %v1862
    %v1864 = vadd.f32 %v1857, %v1863
    %v1865 = vadd.f32 %v1858, %v1863
    %v1866 = vld [vmem:[#allocation2 + $0x250] sm:$0xff]
    %v1867 = vld [vmem:[#allocation2 + $0x258] sm:$0xff]
    %v1868 = vld [vmem:[#allocation2 + $0x260] sm:$0xff]
    %v1869 = vld [vmem:[#allocation2 + $0x268] sm:$0xff]
    %v1870 = vpack.c.bf16 %v1867, %v1866
    %v1871 = vpack.c.bf16 %v1869, %v1868
    %v1872 = vld [vmem:[#allocation2 + $0x270] sm:$0x1]
    %v1873 = vlaneseq
    %v1874 = vshrl.u32 %v1873, 7
    %v1875 = vsub.s32 0, %v1874
    %v1876 = vrot.slane %v1872, %v1875
    %v1878 = vsel %vm193, %v1641, 0
    %1880 = vmatprep.subr.bf16.mxu0 0
    %1881 = vmatpush1.bf16.msra.mxu0 %v1870
    %1882 = vmatprep.subr.bf16.mxu0 0
    %1883 = vmatpush1.bf16.msra.mxu0 %v1871
    %1884 = vmatprep.subr.bf16.mxu0 0
    %1885 = vmatpush1.bf16.msra.mxu0 0
    %1886 = vmatprep.subr.bf16.mxu0 0
    %1887 = vmatpush1.bf16.msra.mxu0 0
    %1888 = vmatprep.subr.bf16.mxu0 0
    %1889 = vmatpush1.bf16.msra.mxu0 0
    %1890 = vmatprep.subr.bf16.mxu0 0
    %1891 = vmatpush1.bf16.msra.mxu0 0
    %1892 = vmatprep.subr.bf16.mxu0 0
    %1893 = vmatpush1.bf16.msra.mxu0 0
    %1894 = vmatprep.subr.bf16.mxu0 0
    %1895 = vmatpush1.bf16.msra.mxu0 0
    %1896 = vmatprep.subr.bf16.mxu0 0
    %1897 = vmatpush1.bf16.msra.mxu0 0
    %1898 = vmatprep.subr.bf16.mxu0 0
    %1899 = vmatpush1.bf16.msra.mxu0 0
    %1900 = vmatprep.subr.bf16.mxu0 0
    %1901 = vmatpush1.bf16.msra.mxu0 0
    %1902 = vmatprep.subr.bf16.mxu0 0
    %1903 = vmatpush1.bf16.msra.mxu0 0
    %1904 = vmatprep.subr.bf16.mxu0 0
    %1905 = vmatpush1.bf16.msra.mxu0 0
    %1906 = vmatprep.subr.bf16.mxu0 0
    %1907 = vmatpush1.bf16.msra.mxu0 0
    %1908 = vmatprep.subr.bf16.mxu0 0
    %1909 = vmatpush1.bf16.msra.mxu0 0
    %1910 = vmatprep.subr.bf16.mxu0 0
    %1911 = vmatpush1.bf16.msra.mxu0 0
    %1912 = vmatprep.mubr.bf16.mxu0 0
    %1913 = vmatmul.mubr.bf16.gmra.mrb[0].mxu0 %v1878
    %v1914 = vpop.f32.mrb[0].mxu0
    %v1915 = vadd.f32 %v1876, %v1914
    %v1916 = vpop.f32.mrb[0].mxu0
    %v1917 = vpop.f32.mrb[0].mxu0
    %v1918 = vadd.f32 %v1876, %v1917
    %v1919 = vpop.f32.mrb[0].mxu0
    %1920 = vdwg.mxu0
    %v1921 = vpack.c.bf16 %v1918, %v1915
    %v1922 = vld [vmem:[#allocation2 + $0x278] sm:$0xff]
    %v1923 = vld [vmem:[#allocation2 + $0x280] sm:$0xff]
    %v1924 = vld [vmem:[#allocation2 + $0x288] sm:$0xff]
    %v1925 = vld [vmem:[#allocation2 + $0x290] sm:$0xff]
    %v1926 = vpack.c.bf16 %v1923, %v1922
    %v1927 = vpack.c.bf16 %v1925, %v1924
    %1929 = vrot.lane.b32.xlu0 %v1921, 96
    %v1930 = vpop.permute.xlu0 %1929
    %v1932 = vsel %vm130, %v1921, 0
    %v1935 = vsel %vm130, %v1930, 0
    %1937 = vmatprep.subr.bf16.mxu0 0
    %1938 = vmatpush1.bf16.xpose.msra.mxu0 %v1935
    %1939 = vmatprep.subr.bf16.mxu0 0
    %1940 = vmatpush1.bf16.xpose.msra.mxu0 0
    %1941 = vmatprep.subr.bf16.mxu0 0
    %1942 = vmatpush1.bf16.xpose.msra.mxu0 0
    %1943 = vmatprep.subr.bf16.mxu0 0
    %1944 = vmatpush1.bf16.xpose.msra.mxu0 0
    %1945 = vmatprep.subr.bf16.mxu0 0
    %1946 = vmatpush1.bf16.xpose.msra.mxu0 0
    %1947 = vmatprep.subr.bf16.mxu0 0
    %1948 = vmatpush1.bf16.xpose.msra.mxu0 0
    %1949 = vmatprep.subr.bf16.mxu0 0
    %1950 = vmatpush1.bf16.xpose.msra.mxu0 0
    %1951 = vmatprep.subr.bf16.mxu0 0
    %1952 = vmatpush1.bf16.xpose.msra.mxu0 0
    %1953 = vmatprep.subr.bf16.mxu0 0
    %1954 = vmatpush1.bf16.xpose.msra.mxu0 0
    %1955 = vmatprep.subr.bf16.mxu0 0
    %1956 = vmatpush1.bf16.xpose.msra.mxu0 0
    %1957 = vmatprep.subr.bf16.mxu0 0
    %1958 = vmatpush1.bf16.xpose.msra.mxu0 0
    %1959 = vmatprep.subr.bf16.mxu0 0
    %1960 = vmatpush1.bf16.xpose.msra.mxu0 0
    %1961 = vmatprep.subr.bf16.mxu0 0
    %1962 = vmatpush1.bf16.xpose.msra.mxu0 0
    %1963 = vmatprep.subr.bf16.mxu0 0
    %1964 = vmatpush1.bf16.xpose.msra.mxu0 0
    %1965 = vmatprep.subr.bf16.mxu0 0
    %1966 = vmatpush1.bf16.xpose.msra.mxu0 0
    %1967 = vmatprep.subr.bf16.mxu0 0
    %1968 = vmatpush1.bf16.xpose.msra.mxu0 0
    %1969 = vmatprep.mubr.bf16.mxu0 0
    %1970 = vmatmul.mubr.bf16.gmra.mrb[0].mxu0 %v1932
    %v1971 = vpop.f32.mrb[0].mxu0
    %v1972 = vadd.f32 %v55, %v1971
    %v1973 = vpop.f32.mrb[0].mxu0
    %v1974 = vpop.f32.mrb[0].mxu0
    %v1975 = vadd.f32 %v56, %v1974
    %v1976 = vpop.f32.mrb[0].mxu0
    %1977 = vdwg.mxu0
    %v1978 = vsel %vm444, %v1972, -inf
    %1979 = vmax.xlane.f32.xlu0 %v1978
    %v1980 = vpop.xlane.xlu0 %1979
    %v1981 = vsel %vm444, %v1975, -inf
    %1982 = vmax.xlane.f32.xlu0 %v1981
    %v1983 = vpop.xlane.xlu0 %1982
    %v1984 = vsub.f32 %v1972, %v1980
    %v1985 = vsub.f32 %v1975, %v1983
    %v1986 = vmul.f32 %v1984, 1.442695
    %v1987 = vpow.pop %v1986
    %v1988 = vmul.f32 %v1985, 1.442695
    %v1989 = vpow.pop %v1988
    %v1990 = vsel %vm444, %v1987, 0.0
    %1991 = vadd.xlane.f32.xlu0 %v1990
    %v1992 = vpop.xlane.xlu0 %1991
    %v1993 = vsel %vm444, %v1989, 0.0
    %1994 = vadd.xlane.f32.xlu0 %v1993
    %v1995 = vpop.xlane.xlu0 %1994
    %v1996 = vrcp.pop %v1992
    %v1997 = vrcp.pop %v1995
    %v1998 = vmul.f32 %v1987, %v1996
    %v1999 = vmul.f32 %v1989, %v1997
    %v2000 = vpack.c.bf16 %v1999, %v1998
    %2001 = vrot.lane.b32.xlu0 %v1921, 64
    %v2002 = vpop.permute.xlu0 %2001
    %v2005 = vsel %vm444, %v2000, 0
    %2007 = vmatprep.subr.bf16.mxu0 0
    %2008 = vmatpush1.bf16.msra.mxu0 %v2002
    %2009 = vmatprep.subr.bf16.mxu0 0
    %2010 = vmatpush1.bf16.msra.mxu0 0
    %2011 = vmatprep.subr.bf16.mxu0 0
    %2012 = vmatpush1.bf16.msra.mxu0 0
    %2013 = vmatprep.subr.bf16.mxu0 0
    %2014 = vmatpush1.bf16.msra.mxu0 0
    %2015 = vmatprep.subr.bf16.mxu0 0
    %2016 = vmatpush1.bf16.msra.mxu0 0
    %2017 = vmatprep.subr.bf16.mxu0 0
    %2018 = vmatpush1.bf16.msra.mxu0 0
    %2019 = vmatprep.subr.bf16.mxu0 0
    %2020 = vmatpush1.bf16.msra.mxu0 0
    %2021 = vmatprep.subr.bf16.mxu0 0
    %2022 = vmatpush1.bf16.msra.mxu0 0
    %2023 = vmatprep.subr.bf16.mxu0 0
    %2024 = vmatpush1.bf16.msra.mxu0 0
    %2025 = vmatprep.subr.bf16.mxu0 0
    %2026 = vmatpush1.bf16.msra.mxu0 0
    %2027 = vmatprep.subr.bf16.mxu0 0
    %2028 = vmatpush1.bf16.msra.mxu0 0
    %2029 = vmatprep.subr.bf16.mxu0 0
    %2030 = vmatpush1.bf16.msra.mxu0 0
    %2031 = vmatprep.subr.bf16.mxu0 0
    %2032 = vmatpush1.bf16.msra.mxu0 0
    %2033 = vmatprep.subr.bf16.mxu0 0
    %2034 = vmatpush1.bf16.msra.mxu0 0
    %2035 = vmatprep.subr.bf16.mxu0 0
    %2036 = vmatpush1.bf16.msra.mxu0 0
    %2037 = vmatprep.subr.bf16.mxu0 0
    %2038 = vmatpush1.bf16.msra.mxu0 0
    %2039 = vmatprep.mubr.bf16.mxu0 0
    %2040 = vmatmul.mubr.bf16.gmra.mrb[0].mxu0 %v2005
    %v2041 = vpop.f32.mrb[0].mxu0
    %v2042 = vadd.f32 0.0, %v2041
    %v2043 = vpop.f32.mrb[0].mxu0
    %v2044 = vpop.f32.mrb[0].mxu0
    %v2045 = vadd.f32 0.0, %v2044
    %v2046 = vpop.f32.mrb[0].mxu0
    %2047 = vdwg.mxu0
    %v2048 = vpack.c.bf16 %v2045, %v2042
    %2049 = vrot.lane.b32.xlu0 %v1921, 120
    %v2050 = vpop.permute.xlu0 %2049
    %2051 = vrot.lane.b32.xlu0 %v1921, 88
    %v2052 = vpop.permute.xlu0 %2051
    %v2054 = vsel %vm130, %v2050, 0
    %v2057 = vsel %vm130, %v2052, 0
    %2059 = vmatprep.subr.bf16.mxu0 0
    %2060 = vmatpush1.bf16.xpose.msra.mxu0 %v2057
    %2061 = vmatprep.subr.bf16.mxu0 0
    %2062 = vmatpush1.bf16.xpose.msra.mxu0 0
    %2063 = vmatprep.subr.bf16.mxu0 0
    %2064 = vmatpush1.bf16.xpose.msra.mxu0 0
    %2065 = vmatprep.subr.bf16.mxu0 0
    %2066 = vmatpush1.bf16.xpose.msra.mxu0 0
    %2067 = vmatprep.subr.bf16.mxu0 0
    %2068 = vmatpush1.bf16.xpose.msra.mxu0 0
    %2069 = vmatprep.subr.bf16.mxu0 0
    %2070 = vmatpush1.bf16.xpose.msra.mxu0 0
    %2071 = vmatprep.subr.bf16.mxu0 0
    %2072 = vmatpush1.bf16.xpose.msra.mxu0 0
    %2073 = vmatprep.subr.bf16.mxu0 0
    %2074 = vmatpush1.bf16.xpose.msra.mxu0 0
    %2075 = vmatprep.subr.bf16.mxu0 0
    %2076 = vmatpush1.bf16.xpose.msra.mxu0 0
    %2077 = vmatprep.subr.bf16.mxu0 0
    %2078 = vmatpush1.bf16.xpose.msra.mxu0 0
    %2079 = vmatprep.subr.bf16.mxu0 0
    %2080 = vmatpush1.bf16.xpose.msra.mxu0 0
    %2081 = vmatprep.subr.bf16.mxu0 0
    %2082 = vmatpush1.bf16.xpose.msra.mxu0 0
    %2083 = vmatprep.subr.bf16.mxu0 0
    %2084 = vmatpush1.bf16.xpose.msra.mxu0 0
    %2085 = vmatprep.subr.bf16.mxu0 0
    %2086 = vmatpush1.bf16.xpose.msra.mxu0 0
    %2087 = vmatprep.subr.bf16.mxu0 0
    %2088 = vmatpush1.bf16.xpose.msra.mxu0 0
    %2089 = vmatprep.subr.bf16.mxu0 0
    %2090 = vmatpush1.bf16.xpose.msra.mxu0 0
    %2091 = vmatprep.mubr.bf16.mxu0 0
    %2092 = vmatmul.mubr.bf16.gmra.mrb[0].mxu0 %v2054
    %v2093 = vpop.f32.mrb[0].mxu0
    %v2094 = vadd.f32 %v55, %v2093
    %v2095 = vpop.f32.mrb[0].mxu0
    %v2096 = vpop.f32.mrb[0].mxu0
    %v2097 = vadd.f32 %v56, %v2096
    %v2098 = vpop.f32.mrb[0].mxu0
    %2099 = vdwg.mxu0
    %v2100 = vsel %vm444, %v2094, -inf
    %2101 = vmax.xlane.f32.xlu0 %v2100
    %v2102 = vpop.xlane.xlu0 %2101
    %v2103 = vsel %vm444, %v2097, -inf
    %2104 = vmax.xlane.f32.xlu0 %v2103
    %v2105 = vpop.xlane.xlu0 %2104
    %v2106 = vsub.f32 %v2094, %v2102
    %v2107 = vsub.f32 %v2097, %v2105
    %v2108 = vmul.f32 %v2106, 1.442695
    %v2109 = vpow.pop %v2108
    %v2110 = vmul.f32 %v2107, 1.442695
    %v2111 = vpow.pop %v2110
    %v2112 = vsel %vm444, %v2109, 0.0
    %2113 = vadd.xlane.f32.xlu0 %v2112
    %v2114 = vpop.xlane.xlu0 %2113
    %v2115 = vsel %vm444, %v2111, 0.0
    %2116 = vadd.xlane.f32.xlu0 %v2115
    %v2117 = vpop.xlane.xlu0 %2116
    %v2118 = vrcp.pop %v2114
    %v2119 = vrcp.pop %v2117
    %v2120 = vmul.f32 %v2109, %v2118
    %v2121 = vmul.f32 %v2111, %v2119
    %v2122 = vpack.c.bf16 %v2121, %v2120
    %2123 = vrot.lane.b32.xlu0 %v1921, 56
    %v2124 = vpop.permute.xlu0 %2123
    %v2127 = vsel %vm444, %v2122, 0
    %2129 = vmatprep.subr.bf16.mxu0 0
    %2130 = vmatpush1.bf16.msra.mxu0 %v2124
    %2131 = vmatprep.subr.bf16.mxu0 0
    %2132 = vmatpush1.bf16.msra.mxu0 0
    %2133 = vmatprep.subr.bf16.mxu0 0
    %2134 = vmatpush1.bf16.msra.mxu0 0
    %2135 = vmatprep.subr.bf16.mxu0 0
    %2136 = vmatpush1.bf16.msra.mxu0 0
    %2137 = vmatprep.subr.bf16.mxu0 0
    %2138 = vmatpush1.bf16.msra.mxu0 0
    %2139 = vmatprep.subr.bf16.mxu0 0
    %2140 = vmatpush1.bf16.msra.mxu0 0
    %2141 = vmatprep.subr.bf16.mxu0 0
    %2142 = vmatpush1.bf16.msra.mxu0 0
    %2143 = vmatprep.subr.bf16.mxu0 0
    %2144 = vmatpush1.bf16.msra.mxu0 0
    %2145 = vmatprep.subr.bf16.mxu0 0
    %2146 = vmatpush1.bf16.msra.mxu0 0
    %2147 = vmatprep.subr.bf16.mxu0 0
    %2148 = vmatpush1.bf16.msra.mxu0 0
    %2149 = vmatprep.subr.bf16.mxu0 0
    %2150 = vmatpush1.bf16.msra.mxu0 0
    %2151 = vmatprep.subr.bf16.mxu0 0
    %2152 = vmatpush1.bf16.msra.mxu0 0
    %2153 = vmatprep.subr.bf16.mxu0 0
    %2154 = vmatpush1.bf16.msra.mxu0 0
    %2155 = vmatprep.subr.bf16.mxu0 0
    %2156 = vmatpush1.bf16.msra.mxu0 0
    %2157 = vmatprep.subr.bf16.mxu0 0
    %2158 = vmatpush1.bf16.msra.mxu0 0
    %2159 = vmatprep.subr.bf16.mxu0 0
    %2160 = vmatpush1.bf16.msra.mxu0 0
    %2161 = vmatprep.mubr.bf16.mxu0 0
    %2162 = vmatmul.mubr.bf16.gmra.mrb[0].mxu0 %v2127
    %v2163 = vpop.f32.mrb[0].mxu0
    %v2164 = vadd.f32 0.0, %v2163
    %v2165 = vpop.f32.mrb[0].mxu0
    %v2166 = vpop.f32.mrb[0].mxu0
    %v2167 = vadd.f32 0.0, %v2166
    %v2168 = vpop.f32.mrb[0].mxu0
    %2169 = vdwg.mxu0
    %v2170 = vpack.c.bf16 %v2167, %v2164
    %v2172 = vrot.slane %v1926, 4
    %v2174 = vsel %vm130, %v2170, 0
    %v2177 = vsel %vm134, %v2172, 0
    %2179 = vmatprep.subr.bf16.mxu0 0
    %2180 = vmatpush1.bf16.msra.mxu0 %v2177
    %2181 = vmatprep.subr.bf16.mxu0 0
    %2182 = vmatpush1.bf16.msra.mxu0 0
    %2183 = vmatprep.subr.bf16.mxu0 0
    %2184 = vmatpush1.bf16.msra.mxu0 0
    %2185 = vmatprep.subr.bf16.mxu0 0
    %2186 = vmatpush1.bf16.msra.mxu0 0
    %2187 = vmatprep.subr.bf16.mxu0 0
    %2188 = vmatpush1.bf16.msra.mxu0 0
    %2189 = vmatprep.subr.bf16.mxu0 0
    %2190 = vmatpush1.bf16.msra.mxu0 0
    %2191 = vmatprep.subr.bf16.mxu0 0
    %2192 = vmatpush1.bf16.msra.mxu0 0
    %2193 = vmatprep.subr.bf16.mxu0 0
    %2194 = vmatpush1.bf16.msra.mxu0 0
    %2195 = vmatprep.subr.bf16.mxu0 0
    %2196 = vmatpush1.bf16.msra.mxu0 0
    %2197 = vmatprep.subr.bf16.mxu0 0
    %2198 = vmatpush1.bf16.msra.mxu0 0
    %2199 = vmatprep.subr.bf16.mxu0 0
    %2200 = vmatpush1.bf16.msra.mxu0 0
    %2201 = vmatprep.subr.bf16.mxu0 0
    %2202 = vmatpush1.bf16.msra.mxu0 0
    %2203 = vmatprep.subr.bf16.mxu0 0
    %2204 = vmatpush1.bf16.msra.mxu0 0
    %2205 = vmatprep.subr.bf16.mxu0 0
    %2206 = vmatpush1.bf16.msra.mxu0 0
    %2207 = vmatprep.subr.bf16.mxu0 0
    %2208 = vmatpush1.bf16.msra.mxu0 0
    %2209 = vmatprep.subr.bf16.mxu0 0
    %2210 = vmatpush1.bf16.msra.mxu0 0
    %2211 = vmatprep.mubr.bf16.mxu0 0
    %2212 = vmatmul.mubr.bf16.gmra.mrb[0].mxu0 %v2174
    %v2213 = vpop.f32.mrb[0].mxu0
    %v2214 = vadd.f32 0.0, %v2213
    %v2215 = vpop.f32.mrb[0].mxu0
    %v2216 = vpop.f32.mrb[0].mxu0
    %v2217 = vadd.f32 0.0, %v2216
    %v2218 = vpop.f32.mrb[0].mxu0
    %2219 = vdwg.mxu0
    %v2221 = vsel %vm130, %v2048, 0
    %v2224 = vsel %vm134, %v1926, 0
    %2226 = vmatprep.subr.bf16.mxu0 0
    %2227 = vmatpush1.bf16.msra.mxu0 %v2224
    %2228 = vmatprep.subr.bf16.mxu0 0
    %2229 = vmatpush1.bf16.msra.mxu0 0
    %2230 = vmatprep.subr.bf16.mxu0 0
    %2231 = vmatpush1.bf16.msra.mxu0 0
    %2232 = vmatprep.subr.bf16.mxu0 0
    %2233 = vmatpush1.bf16.msra.mxu0 0
    %2234 = vmatprep.subr.bf16.mxu0 0
    %2235 = vmatpush1.bf16.msra.mxu0 0
    %2236 = vmatprep.subr.bf16.mxu0 0
    %2237 = vmatpush1.bf16.msra.mxu0 0
    %2238 = vmatprep.subr.bf16.mxu0 0
    %2239 = vmatpush1.bf16.msra.mxu0 0
    %2240 = vmatprep.subr.bf16.mxu0 0
    %2241 = vmatpush1.bf16.msra.mxu0 0
    %2242 = vmatprep.subr.bf16.mxu0 0
    %2243 = vmatpush1.bf16.msra.mxu0 0
    %2244 = vmatprep.subr.bf16.mxu0 0
    %2245 = vmatpush1.bf16.msra.mxu0 0
    %2246 = vmatprep.subr.bf16.mxu0 0
    %2247 = vmatpush1.bf16.msra.mxu0 0
    %2248 = vmatprep.subr.bf16.mxu0 0
    %2249 = vmatpush1.bf16.msra.mxu0 0
    %2250 = vmatprep.subr.bf16.mxu0 0
    %2251 = vmatpush1.bf16.msra.mxu0 0
    %2252 = vmatprep.subr.bf16.mxu0 0
    %2253 = vmatpush1.bf16.msra.mxu0 0
    %2254 = vmatprep.subr.bf16.mxu0 0
    %2255 = vmatpush1.bf16.msra.mxu0 0
    %2256 = vmatprep.subr.bf16.mxu0 0
    %2257 = vmatpush1.bf16.msra.mxu0 0
    %2258 = vmatprep.mubr.bf16.mxu0 0
    %2259 = vmatmul.mubr.bf16.gmra.mrb[0].mxu0 %v2221
    %v2260 = vpop.f32.mrb[0].mxu0
    %v2261 = vadd.f32 %v2214, %v2260
    %v2262 = vpop.f32.mrb[0].mxu0
    %v2263 = vpop.f32.mrb[0].mxu0
    %v2264 = vadd.f32 %v2217, %v2263
    %v2265 = vpop.f32.mrb[0].mxu0
    %2266 = vdwg.mxu0
    %2267 = vrot.lane.b32.xlu0 %v1921, 112
    %v2268 = vpop.permute.xlu0 %2267
    %2269 = vrot.lane.b32.xlu0 %v1921, 80
    %v2270 = vpop.permute.xlu0 %2269
    %v2272 = vsel %vm130, %v2268, 0
    %v2275 = vsel %vm130, %v2270, 0
    %2277 = vmatprep.subr.bf16.mxu0 0
    %2278 = vmatpush1.bf16.xpose.msra.mxu0 %v2275
    %2279 = vmatprep.subr.bf16.mxu0 0
    %2280 = vmatpush1.bf16.xpose.msra.mxu0 0
    %2281 = vmatprep.subr.bf16.mxu0 0
    %2282 = vmatpush1.bf16.xpose.msra.mxu0 0
    %2283 = vmatprep.subr.bf16.mxu0 0
    %2284 = vmatpush1.bf16.xpose.msra.mxu0 0
    %2285 = vmatprep.subr.bf16.mxu0 0
    %2286 = vmatpush1.bf16.xpose.msra.mxu0 0
    %2287 = vmatprep.subr.bf16.mxu0 0
    %2288 = vmatpush1.bf16.xpose.msra.mxu0 0
    %2289 = vmatprep.subr.bf16.mxu0 0
    %2290 = vmatpush1.bf16.xpose.msra.mxu0 0
    %2291 = vmatprep.subr.bf16.mxu0 0
    %2292 = vmatpush1.bf16.xpose.msra.mxu0 0
    %2293 = vmatprep.subr.bf16.mxu0 0
    %2294 = vmatpush1.bf16.xpose.msra.mxu0 0
    %2295 = vmatprep.subr.bf16.mxu0 0
    %2296 = vmatpush1.bf16.xpose.msra.mxu0 0
    %2297 = vmatprep.subr.bf16.mxu0 0
    %2298 = vmatpush1.bf16.xpose.msra.mxu0 0
    %2299 = vmatprep.subr.bf16.mxu0 0
    %2300 = vmatpush1.bf16.xpose.msra.mxu0 0
    %2301 = vmatprep.subr.bf16.mxu0 0
    %2302 = vmatpush1.bf16.xpose.msra.mxu0 0
    %2303 = vmatprep.subr.bf16.mxu0 0
    %2304 = vmatpush1.bf16.xpose.msra.mxu0 0
    %2305 = vmatprep.subr.bf16.mxu0 0
    %2306 = vmatpush1.bf16.xpose.msra.mxu0 0
    %2307 = vmatprep.subr.bf16.mxu0 0
    %2308 = vmatpush1.bf16.xpose.msra.mxu0 0
    %2309 = vmatprep.mubr.bf16.mxu0 0
    %2310 = vmatmul.mubr.bf16.gmra.mrb[0].mxu0 %v2272
    %v2311 = vpop.f32.mrb[0].mxu0
    %v2312 = vadd.f32 %v55, %v2311
    %v2313 = vpop.f32.mrb[0].mxu0
    %v2314 = vpop.f32.mrb[0].mxu0
    %v2315 = vadd.f32 %v56, %v2314
    %v2316 = vpop.f32.mrb[0].mxu0
    %2317 = vdwg.mxu0
    %v2318 = vsel %vm444, %v2312, -inf
    %2319 = vmax.xlane.f32.xlu0 %v2318
    %v2320 = vpop.xlane.xlu0 %2319
    %v2321 = vsel %vm444, %v2315, -inf
    %2322 = vmax.xlane.f32.xlu0 %v2321
    %v2323 = vpop.xlane.xlu0 %2322
    %v2324 = vsub.f32 %v2312, %v2320
    %v2325 = vsub.f32 %v2315, %v2323
    %v2326 = vmul.f32 %v2324, 1.442695
    %v2327 = vpow.pop %v2326
    %v2328 = vmul.f32 %v2325, 1.442695
    %v2329 = vpow.pop %v2328
    %v2330 = vsel %vm444, %v2327, 0.0
    %2331 = vadd.xlane.f32.xlu0 %v2330
    %v2332 = vpop.xlane.xlu0 %2331
    %v2333 = vsel %vm444, %v2329, 0.0
    %2334 = vadd.xlane.f32.xlu0 %v2333
    %v2335 = vpop.xlane.xlu0 %2334
    %v2336 = vrcp.pop %v2332
    %v2337 = vrcp.pop %v2335
    %v2338 = vmul.f32 %v2327, %v2336
    %v2339 = vmul.f32 %v2329, %v2337
    %v2340 = vpack.c.bf16 %v2339, %v2338
    %2341 = vrot.lane.b32.xlu0 %v1921, 48
    %v2342 = vpop.permute.xlu0 %2341
    %v2345 = vsel %vm444, %v2340, 0
    %2347 = vmatprep.subr.bf16.mxu0 0
    %2348 = vmatpush1.bf16.msra.mxu0 %v2342
    %2349 = vmatprep.subr.bf16.mxu0 0
    %2350 = vmatpush1.bf16.msra.mxu0 0
    %2351 = vmatprep.subr.bf16.mxu0 0
    %2352 = vmatpush1.bf16.msra.mxu0 0
    %2353 = vmatprep.subr.bf16.mxu0 0
    %2354 = vmatpush1.bf16.msra.mxu0 0
    %2355 = vmatprep.subr.bf16.mxu0 0
    %2356 = vmatpush1.bf16.msra.mxu0 0
    %2357 = vmatprep.subr.bf16.mxu0 0
    %2358 = vmatpush1.bf16.msra.mxu0 0
    %2359 = vmatprep.subr.bf16.mxu0 0
    %2360 = vmatpush1.bf16.msra.mxu0 0
    %2361 = vmatprep.subr.bf16.mxu0 0
    %2362 = vmatpush1.bf16.msra.mxu0 0
    %2363 = vmatprep.subr.bf16.mxu0 0
    %2364 = vmatpush1.bf16.msra.mxu0 0
    %2365 = vmatprep.subr.bf16.mxu0 0
    %2366 = vmatpush1.bf16.msra.mxu0 0
    %2367 = vmatprep.subr.bf16.mxu0 0
    %2368 = vmatpush1.bf16.msra.mxu0 0
    %2369 = vmatprep.subr.bf16.mxu0 0
    %2370 = vmatpush1.bf16.msra.mxu0 0
    %2371 = vmatprep.subr.bf16.mxu0 0
    %2372 = vmatpush1.bf16.msra.mxu0 0
    %2373 = vmatprep.subr.bf16.mxu0 0
    %2374 = vmatpush1.bf16.msra.mxu0 0
    %2375 = vmatprep.subr.bf16.mxu0 0
    %2376 = vmatpush1.bf16.msra.mxu0 0
    %2377 = vmatprep.subr.bf16.mxu0 0
    %2378 = vmatpush1.bf16.msra.mxu0 0
    %2379 = vmatprep.mubr.bf16.mxu0 0
    %2380 = vmatmul.mubr.bf16.gmra.mrb[0].mxu0 %v2345
    %v2381 = vpop.f32.mrb[0].mxu0
    %v2382 = vadd.f32 0.0, %v2381
    %v2383 = vpop.f32.mrb[0].mxu0
    %v2384 = vpop.f32.mrb[0].mxu0
    %v2385 = vadd.f32 0.0, %v2384
    %v2386 = vpop.f32.mrb[0].mxu0
    %2387 = vdwg.mxu0
    %v2388 = vpack.c.bf16 %v2385, %v2382
    %v2390 = vsel %vm130, %v2388, 0
    %v2393 = vsel %vm134, %v1927, 0
    %2395 = vmatprep.subr.bf16.mxu0 0
    %2396 = vmatpush1.bf16.msra.mxu0 %v2393
    %2397 = vmatprep.subr.bf16.mxu0 0
    %2398 = vmatpush1.bf16.msra.mxu0 0
    %2399 = vmatprep.subr.bf16.mxu0 0
    %2400 = vmatpush1.bf16.msra.mxu0 0
    %2401 = vmatprep.subr.bf16.mxu0 0
    %2402 = vmatpush1.bf16.msra.mxu0 0
    %2403 = vmatprep.subr.bf16.mxu0 0
    %2404 = vmatpush1.bf16.msra.mxu0 0
    %2405 = vmatprep.subr.bf16.mxu0 0
    %2406 = vmatpush1.bf16.msra.mxu0 0
    %2407 = vmatprep.subr.bf16.mxu0 0
    %2408 = vmatpush1.bf16.msra.mxu0 0
    %2409 = vmatprep.subr.bf16.mxu0 0
    %2410 = vmatpush1.bf16.msra.mxu0 0
    %2411 = vmatprep.subr.bf16.mxu0 0
    %2412 = vmatpush1.bf16.msra.mxu0 0
    %2413 = vmatprep.subr.bf16.mxu0 0
    %2414 = vmatpush1.bf16.msra.mxu0 0
    %2415 = vmatprep.subr.bf16.mxu0 0
    %2416 = vmatpush1.bf16.msra.mxu0 0
    %2417 = vmatprep.subr.bf16.mxu0 0
    %2418 = vmatpush1.bf16.msra.mxu0 0
    %2419 = vmatprep.subr.bf16.mxu0 0
    %2420 = vmatpush1.bf16.msra.mxu0 0
    %2421 = vmatprep.subr.bf16.mxu0 0
    %2422 = vmatpush1.bf16.msra.mxu0 0
    %2423 = vmatprep.subr.bf16.mxu0 0
    %2424 = vmatpush1.bf16.msra.mxu0 0
    %2425 = vmatprep.subr.bf16.mxu0 0
    %2426 = vmatpush1.bf16.msra.mxu0 0
    %2427 = vmatprep.mubr.bf16.mxu0 0
    %2428 = vmatmul.mubr.bf16.gmra.mrb[0].mxu0 %v2390
    %v2429 = vpop.f32.mrb[0].mxu0
    %v2430 = vadd.f32 0.0, %v2429
    %v2431 = vpop.f32.mrb[0].mxu0
    %v2432 = vpop.f32.mrb[0].mxu0
    %v2433 = vadd.f32 0.0, %v2432
    %v2434 = vpop.f32.mrb[0].mxu0
    %2435 = vdwg.mxu0
    %v2436 = vadd.f32 %v2261, %v2430
    %v2437 = vadd.f32 %v2264, %v2433
    %2438 = vrot.lane.b32.xlu0 %v1921, 104
    %v2439 = vpop.permute.xlu0 %2438
    %2440 = vrot.lane.b32.xlu0 %v1921, 72
    %v2441 = vpop.permute.xlu0 %2440
    %v2443 = vsel %vm130, %v2439, 0
    %v2446 = vsel %vm130, %v2441, 0
    %2448 = vmatprep.subr.bf16.mxu0 0
    %2449 = vmatpush1.bf16.xpose.msra.mxu0 %v2446
    %2450 = vmatprep.subr.bf16.mxu0 0
    %2451 = vmatpush1.bf16.xpose.msra.mxu0 0
    %2452 = vmatprep.subr.bf16.mxu0 0
    %2453 = vmatpush1.bf16.xpose.msra.mxu0 0
    %2454 = vmatprep.subr.bf16.mxu0 0
    %2455 = vmatpush1.bf16.xpose.msra.mxu0 0
    %2456 = vmatprep.subr.bf16.mxu0 0
    %2457 = vmatpush1.bf16.xpose.msra.mxu0 0
    %2458 = vmatprep.subr.bf16.mxu0 0
    %2459 = vmatpush1.bf16.xpose.msra.mxu0 0
    %2460 = vmatprep.subr.bf16.mxu0 0
    %2461 = vmatpush1.bf16.xpose.msra.mxu0 0
    %2462 = vmatprep.subr.bf16.mxu0 0
    %2463 = vmatpush1.bf16.xpose.msra.mxu0 0
    %2464 = vmatprep.subr.bf16.mxu0 0
    %2465 = vmatpush1.bf16.xpose.msra.mxu0 0
    %2466 = vmatprep.subr.bf16.mxu0 0
    %2467 = vmatpush1.bf16.xpose.msra.mxu0 0
    %2468 = vmatprep.subr.bf16.mxu0 0
    %2469 = vmatpush1.bf16.xpose.msra.mxu0 0
    %2470 = vmatprep.subr.bf16.mxu0 0
    %2471 = vmatpush1.bf16.xpose.msra.mxu0 0
    %2472 = vmatprep.subr.bf16.mxu0 0
    %2473 = vmatpush1.bf16.xpose.msra.mxu0 0
    %2474 = vmatprep.subr.bf16.mxu0 0
    %2475 = vmatpush1.bf16.xpose.msra.mxu0 0
    %2476 = vmatprep.subr.bf16.mxu0 0
    %2477 = vmatpush1.bf16.xpose.msra.mxu0 0
    %2478 = vmatprep.subr.bf16.mxu0 0
    %2479 = vmatpush1.bf16.xpose.msra.mxu0 0
    %2480 = vmatprep.mubr.bf16.mxu0 0
    %2481 = vmatmul.mubr.bf16.gmra.mrb[0].mxu0 %v2443
    %v2482 = vpop.f32.mrb[0].mxu0
    %v2483 = vadd.f32 %v55, %v2482
    %v2484 = vpop.f32.mrb[0].mxu0
    %v2485 = vpop.f32.mrb[0].mxu0
    %v2486 = vadd.f32 %v56, %v2485
    %v2487 = vpop.f32.mrb[0].mxu0
    %2488 = vdwg.mxu0
    %v2489 = vsel %vm444, %v2483, -inf
    %2490 = vmax.xlane.f32.xlu0 %v2489
    %v2491 = vpop.xlane.xlu0 %2490
    %v2492 = vsel %vm444, %v2486, -inf
    %2493 = vmax.xlane.f32.xlu0 %v2492
    %v2494 = vpop.xlane.xlu0 %2493
    %v2495 = vsub.f32 %v2483, %v2491
    %v2496 = vsub.f32 %v2486, %v2494
    %v2497 = vmul.f32 %v2495, 1.442695
    %v2498 = vpow.pop %v2497
    %v2499 = vmul.f32 %v2496, 1.442695
    %v2500 = vpow.pop %v2499
    %v2501 = vsel %vm444, %v2498, 0.0
    %2502 = vadd.xlane.f32.xlu0 %v2501
    %v2503 = vpop.xlane.xlu0 %2502
    %v2504 = vsel %vm444, %v2500, 0.0
    %2505 = vadd.xlane.f32.xlu0 %v2504
    %v2506 = vpop.xlane.xlu0 %2505
    %v2507 = vrcp.pop %v2503
    %v2508 = vrcp.pop %v2506
    %v2509 = vmul.f32 %v2498, %v2507
    %v2510 = vmul.f32 %v2500, %v2508
    %v2511 = vpack.c.bf16 %v2510, %v2509
    %2512 = vrot.lane.b32.xlu0 %v1921, 40
    %v2513 = vpop.permute.xlu0 %2512
    %v2516 = vsel %vm444, %v2511, 0
    %2518 = vmatprep.subr.bf16.mxu0 0
    %2519 = vmatpush1.bf16.msra.mxu0 %v2513
    %2520 = vmatprep.subr.bf16.mxu0 0
    %2521 = vmatpush1.bf16.msra.mxu0 0
    %2522 = vmatprep.subr.bf16.mxu0 0
    %2523 = vmatpush1.bf16.msra.mxu0 0
    %2524 = vmatprep.subr.bf16.mxu0 0
    %2525 = vmatpush1.bf16.msra.mxu0 0
    %2526 = vmatprep.subr.bf16.mxu0 0
    %2527 = vmatpush1.bf16.msra.mxu0 0
    %2528 = vmatprep.subr.bf16.mxu0 0
    %2529 = vmatpush1.bf16.msra.mxu0 0
    %2530 = vmatprep.subr.bf16.mxu0 0
    %2531 = vmatpush1.bf16.msra.mxu0 0
    %2532 = vmatprep.subr.bf16.mxu0 0
    %2533 = vmatpush1.bf16.msra.mxu0 0
    %2534 = vmatprep.subr.bf16.mxu0 0
    %2535 = vmatpush1.bf16.msra.mxu0 0
    %2536 = vmatprep.subr.bf16.mxu0 0
    %2537 = vmatpush1.bf16.msra.mxu0 0
    %2538 = vmatprep.subr.bf16.mxu0 0
    %2539 = vmatpush1.bf16.msra.mxu0 0
    %2540 = vmatprep.subr.bf16.mxu0 0
    %2541 = vmatpush1.bf16.msra.mxu0 0
    %2542 = vmatprep.subr.bf16.mxu0 0
    %2543 = vmatpush1.bf16.msra.mxu0 0
    %2544 = vmatprep.subr.bf16.mxu0 0
    %2545 = vmatpush1.bf16.msra.mxu0 0
    %2546 = vmatprep.subr.bf16.mxu0 0
    %2547 = vmatpush1.bf16.msra.mxu0 0
    %2548 = vmatprep.subr.bf16.mxu0 0
    %2549 = vmatpush1.bf16.msra.mxu0 0
    %2550 = vmatprep.mubr.bf16.mxu0 0
    %2551 = vmatmul.mubr.bf16.gmra.mrb[0].mxu0 %v2516
    %v2552 = vpop.f32.mrb[0].mxu0
    %v2553 = vadd.f32 0.0, %v2552
    %v2554 = vpop.f32.mrb[0].mxu0
    %v2555 = vpop.f32.mrb[0].mxu0
    %v2556 = vadd.f32 0.0, %v2555
    %v2557 = vpop.f32.mrb[0].mxu0
    %2558 = vdwg.mxu0
    %v2559 = vpack.c.bf16 %v2556, %v2553
    %v2561 = vrot.slane %v1927, 4
    %v2563 = vsel %vm130, %v2559, 0
    %v2566 = vsel %vm134, %v2561, 0
    %2568 = vmatprep.subr.bf16.mxu0 0
    %2569 = vmatpush1.bf16.msra.mxu0 %v2566
    %2570 = vmatprep.subr.bf16.mxu0 0
    %2571 = vmatpush1.bf16.msra.mxu0 0
    %2572 = vmatprep.subr.bf16.mxu0 0
    %2573 = vmatpush1.bf16.msra.mxu0 0
    %2574 = vmatprep.subr.bf16.mxu0 0
    %2575 = vmatpush1.bf16.msra.mxu0 0
    %2576 = vmatprep.subr.bf16.mxu0 0
    %2577 = vmatpush1.bf16.msra.mxu0 0
    %2578 = vmatprep.subr.bf16.mxu0 0
    %2579 = vmatpush1.bf16.msra.mxu0 0
    %2580 = vmatprep.subr.bf16.mxu0 0
    %2581 = vmatpush1.bf16.msra.mxu0 0
    %2582 = vmatprep.subr.bf16.mxu0 0
    %2583 = vmatpush1.bf16.msra.mxu0 0
    %2584 = vmatprep.subr.bf16.mxu0 0
    %2585 = vmatpush1.bf16.msra.mxu0 0
    %2586 = vmatprep.subr.bf16.mxu0 0
    %2587 = vmatpush1.bf16.msra.mxu0 0
    %2588 = vmatprep.subr.bf16.mxu0 0
    %2589 = vmatpush1.bf16.msra.mxu0 0
    %2590 = vmatprep.subr.bf16.mxu0 0
    %2591 = vmatpush1.bf16.msra.mxu0 0
    %2592 = vmatprep.subr.bf16.mxu0 0
    %2593 = vmatpush1.bf16.msra.mxu0 0
    %2594 = vmatprep.subr.bf16.mxu0 0
    %2595 = vmatpush1.bf16.msra.mxu0 0
    %2596 = vmatprep.subr.bf16.mxu0 0
    %2597 = vmatpush1.bf16.msra.mxu0 0
    %2598 = vmatprep.subr.bf16.mxu0 0
    %2599 = vmatpush1.bf16.msra.mxu0 0
    %2600 = vmatprep.mubr.bf16.mxu0 0
    %2601 = vmatmul.mubr.bf16.gmra.mrb[0].mxu0 %v2563
    %v2602 = vpop.f32.mrb[0].mxu0
    %v2603 = vadd.f32 0.0, %v2602
    %v2604 = vpop.f32.mrb[0].mxu0
    %v2605 = vpop.f32.mrb[0].mxu0
    %v2606 = vadd.f32 0.0, %v2605
    %v2607 = vpop.f32.mrb[0].mxu0
    %2608 = vdwg.mxu0
    %v2609 = vadd.f32 %v2436, %v2603
    %v2610 = vadd.f32 %v2437, %v2606
    %v2611 = vld [vmem:[#allocation2 + $0x298] sm:$0x1]
    %v2612 = vlaneseq
    %v2613 = vshrl.u32 %v2612, 7
    %v2614 = vsub.s32 0, %v2613
    %v2615 = vrot.slane %v2611, %v2614
    %v2616 = vadd.f32 %v2609, %v2615
    %v2617 = vadd.f32 %v2610, %v2615
    %v2618 = vadd.f32 %v2616, %v1639
    %v2619 = vadd.f32 %v2617, %v1640
    %v2620 = vld [vmem:[#allocation2 + $0x2a0] sm:$0x1]
    %v2621 = vlaneseq
    %v2622 = vshrl.u32 %v2621, 7
    %v2623 = vsub.s32 0, %v2622
    %v2624 = vrot.slane %v2620, %v2623
    %v2625 = vmul.f32 %v2618, %v2624
    %v2626 = vmul.f32 %v2619, %v2624
    %v2627 = vld [vmem:[#allocation2 + $0x2a8] sm:$0x1]
    %v2628 = vlaneseq
    %v2629 = vshrl.u32 %v2628, 7
    %v2630 = vsub.s32 0, %v2629
    %v2631 = vrot.slane %v2627, %v2630
    %v2632 = vadd.f32 %v2625, %v2631
    %v2633 = vadd.f32 %v2626, %v2631
    %v2634 = vadd.f32 %v1864, %v2632
    %v2635 = vadd.f32 %v1865, %v2633
    %v2636 = vld [vmem:[#allocation2 + $0x2b0] sm:$0xff]
    %v2637 = vld [vmem:[#allocation2 + $0x2b8] sm:$0xff]
    %v2638 = vld [vmem:[#allocation2 + $0x2c0] sm:$0xff]
    %v2639 = vld [vmem:[#allocation2 + $0x2c8] sm:$0xff]
    %v2640 = vpack.c.bf16 %v2637, %v2636
    %v2641 = vpack.c.bf16 %v2639, %v2638
    %v2642 = vpack.c.bf16 %v2635, %v2634
    %v2643 = vld [vmem:[#allocation2 + $0x2d0] sm:$0x1]
    %v2644 = vlaneseq
    %v2645 = vshrl.u32 %v2644, 7
    %v2646 = vsub.s32 0, %v2645
    %v2647 = vrot.slane %v2643, %v2646
    %v2649 = vsel %vm193, %v2642, 0
    %2651 = vmatprep.subr.bf16.mxu0 0
    %2652 = vmatpush1.bf16.msra.mxu0 %v2640
    %2653 = vmatprep.subr.bf16.mxu0 0
    %2654 = vmatpush1.bf16.msra.mxu0 %v2641
    %2655 = vmatprep.subr.bf16.mxu0 0
    %2656 = vmatpush1.bf16.msra.mxu0 0
    %2657 = vmatprep.subr.bf16.mxu0 0
    %2658 = vmatpush1.bf16.msra.mxu0 0
    %2659 = vmatprep.subr.bf16.mxu0 0
    %2660 = vmatpush1.bf16.msra.mxu0 0
    %2661 = vmatprep.subr.bf16.mxu0 0
    %2662 = vmatpush1.bf16.msra.mxu0 0
    %2663 = vmatprep.subr.bf16.mxu0 0
    %2664 = vmatpush1.bf16.msra.mxu0 0
    %2665 = vmatprep.subr.bf16.mxu0 0
    %2666 = vmatpush1.bf16.msra.mxu0 0
    %2667 = vmatprep.subr.bf16.mxu0 0
    %2668 = vmatpush1.bf16.msra.mxu0 0
    %2669 = vmatprep.subr.bf16.mxu0 0
    %2670 = vmatpush1.bf16.msra.mxu0 0
    %2671 = vmatprep.subr.bf16.mxu0 0
    %2672 = vmatpush1.bf16.msra.mxu0 0
    %2673 = vmatprep.subr.bf16.mxu0 0
    %2674 = vmatpush1.bf16.msra.mxu0 0
    %2675 = vmatprep.subr.bf16.mxu0 0
    %2676 = vmatpush1.bf16.msra.mxu0 0
    %2677 = vmatprep.subr.bf16.mxu0 0
    %2678 = vmatpush1.bf16.msra.mxu0 0
    %2679 = vmatprep.subr.bf16.mxu0 0
    %2680 = vmatpush1.bf16.msra.mxu0 0
    %2681 = vmatprep.subr.bf16.mxu0 0
    %2682 = vmatpush1.bf16.msra.mxu0 0
    %2683 = vmatprep.mubr.bf16.mxu0 0
    %2684 = vmatmul.mubr.bf16.gmra.mrb[0].mxu0 %v2649
    %v2685 = vpop.f32.mrb[0].mxu0
    %v2686 = vadd.f32 %v2647, %v2685
    %v2687 = vpop.f32.mrb[0].mxu0
    %v2688 = vpop.f32.mrb[0].mxu0
    %v2689 = vadd.f32 %v2647, %v2688
    %v2690 = vpop.f32.mrb[0].mxu0
    %2691 = vdwg.mxu0
    %v2692 = vmax.f32 %v2686, 0.0
    %v2693 = vmax.f32 %v2689, 0.0
    %v2694 = vld [vmem:[#allocation2 + $0x2d8] sm:$0xff]
    %v2695 = vld [vmem:[#allocation2 + $0x2e0] sm:$0xff]
    %v2696 = vld [vmem:[#allocation2 + $0x2e8] sm:$0xff]
    %v2697 = vld [vmem:[#allocation2 + $0x2f0] sm:$0xff]
    %v2698 = vld [vmem:[#allocation2 + $0x2f8] sm:$0xff]
    %v2699 = vld [vmem:[#allocation2 + $0x300] sm:$0xff]
    %v2700 = vld [vmem:[#allocation2 + $0x308] sm:$0xff]
    %v2701 = vld [vmem:[#allocation2 + $0x310] sm:$0xff]
    %v2702 = vpack.c.bf16 %v2695, %v2694
    %v2703 = vpack.c.bf16 %v2697, %v2696
    %v2704 = vpack.c.bf16 %v2699, %v2698
    %v2705 = vpack.c.bf16 %v2701, %v2700
    %v2706 = vpack.c.bf16 %v2693, %v2692
    %v2708 = vsel %vm1573, %v2706, 0
    %2710 = vmatprep.subr.bf16.mxu0 0
    %2711 = vmatpush1.bf16.msra.mxu0 %v2702
    %2712 = vmatprep.subr.bf16.mxu0 0
    %2713 = vmatpush1.bf16.msra.mxu0 %v2703
    %2714 = vmatprep.subr.bf16.mxu0 0
    %2715 = vmatpush1.bf16.msra.mxu0 %v2704
    %2716 = vmatprep.subr.bf16.mxu0 0
    %2717 = vmatpush1.bf16.msra.mxu0 %v2705
    %2718 = vmatprep.subr.bf16.mxu0 0
    %2719 = vmatpush1.bf16.msra.mxu0 0
    %2720 = vmatprep.subr.bf16.mxu0 0
    %2721 = vmatpush1.bf16.msra.mxu0 0
    %2722 = vmatprep.subr.bf16.mxu0 0
    %2723 = vmatpush1.bf16.msra.mxu0 0
    %2724 = vmatprep.subr.bf16.mxu0 0
    %2725 = vmatpush1.bf16.msra.mxu0 0
    %2726 = vmatprep.subr.bf16.mxu0 0
    %2727 = vmatpush1.bf16.msra.mxu0 0
    %2728 = vmatprep.subr.bf16.mxu0 0
    %2729 = vmatpush1.bf16.msra.mxu0 0
    %2730 = vmatprep.subr.bf16.mxu0 0
    %2731 = vmatpush1.bf16.msra.mxu0 0
    %2732 = vmatprep.subr.bf16.mxu0 0
    %2733 = vmatpush1.bf16.msra.mxu0 0
    %2734 = vmatprep.subr.bf16.mxu0 0
    %2735 = vmatpush1.bf16.msra.mxu0 0
    %2736 = vmatprep.subr.bf16.mxu0 0
    %2737 = vmatpush1.bf16.msra.mxu0 0
    %2738 = vmatprep.subr.bf16.mxu0 0
    %2739 = vmatpush1.bf16.msra.mxu0 0
    %2740 = vmatprep.subr.bf16.mxu0 0
    %2741 = vmatpush1.bf16.msra.mxu0 0
    %2742 = vmatprep.mubr.bf16.mxu0 0
    %2743 = vmatmul.mubr.bf16.gmra.mrb[0].mxu0 %v2708
    %v2744 = vpop.f32.mrb[0].mxu0
    %v2745 = vadd.f32 0.0, %v2744
    %v2746 = vpop.f32.mrb[0].mxu0
    %v2747 = vpop.f32.mrb[0].mxu0
    %v2748 = vadd.f32 0.0, %v2747
    %v2749 = vpop.f32.mrb[0].mxu0
    %2750 = vdwg.mxu0
    %v2751 = vadd.f32 %v2634, %v2745
    %v2752 = vadd.f32 %v2635, %v2748
    %v2753 = vld [vmem:[#allocation2 + $0x318] sm:$0x1]
    %v2754 = vlaneseq
    %v2755 = vshrl.u32 %v2754, 7
    %v2756 = vsub.s32 0, %v2755
    %v2757 = vrot.slane %v2753, %v2756
    %v2758 = vadd.f32 %v2751, %v2757
    %v2759 = vadd.f32 %v2752, %v2757
    %v2760 = vld [vmem:[#allocation2 + $0x320] sm:$0x1]
    %v2761 = vlaneseq
    %v2762 = vshrl.u32 %v2761, 7
    %v2763 = vsub.s32 0, %v2762
    %v2764 = vrot.slane %v2760, %v2763
    %v2765 = vmul.f32 %v2758, %v2764
    %v2766 = vmul.f32 %v2759, %v2764
    %v2767 = vld [vmem:[#allocation2 + $0x328] sm:$0x1]
    %v2768 = vlaneseq
    %v2769 = vshrl.u32 %v2768, 7
    %v2770 = vsub.s32 0, %v2769
    %v2771 = vrot.slane %v2767, %v2770
    %v2772 = vadd.f32 %v2765, %v2771
    %v2773 = vadd.f32 %v2766, %v2771
    %v2774 = vadd.bf16 %v87, %v109
    %v2775 = vadd.bf16 %v88, %v110
    %v2776 = vpack.c.bf16 %v2773, %v2772
    %v2778 = vsel %vm444, %v2774, 0
    %v2781 = vsel %vm444, %v2775, 0
    %2783 = vmatprep.subr.bf16.mxu0 0
    %2784 = vmatpush1.bf16.msra.mxu0 %v2776
    %2785 = vmatprep.subr.bf16.mxu0 0
    %2786 = vmatpush1.bf16.msra.mxu0 0
    %2787 = vmatprep.subr.bf16.mxu0 0
    %2788 = vmatpush1.bf16.msra.mxu0 0
    %2789 = vmatprep.subr.bf16.mxu0 0
    %2790 = vmatpush1.bf16.msra.mxu0 0
    %2791 = vmatprep.subr.bf16.mxu0 0
    %2792 = vmatpush1.bf16.msra.mxu0 0
    %2793 = vmatprep.subr.bf16.mxu0 0
    %2794 = vmatpush1.bf16.msra.mxu0 0
    %2795 = vmatprep.subr.bf16.mxu0 0
    %2796 = vmatpush1.bf16.msra.mxu0 0
    %2797 = vmatprep.subr.bf16.mxu0 0
    %2798 = vmatpush1.bf16.msra.mxu0 0
    %2799 = vmatprep.subr.bf16.mxu0 0
    %2800 = vmatpush1.bf16.msra.mxu0 0
    %2801 = vmatprep.subr.bf16.mxu0 0
    %2802 = vmatpush1.bf16.msra.mxu0 0
    %2803 = vmatprep.subr.bf16.mxu0 0
    %2804 = vmatpush1.bf16.msra.mxu0 0
    %2805 = vmatprep.subr.bf16.mxu0 0
    %2806 = vmatpush1.bf16.msra.mxu0 0
    %2807 = vmatprep.subr.bf16.mxu0 0
    %2808 = vmatpush1.bf16.msra.mxu0 0
    %2809 = vmatprep.subr.bf16.mxu0 0
    %2810 = vmatpush1.bf16.msra.mxu0 0
    %2811 = vmatprep.subr.bf16.mxu0 0
    %2812 = vmatpush1.bf16.msra.mxu0 0
    %2813 = vmatprep.subr.bf16.mxu0 0
    %2814 = vmatpush1.bf16.msra.mxu0 0
    %2815 = vmatprep.mubr.bf16.mxu0 0
    %2816 = vmatmul.mubr.bf16.gmra.mrb[0].mxu0 %v2778
    %v2817 = vpop.f32.mrb[0].mxu0
    %v2818 = vadd.f32 0.0, %v2817
    %v2819 = vpop.f32.mrb[0].mxu0
    %v2820 = vpop.f32.mrb[0].mxu0
    %v2821 = vadd.f32 0.0, %v2820
    %v2822 = vpop.f32.mrb[0].mxu0
    %2823 = vmatprep.mubr.bf16.mxu0 0
    %2824 = vmatmul.mubr.bf16.gmra.mrb[0].mxu0 %v2781
    %v2825 = vpop.f32.mrb[0].mxu0
    %v2826 = vadd.f32 0.0, %v2825
    %v2827 = vpop.f32.mrb[0].mxu0
    %v2828 = vpop.f32.mrb[0].mxu0
    %v2829 = vadd.f32 0.0, %v2828
    %v2830 = vpop.f32.mrb[0].mxu0
    %2831 = vdwg.mxu0
    %v2832 = vld [vmem:[#allocation2 + $0x330] sm:$0xff]
    %v2833 = vld [vmem:[#allocation2 + $0x338] sm:$0xff]
    %v2834 = vld [vmem:[#allocation2 + $0x340] sm:$0xff]
    %v2835 = vld [vmem:[#allocation2 + $0x348] sm:$0xff]
    %v2836 = vpack.c.bf16 %v2833, %v2832
    %v2837 = vpack.c.bf16 %v2835, %v2834
    %v2838 = vpack.c.bf16 %v2821, %v2818
    %v2839 = vpack.c.bf16 %v2829, %v2826
    %v2840 = vld [vmem:[#allocation2 + $0x350] sm:$0x1]
    %v2841 = vlaneseq
    %v2842 = vshrl.u32 %v2841, 7
    %v2843 = vsub.s32 0, %v2842
    %v2844 = vrot.slane %v2840, %v2843
    %v2846 = vsel %vm193, %v2838, 0
    %v2849 = vsel %vm193, %v2839, 0
    %2851 = vmatprep.subr.bf16.mxu0 0
    %2852 = vmatpush1.bf16.msra.mxu0 %v2836
    %2853 = vmatprep.subr.bf16.mxu0 0
    %2854 = vmatpush1.bf16.msra.mxu0 %v2837
    %2855 = vmatprep.subr.bf16.mxu0 0
    %2856 = vmatpush1.bf16.msra.mxu0 0
    %2857 = vmatprep.subr.bf16.mxu0 0
    %2858 = vmatpush1.bf16.msra.mxu0 0
    %2859 = vmatprep.subr.bf16.mxu0 0
    %2860 = vmatpush1.bf16.msra.mxu0 0
    %2861 = vmatprep.subr.bf16.mxu0 0
    %2862 = vmatpush1.bf16.msra.mxu0 0
    %2863 = vmatprep.subr.bf16.mxu0 0
    %2864 = vmatpush1.bf16.msra.mxu0 0
    %2865 = vmatprep.subr.bf16.mxu0 0
    %2866 = vmatpush1.bf16.msra.mxu0 0
    %2867 = vmatprep.subr.bf16.mxu0 0
    %2868 = vmatpush1.bf16.msra.mxu0 0
    %2869 = vmatprep.subr.bf16.mxu0 0
    %2870 = vmatpush1.bf16.msra.mxu0 0
    %2871 = vmatprep.subr.bf16.mxu0 0
    %2872 = vmatpush1.bf16.msra.mxu0 0
    %2873 = vmatprep.subr.bf16.mxu0 0
    %2874 = vmatpush1.bf16.msra.mxu0 0
    %2875 = vmatprep.subr.bf16.mxu0 0
    %2876 = vmatpush1.bf16.msra.mxu0 0
    %2877 = vmatprep.subr.bf16.mxu0 0
    %2878 = vmatpush1.bf16.msra.mxu0 0
    %2879 = vmatprep.subr.bf16.mxu0 0
    %2880 = vmatpush1.bf16.msra.mxu0 0
    %2881 = vmatprep.subr.bf16.mxu0 0
    %2882 = vmatpush1.bf16.msra.mxu0 0
    %2883 = vmatprep.mubr.bf16.mxu0 0
    %2884 = vmatmul.mubr.bf16.gmra.mrb[0].mxu0 %v2846
    %v2885 = vpop.f32.mrb[0].mxu0
    %v2886 = vadd.f32 %v2844, %v2885
    %v2887 = vpop.f32.mrb[0].mxu0
    %v2888 = vpop.f32.mrb[0].mxu0
    %v2889 = vadd.f32 %v2844, %v2888
    %v2890 = vpop.f32.mrb[0].mxu0
    %2891 = vmatprep.mubr.bf16.mxu0 0
    %2892 = vmatmul.mubr.bf16.gmra.mrb[0].mxu0 %v2849
    %v2893 = vpop.f32.mrb[0].mxu0
    %v2894 = vadd.f32 %v2844, %v2893
    %v2895 = vpop.f32.mrb[0].mxu0
    %v2896 = vpop.f32.mrb[0].mxu0
    %v2897 = vadd.f32 %v2844, %v2896
    %v2898 = vpop.f32.mrb[0].mxu0
    %2899 = vdwg.mxu0
    %v2900 = vmax.f32 %v2886, 0.0
    %v2901 = vmax.f32 %v2889, 0.0
    %v2902 = vmax.f32 %v2894, 0.0
    %v2903 = vmax.f32 %v2897, 0.0
    %v2904 = vld [vmem:[#allocation2 + $0x358] sm:$0xff]
    %v2905 = vld [vmem:[#allocation2 + $0x360] sm:$0xff]
    %v2906 = vld [vmem:[#allocation2 + $0x368] sm:$0xff]
    %v2907 = vld [vmem:[#allocation2 + $0x370] sm:$0xff]
    %v2908 = vpack.c.bf16 %v2905, %v2904
    %v2909 = vpack.c.bf16 %v2907, %v2906
    %v2910 = vpack.c.bf16 %v2901, %v2900
    %v2911 = vpack.c.bf16 %v2903, %v2902
    %v2912 = vld [vmem:[#allocation2 + $0x378] sm:$0x1]
    %v2913 = vlaneseq
    %v2914 = vshrl.u32 %v2913, 7
    %v2915 = vsub.s32 0, %v2914
    %v2916 = vrot.slane %v2912, %v2915
    %v2918 = vsel %vm193, %v2910, 0
    %v2921 = vsel %vm193, %v2911, 0
    %2923 = vmatprep.subr.bf16.mxu0 0
    %2924 = vmatpush1.bf16.msra.mxu0 %v2908
    %2925 = vmatprep.subr.bf16.mxu0 0
    %2926 = vmatpush1.bf16.msra.mxu0 %v2909
    %2927 = vmatprep.subr.bf16.mxu0 0
    %2928 = vmatpush1.bf16.msra.mxu0 0
    %2929 = vmatprep.subr.bf16.mxu0 0
    %2930 = vmatpush1.bf16.msra.mxu0 0
    %2931 = vmatprep.subr.bf16.mxu0 0
    %2932 = vmatpush1.bf16.msra.mxu0 0
    %2933 = vmatprep.subr.bf16.mxu0 0
    %2934 = vmatpush1.bf16.msra.mxu0 0
    %2935 = vmatprep.subr.bf16.mxu0 0
    %2936 = vmatpush1.bf16.msra.mxu0 0
    %2937 = vmatprep.subr.bf16.mxu0 0
    %2938 = vmatpush1.bf16.msra.mxu0 0
    %2939 = vmatprep.subr.bf16.mxu0 0
    %2940 = vmatpush1.bf16.msra.mxu0 0
    %2941 = vmatprep.subr.bf16.mxu0 0
    %2942 = vmatpush1.bf16.msra.mxu0 0
    %2943 = vmatprep.subr.bf16.mxu0 0
    %2944 = vmatpush1.bf16.msra.mxu0 0
    %2945 = vmatprep.subr.bf16.mxu0 0
    %2946 = vmatpush1.bf16.msra.mxu0 0
    %2947 = vmatprep.subr.bf16.mxu0 0
    %2948 = vmatpush1.bf16.msra.mxu0 0
    %2949 = vmatprep.subr.bf16.mxu0 0
    %2950 = vmatpush1.bf16.msra.mxu0 0
    %2951 = vmatprep.subr.bf16.mxu0 0
    %2952 = vmatpush1.bf16.msra.mxu0 0
    %2953 = vmatprep.subr.bf16.mxu0 0
    %2954 = vmatpush1.bf16.msra.mxu0 0
    %2955 = vmatprep.mubr.bf16.mxu0 0
    %2956 = vmatmul.mubr.bf16.gmra.mrb[0].mxu0 %v2918
    %v2957 = vpop.f32.mrb[0].mxu0
    %v2958 = vadd.f32 %v2916, %v2957
    %v2959 = vpop.f32.mrb[0].mxu0
    %v2960 = vpop.f32.mrb[0].mxu0
    %v2961 = vadd.f32 %v2916, %v2960
    %v2962 = vpop.f32.mrb[0].mxu0
    %2963 = vmatprep.mubr.bf16.mxu0 0
    %2964 = vmatmul.mubr.bf16.gmra.mrb[0].mxu0 %v2921
    %v2965 = vpop.f32.mrb[0].mxu0
    %v2966 = vadd.f32 %v2916, %v2965
    %v2967 = vpop.f32.mrb[0].mxu0
    %v2968 = vpop.f32.mrb[0].mxu0
    %v2969 = vadd.f32 %v2916, %v2968
    %v2970 = vpop.f32.mrb[0].mxu0
    %2971 = vdwg.mxu0
    %v2972 = vld [vmem:[#allocation2 + $0x380] sm:$0xff]
    %v2973 = vld [vmem:[#allocation2 + $0x388] sm:$0xff]
    %v2974 = vld [vmem:[#allocation2 + $0x390] sm:$0xff]
    %v2975 = vld [vmem:[#allocation2 + $0x398] sm:$0xff]
    %v2976 = vpack.c.bf16 %v2973, %v2972
    %v2977 = vpack.c.bf16 %v2975, %v2974
    %v2978 = vld [vmem:[#allocation2 + $0x3a0] sm:$0x1]
    %v2979 = vlaneseq
    %v2980 = vshrl.u32 %v2979, 7
    %v2981 = vsub.s32 0, %v2980
    %v2982 = vrot.slane %v2978, %v2981
    %v2984 = vsel %vm193, %v2776, 0
    %2986 = vmatprep.subr.bf16.mxu0 0
    %2987 = vmatpush1.bf16.msra.mxu0 %v2976
    %2988 = vmatprep.subr.bf16.mxu0 0
    %2989 = vmatpush1.bf16.msra.mxu0 %v2977
    %2990 = vmatprep.subr.bf16.mxu0 0
    %2991 = vmatpush1.bf16.msra.mxu0 0
    %2992 = vmatprep.subr.bf16.mxu0 0
    %2993 = vmatpush1.bf16.msra.mxu0 0
    %2994 = vmatprep.subr.bf16.mxu0 0
    %2995 = vmatpush1.bf16.msra.mxu0 0
    %2996 = vmatprep.subr.bf16.mxu0 0
    %2997 = vmatpush1.bf16.msra.mxu0 0
    %2998 = vmatprep.subr.bf16.mxu0 0
    %2999 = vmatpush1.bf16.msra.mxu0 0
    %3000 = vmatprep.subr.bf16.mxu0 0
    %3001 = vmatpush1.bf16.msra.mxu0 0
    %3002 = vmatprep.subr.bf16.mxu0 0
    %3003 = vmatpush1.bf16.msra.mxu0 0
    %3004 = vmatprep.subr.bf16.mxu0 0
    %3005 = vmatpush1.bf16.msra.mxu0 0
    %3006 = vmatprep.subr.bf16.mxu0 0
    %3007 = vmatpush1.bf16.msra.mxu0 0
    %3008 = vmatprep.subr.bf16.mxu0 0
    %3009 = vmatpush1.bf16.msra.mxu0 0
    %3010 = vmatprep.subr.bf16.mxu0 0
    %3011 = vmatpush1.bf16.msra.mxu0 0
    %3012 = vmatprep.subr.bf16.mxu0 0
    %3013 = vmatpush1.bf16.msra.mxu0 0
    %3014 = vmatprep.subr.bf16.mxu0 0
    %3015 = vmatpush1.bf16.msra.mxu0 0
    %3016 = vmatprep.subr.bf16.mxu0 0
    %3017 = vmatpush1.bf16.msra.mxu0 0
    %3018 = vmatprep.mubr.bf16.mxu0 0
    %3019 = vmatmul.mubr.bf16.gmra.mrb[0].mxu0 %v2984
    %v3020 = vpop.f32.mrb[0].mxu0
    %v3021 = vadd.f32 %v2982, %v3020
    %v3022 = vpop.f32.mrb[0].mxu0
    %v3023 = vpop.f32.mrb[0].mxu0
    %v3024 = vadd.f32 %v2982, %v3023
    %v3025 = vpop.f32.mrb[0].mxu0
    %3026 = vdwg.mxu0
    %vm3027 = vcmp.ge.s32.totalorder %v63, 0
    %vm3028 = vcmp.lt.s32.totalorder %v63, 10
    %vm3029 = vmand %vm3027, %vm3028
    %v3030 = vsel %vm3029, %v3021, -1e+09
    %v3031 = vsel %vm3029, %v3024, -1e+09
    %3032 = vmax.xlane.f32.xlu0 %v3030
    %v3033 = vpop.xlane.xlu0 %3032
    %3034 = vmax.xlane.f32.xlu0 %v3031
    %v3035 = vpop.xlane.xlu0 %3034
    %v3036 = vsub.f32 %v3021, %v3033
    %v3037 = vsub.f32 %v3024, %v3035
    %v3038 = vmul.f32 %v3036, 1.442695
    %v3039 = vpow.pop %v3038
    %v3040 = vmul.f32 %v3037, 1.442695
    %v3041 = vpow.pop %v3040
    %v3042 = vsel %vm3029, %v3039, 0.0
    %v3043 = vsel %vm3029, %v3041, 0.0
    %3044 = vadd.xlane.f32.xlu0 %v3042
    %v3045 = vpop.xlane.xlu0 %3044
    %3046 = vadd.xlane.f32.xlu0 %v3043
    %v3047 = vpop.xlane.xlu0 %3046
    %v3048 = vlog2.pop %v3045
    %v3049 = vmul.f32 %v3048, 0.6931472
    %v3050 = vlog2.pop %v3047
    %v3051 = vmul.f32 %v3050, 0.6931472
    %v3052 = vsub.f32 %v3036, %v3049
    %v3053 = vsub.f32 %v3037, %v3051
    %v3054 = vsel %vm3029, %v3052, 0.0
    %v3055 = vsel %vm3029, %v3053, 0.0
    %vm3056 = vcmp.ge.s32.totalorder %v63, 10
    %vm3057 = vcmp.lt.s32.totalorder %v63, 14
    %vm3058 = vmand %vm3056, %vm3057
    %v3059 = vsel %vm3058, %v3021, -1e+09
    %v3060 = vsel %vm3058, %v3024, -1e+09
    %3061 = vmax.xlane.f32.xlu0 %v3059
    %v3062 = vpop.xlane.xlu0 %3061
    %3063 = vmax.xlane.f32.xlu0 %v3060
    %v3064 = vpop.xlane.xlu0 %3063
    %v3065 = vsub.f32 %v3021, %v3062
    %v3066 = vsub.f32 %v3024, %v3064
    %v3067 = vmul.f32 %v3065, 1.442695
    %v3068 = vpow.pop %v3067
    %v3069 = vmul.f32 %v3066, 1.442695
    %v3070 = vpow.pop %v3069
    %v3071 = vsel %vm3058, %v3068, 0.0
    %v3072 = vsel %vm3058, %v3070, 0.0
    %3073 = vadd.xlane.f32.xlu0 %v3071
    %v3074 = vpop.xlane.xlu0 %3073
    %3075 = vadd.xlane.f32.xlu0 %v3072
    %v3076 = vpop.xlane.xlu0 %3075
    %v3077 = vlog2.pop %v3074
    %v3078 = vmul.f32 %v3077, 0.6931472
    %v3079 = vlog2.pop %v3076
    %v3080 = vmul.f32 %v3079, 0.6931472
    %v3081 = vsub.f32 %v3065, %v3078
    %v3082 = vsub.f32 %v3066, %v3080
    %v3083 = vsel %vm3058, %v3081, %v3054
    %v3084 = vsel %vm3058, %v3082, %v3055
    %3085 = vst [vmem:[%s6] sm:$0xff] %v3083
    %3086 = vst [vmem:[%s6 + $0x8] sm:$0xff] %v3084
    %v3087 = vld [vmem:[#allocation2 + $0x3a8] sm:$0xff]
    %v3088 = vld [vmem:[#allocation2 + $0x3b0] sm:$0xff]
    %v3089 = vld [vmem:[#allocation2 + $0x3b8] sm:$0xff]
    %v3090 = vld [vmem:[#allocation2 + $0x3c0] sm:$0xff]
    %v3091 = vpack.c.bf16 %v2961, %v2958
    %v3092 = vpack.c.bf16 %v2969, %v2966
    %v3093 = vpack.c.bf16 %v3088, %v3087
    %v3094 = vpack.c.bf16 %v3090, %v3089
    %v3095 = vld [vmem:[#allocation2 + $0x3c8] sm:$0x1]
    %v3096 = vlaneseq
    %v3097 = vshrl.u32 %v3096, 7
    %v3098 = vsub.s32 0, %v3097
    %v3099 = vrot.slane %v3095, %v3098
    %v3101 = vsel %vm193, %v3091, 0
    %v3104 = vsel %vm193, %v3092, 0
    %3106 = vmatprep.subr.bf16.mxu0 0
    %3107 = vmatpush1.bf16.msra.mxu0 %v3093
    %3108 = vmatprep.subr.bf16.mxu0 0
    %3109 = vmatpush1.bf16.msra.mxu0 %v3094
    %3110 = vmatprep.subr.bf16.mxu0 0
    %3111 = vmatpush1.bf16.msra.mxu0 0
    %3112 = vmatprep.subr.bf16.mxu0 0
    %3113 = vmatpush1.bf16.msra.mxu0 0
    %3114 = vmatprep.subr.bf16.mxu0 0
    %3115 = vmatpush1.bf16.msra.mxu0 0
    %3116 = vmatprep.subr.bf16.mxu0 0
    %3117 = vmatpush1.bf16.msra.mxu0 0
    %3118 = vmatprep.subr.bf16.mxu0 0
    %3119 = vmatpush1.bf16.msra.mxu0 0
    %3120 = vmatprep.subr.bf16.mxu0 0
    %3121 = vmatpush1.bf16.msra.mxu0 0
    %3122 = vmatprep.subr.bf16.mxu0 0
    %3123 = vmatpush1.bf16.msra.mxu0 0
    %3124 = vmatprep.subr.bf16.mxu0 0
    %3125 = vmatpush1.bf16.msra.mxu0 0
    %3126 = vmatprep.subr.bf16.mxu0 0
    %3127 = vmatpush1.bf16.msra.mxu0 0
    %3128 = vmatprep.subr.bf16.mxu0 0
    %3129 = vmatpush1.bf16.msra.mxu0 0
    %3130 = vmatprep.subr.bf16.mxu0 0
    %3131 = vmatpush1.bf16.msra.mxu0 0
    %3132 = vmatprep.subr.bf16.mxu0 0
    %3133 = vmatpush1.bf16.msra.mxu0 0
    %3134 = vmatprep.subr.bf16.mxu0 0
    %3135 = vmatpush1.bf16.msra.mxu0 0
    %3136 = vmatprep.subr.bf16.mxu0 0
    %3137 = vmatpush1.bf16.msra.mxu0 0
    %3138 = vmatprep.mubr.bf16.mxu0 0
    %3139 = vmatmul.mubr.bf16.gmra.mrb[0].mxu0 %v3101
    %v3140 = vpop.f32.mrb[0].mxu0
    %v3141 = vadd.f32 %v3099, %v3140
    %v3142 = vpop.f32.mrb[0].mxu0
    %v3143 = vpop.f32.mrb[0].mxu0
    %v3144 = vadd.f32 %v3099, %v3143
    %v3145 = vpop.f32.mrb[0].mxu0
    %3146 = vmatprep.mubr.bf16.mxu0 0
    %3147 = vmatmul.mubr.bf16.gmra.mrb[0].mxu0 %v3104
    %v3148 = vpop.f32.mrb[0].mxu0
    %v3149 = vadd.f32 %v3099, %v3148
    %v3150 = vpop.f32.mrb[0].mxu0
    %v3151 = vpop.f32.mrb[0].mxu0
    %v3152 = vadd.f32 %v3099, %v3151
    %v3153 = vpop.f32.mrb[0].mxu0
    %3154 = vdwg.mxu0
    %vm3155 = vcmp.lt.s32.totalorder %v63, 5
    %vm3156 = vmand %vm3027, %vm3155
    %v3157 = vsel %vm3156, %v3141, -1e+09
    %v3158 = vsel %vm3156, %v3144, -1e+09
    %v3159 = vsel %vm3156, %v3149, -1e+09
    %v3160 = vsel %vm3156, %v3152, -1e+09
    %3161 = vmax.xlane.f32.xlu0 %v3157
    %v3162 = vpop.xlane.xlu0 %3161
    %3163 = vmax.xlane.f32.xlu0 %v3158
    %v3164 = vpop.xlane.xlu0 %3163
    %3165 = vmax.xlane.f32.xlu0 %v3159
    %v3166 = vpop.xlane.xlu0 %3165
    %3167 = vmax.xlane.f32.xlu0 %v3160
    %v3168 = vpop.xlane.xlu0 %3167
    %v3169 = vsub.f32 %v3141, %v3162
    %v3170 = vsub.f32 %v3144, %v3164
    %v3171 = vsub.f32 %v3149, %v3166
    %v3172 = vsub.f32 %v3152, %v3168
    %v3173 = vmul.f32 %v3169, 1.442695
    %v3174 = vpow.pop %v3173
    %v3175 = vmul.f32 %v3170, 1.442695
    %v3176 = vpow.pop %v3175
    %v3177 = vmul.f32 %v3171, 1.442695
    %v3178 = vpow.pop %v3177
    %v3179 = vmul.f32 %v3172, 1.442695
    %v3180 = vpow.pop %v3179
    %v3181 = vsel %vm3156, %v3174, 0.0
    %v3182 = vsel %vm3156, %v3176, 0.0
    %v3183 = vsel %vm3156, %v3178, 0.0
    %v3184 = vsel %vm3156, %v3180, 0.0
    %3185 = vadd.xlane.f32.xlu0 %v3181
    %v3186 = vpop.xlane.xlu0 %3185
    %3187 = vadd.xlane.f32.xlu0 %v3182
    %v3188 = vpop.xlane.xlu0 %3187
    %3189 = vadd.xlane.f32.xlu0 %v3183
    %v3190 = vpop.xlane.xlu0 %3189
    %3191 = vadd.xlane.f32.xlu0 %v3184
    %v3192 = vpop.xlane.xlu0 %3191
    %v3193 = vlog2.pop %v3186
    %v3194 = vmul.f32 %v3193, 0.6931472
    %v3195 = vlog2.pop %v3188
    %v3196 = vmul.f32 %v3195, 0.6931472
    %v3197 = vlog2.pop %v3190
    %v3198 = vmul.f32 %v3197, 0.6931472
    %v3199 = vlog2.pop %v3192
    %v3200 = vmul.f32 %v3199, 0.6931472
    %v3201 = vsub.f32 %v3169, %v3194
    %v3202 = vsub.f32 %v3170, %v3196
    %v3203 = vsub.f32 %v3171, %v3198
    %v3204 = vsub.f32 %v3172, %v3200
    %v3205 = vsel %vm3156, %v3201, 0.0
    %v3206 = vsel %vm3156, %v3202, 0.0
    %v3207 = vsel %vm3156, %v3203, 0.0
    %v3208 = vsel %vm3156, %v3204, 0.0
    %3209 = vst [vmem:[%s7] sm:$0xff] %v3205
    %3210 = vst [vmem:[%s7 + $0x8] sm:$0xff] %v3206
    %3211 = vst [vmem:[%s7 + $0x10] sm:$0xff] %v3207
    %3212 = vst [vmem:[%s7 + $0x18] sm:$0xff] %v3208
    // Predicated region
    $region30: #{forward.1} parent=1 // pred_check
      _
    $region31: #{forward.1} parent=1 // pred_check_branch
      %3214 = sbr.rel (0) target = $region33
    $region32: #{forward.1} parent=1 // pred_region
      _
    $region33: #{forward.1} parent=1 // pred_fallthru
      _
    // Predicated region
    $region34: #{forward.1} parent=1 // pred_check
      _
    $region35: #{forward.1} parent=1 // pred_check_branch
      %3216 = sbr.rel (0) target = $region37
    $region36: #{forward.1} parent=1 // pred_region
      _
    $region37: #{forward.1} parent=1 // pred_fallthru
      _
    // Predicated region
    $region38: #{forward.1} parent=1 // pred_check
      _
    $region39: #{forward.1} parent=1 // pred_check_branch
      %3218 = sbr.rel (0) target = $region41
    $region40: #{forward.1} parent=1 // pred_region
      _
    $region41: #{forward.1} parent=1 // pred_fallthru
      _
    // Predicated region
    $region42: #{forward.1} parent=1 // pred_check
      _
    $region43: #{forward.1} parent=1 // pred_check_branch
      %3220 = sbr.rel (0) target = $region45
    $region44: #{forward.1} parent=1 // pred_region
      _
    $region45: #{forward.1} parent=1 // pred_fallthru
      _
    %3221 = vsyncpa [#allocation3], 1

</llo_original>
